<compile_context>
chip_gen: v7x
topology: tpu7x:2x2x1
jax: 0.10.0
libtpu: 0.0.40
codegen_flags: <defaults>
</compile_context>

<pallas_src>
import jax
import jax.numpy as jnp
import numpy as np
from jax.experimental import pallas as pl
from jax.experimental.pallas import tpu as pltpu


# ----------------------------------------------------------------------------
# Fused forward kernel
# ----------------------------------------------------------------------------
def _make_forward_kernel(dims):
    KH, H1o, H2o, P2h = dims

    def kernel(x_ref, t1_ref, b1_ref, p1r_ref, p1c_ref,
               t2_ref, b2_ref, p2r_ref, p2c_ref,
               w1_ref, b1f_ref, w2_ref, b2f_ref, w3_ref, b3f_ref,
               logits_ref, hidden_ref):
        f32 = jnp.float32

        def dot(a, b):
            return jnp.dot(a, b, preferred_element_type=f32)

        x = x_ref[0]                                      # (H1, W1*Cin)

        # ---- conv1 + bias + ReLU (KH matmuls, row-Toeplitz weights) ----
        y = dot(x[0:H1o, :], t1_ref[0])
        for kh in range(1, KH):
            y = y + dot(x[kh:kh + H1o, :], t1_ref[kh])    # (H1o, W1o*C1o)
        y = jnp.maximum(y + b1_ref[...], 0.0)

        # ---- 2x2 max-pool via 0/1 selection matmuls + elementwise max ----
        y = jnp.maximum(dot(p1r_ref[0], y), dot(p1r_ref[1], y))    # rows
        a1 = jnp.maximum(dot(y, p1c_ref[0]), dot(y, p1c_ref[1]))   # (P1h, P1w*C1o)

        # ---- conv2 + bias + ReLU ----
        z = dot(a1[0:H2o, :], t2_ref[0])
        for kh in range(1, KH):
            z = z + dot(a1[kh:kh + H2o, :], t2_ref[kh])   # (H2o, W2o*C2o)
        z = jnp.maximum(z + b2_ref[...], 0.0)

        # ---- 2x2 max-pool ----
        z = jnp.maximum(dot(p2r_ref[0], z), dot(p2r_ref[1], z))
        a2 = jnp.maximum(dot(z, p2c_ref[0]), dot(z, p2c_ref[1]))   # (P2h, P2w*C2o)

        # ---- fc1 (NCHW flatten folded into per-row weight slabs) + ReLU ----
        h1 = b1f_ref[...]                                 # (1, F1p)
        for r in range(P2h):
            h1 = h1 + dot(a2[r:r + 1, :], w1_ref[r])
        h1 = jnp.maximum(h1, 0.0)

        # ---- fc2 -> hidden representation (lane-padded) ----
        hid = dot(h1, w2_ref[...]) + b2f_ref[...]         # (1, HRp)
        hidden_ref[0] = hid

        # ---- fc3 on relu(hidden) -> logits (lane-padded) ----
        logits_ref[0] = dot(jnp.maximum(hid, 0.0), w3_ref[...]) + b3f_ref[...]

    return kernel


# ----------------------------------------------------------------------------
# Trace-time weight preprocessing (weight-sized only; no activation gathers)
# ----------------------------------------------------------------------------
def _round_up(v, m):
    return ((v + m - 1) // m) * m


def _pool_row_select(h_in):
    """(2, h_in//2, h_in) 0/1 matrices selecting even / odd rows."""
    ph = h_in // 2
    s = np.zeros((2, ph, h_in), np.float32)
    idx = np.arange(ph)
    s[0, idx, 2 * idx] = 1.0
    s[1, idx, 2 * idx + 1] = 1.0
    return jnp.asarray(s)


def _pool_col_select(w_in, c):
    """(2, w_in*c, (w_in//2)*c) 0/1 matrices selecting even / odd column groups."""
    pw = w_in // 2
    s = np.zeros((2, w_in * c, pw * c), np.float32)
    q = np.arange(pw)
    for ch in range(c):
        s[0, 2 * q * c + ch, q * c + ch] = 1.0
        s[1, (2 * q + 1) * c + ch, q * c + ch] = 1.0
    return jnp.asarray(s)


def _conv_row_weights(w_oihw, w_in, w_out):
    """Banded row-Toeplitz form of a conv weight.

    T[kh, iw*Cin + ci, ow*Cout + co] = w[co, ci, kh, iw-ow] for 0 <= iw-ow < KW,
    so conv(x)[oh, ow, co] = sum_kh (x_rows[oh+kh, :] @ T[kh])[ow*Cout + co],
    where x_rows is the (H, W*Cin) row-major NHWC activation.
    """
    cout, cin, kh, kw = w_oihw.shape
    iw = jnp.arange(w_in)[:, None]
    ow = jnp.arange(w_out)[None, :]
    d = iw - ow
    valid = (d >= 0) & (d < kw)
    didx = jnp.clip(d, 0, kw - 1)
    g = w_oihw[:, :, :, didx]                     # (cout, cin, kh, w_in, w_out)
    g = jnp.transpose(g, (2, 3, 1, 4, 0))         # (kh, w_in, cin, w_out, cout)
    g = jnp.where(valid[None, :, None, :, None], g, 0.0)
    return g.reshape(kh, w_in * cin, w_out * cout)


# ----------------------------------------------------------------------------
# Forward wrapper
# ----------------------------------------------------------------------------
@jax.jit
def clusternet_forward(x_nchw, params):
    """Returns (logits, cluster_loss, hidden_reps) matching ClusterNet.forward."""
    f32 = jnp.float32
    N, C1i, H1, W1 = x_nchw.shape
    C1o, _, KH, KW = params["conv1_w"].shape
    C2o = params["conv2_w"].shape[0]
    F1 = params["fc1_w"].shape[0]                 # 120
    HR = params["fc2_w"].shape[0]                 # hidden_rep_dim
    NC = params["fc3_w"].shape[0]                 # 10 classes

    # geometry (assumes even conv-output sizes; true for 28x28 MNIST)
    H1o, W1o = H1 - KH + 1, W1 - KW + 1
    P1h, P1w = H1o // 2, W1o // 2
    H2o, W2o = P1h - KH + 1, P1w - KW + 1
    P2h, P2w = H2o // 2, W2o // 2

    F1p = _round_up(F1, 128)
    HRp = _round_up(HR, 128)
    NCp = _round_up(NC, 128)

    # Input as (N, H, W*Cin) rows; MNIST has Cin=1 so this is just a squeeze.
    x_rows = jnp.transpose(x_nchw, (0, 2, 3, 1)).reshape(N, H1, W1 * C1i)

    # conv weights -> row-Toeplitz matmul form; biases tiled per output column.
    t1 = _conv_row_weights(params["conv1_w"], W1, W1o)     # (KH, W1*C1i, W1o*C1o)
    b1 = jnp.tile(params["conv1_b"], W1o).reshape(1, W1o * C1o)
    t2 = _conv_row_weights(params["conv2_w"], P1w, W2o)    # (KH, P1w*C1o, W2o*C2o)
    b2 = jnp.tile(params["conv2_b"], W2o).reshape(1, W2o * C2o)

    p1r = _pool_row_select(H1o)
    p1c = _pool_col_select(W1o, C1o)
    p2r = _pool_row_select(H2o)
    p2c = _pool_col_select(W2o, C2o)

    # fc1: fold the torch NCHW flatten into a row permutation of the weights,
    # grouped per pooled row so the kernel never reshapes activations.
    w1 = params["fc1_w"].reshape(F1, C2o, P2h, P2w)        # (j, c, h, w)
    w1 = jnp.transpose(w1, (2, 3, 1, 0)).reshape(P2h, P2w * C2o, F1)
    w1 = jnp.pad(w1, ((0, 0), (0, 0), (0, F1p - F1)))
    b1f = jnp.pad(params["fc1_b"], (0, F1p - F1)).reshape(1, F1p)

    w2 = jnp.zeros((F1p, HRp), f32).at[:F1, :HR].set(params["fc2_w"].T)
    b2f = jnp.pad(params["fc2_b"], (0, HRp - HR)).reshape(1, HRp)
    w3 = jnp.zeros((HRp, NCp), f32).at[:HR, :NC].set(params["fc3_w"].T)
    b3f = jnp.pad(params["fc3_b"], (0, NCp - NC)).reshape(1, NCp)

    kernel = _make_forward_kernel((KH, H1o, H2o, P2h))

    def full(*shape):
        return pl.BlockSpec(shape, lambda i, _n=len(shape): (0,) * _n)

    logits_pad, hidden_pad = pl.pallas_call(
        kernel,
        out_shape=(jax.ShapeDtypeStruct((N, 1, NCp), f32),
                   jax.ShapeDtypeStruct((N, 1, HRp), f32)),
        grid=(N,),
        in_specs=[
            pl.BlockSpec((1, H1, W1 * C1i), lambda i: (i, 0, 0)),
            full(*t1.shape), full(*b1.shape), full(*p1r.shape), full(*p1c.shape),
            full(*t2.shape), full(*b2.shape), full(*p2r.shape), full(*p2c.shape),
            full(*w1.shape), full(*b1f.shape), full(*w2.shape), full(*b2f.shape),
            full(*w3.shape), full(*b3f.shape),
        ],
        out_specs=(pl.BlockSpec((1, 1, NCp), lambda i: (i, 0, 0)),
                   pl.BlockSpec((1, 1, HRp), lambda i: (i, 0, 0))),
        compiler_params=pltpu.CompilerParams(
            dimension_semantics=("parallel",),
            vmem_limit_bytes=32 * 1024 * 1024),
    )(x_rows, t1, b1, p1r, p1c, t2, b2, p2r, p2c, w1, b1f, w2, b2f, w3, b3f)

    logits = logits_pad[:, 0, :NC]
    hidden = hidden_pad[:, 0, :HR]

    # kmeans is None at construction time, so cluster_loss == 0 in the reference.
    # TODO(synk): sklearn MiniBatchKMeans.predict / scipy linear_sum_assignment
    # cluster-loss branches, the host-side self.stats logging buffer, and the
    # optional BatchNorm1d (opt.batch_norm=False assumed) have no Pallas
    # equivalent and are not implemented.
    cluster_loss = jnp.float32(0.0)
    return logits, cluster_loss, hidden


# ----------------------------------------------------------------------------
# Deterministic parameter init + pure-JAX reference for validation
# ----------------------------------------------------------------------------
def init_params(key, hidden_rep_dim):
    keys = jax.random.split(key, 10)

    def init(k, shape, fan_in):
        return (jax.random.normal(k, shape, jnp.float32) / np.sqrt(fan_in)).astype(jnp.float32)

    return {
        "conv1_w": init(keys[0], (6, 1, 5, 5), 1 * 25),
        "conv1_b": init(keys[1], (6,), 25),
        "conv2_w": init(keys[2], (10, 6, 5, 5), 6 * 25),
        "conv2_b": init(keys[3], (10,), 150),
        "fc1_w": init(keys[4], (120, 160), 160),
        "fc1_b": init(keys[5], (120,), 160),
        "fc2_w": init(keys[6], (hidden_rep_dim, 120), 120),
        "fc2_b": init(keys[7], (hidden_rep_dim,), 120),
        "fc3_w": init(keys[8], (10, hidden_rep_dim), hidden_rep_dim),
        "fc3_b": init(keys[9], (10,), hidden_rep_dim),
    }


def reference_forward(x_nchw, params):
    def conv(x, w, b):
        y = jax.lax.conv_general_dilated(
            x, w, window_strides=(1, 1), padding="VALID",
            dimension_numbers=("NCHW", "OIHW", "NCHW"))
        return y + b[None, :, None, None]

    def pool(x):
        return jax.lax.reduce_window(x, -jnp.inf, jax.lax.max,
                                     (1, 1, 2, 2), (1, 1, 2, 2), "VALID")

    y = pool(jax.nn.relu(conv(x_nchw, params["conv1_w"], params["conv1_b"])))
    y = pool(jax.nn.relu(conv(y, params["conv2_w"], params["conv2_b"])))
    y = y.reshape(y.shape[0], -1)
    y = jax.nn.relu(y @ params["fc1_w"].T + params["fc1_b"])
    hidden = y @ params["fc2_w"].T + params["fc2_b"]
    logits = jax.nn.relu(hidden) @ params["fc3_w"].T + params["fc3_b"]
    return logits, hidden


if __name__ == "__main__":
    HIDDEN_REP_DIM = 32
    key = jax.random.PRNGKey(0)
    k_x, k_p = jax.random.split(key)

    x = jax.random.normal(k_x, (2, 1, 28, 28), jnp.float32)  # MNIST-style NCHW
    params = init_params(k_p, HIDDEN_REP_DIM)

    logits, cluster_loss, hidden = clusternet_forward(x, params)
    jax.block_until_ready((logits, cluster_loss, hidden))

    ref_logits, ref_hidden = reference_forward(x, params)
    np.testing.assert_allclose(np.asarray(logits), np.asarray(ref_logits),
                               rtol=2e-3, atol=2e-3)
    np.testing.assert_allclose(np.asarray(hidden), np.asarray(ref_hidden),
                               rtol=2e-3, atol=2e-3)
    assert float(cluster_loss) == 0.0
    assert logits.shape == (2, 10) and hidden.shape == (2, HIDDEN_REP_DIM)

    print("KERNEL_OK")
</pallas_src>

<mosaic_0001>
module attributes {stable_mosaic.version = 11 : i64} {
  func.func @kernel(%arg0: i32, %arg1: memref<1x28x28xf32, #tpu.memory_space<vmem>>, %arg2: memref<5x28x144xf32, #tpu.memory_space<vmem>>, %arg3: memref<1x144xf32, #tpu.memory_space<vmem>>, %arg4: memref<2x12x24xf32, #tpu.memory_space<vmem>>, %arg5: memref<2x144x72xf32, #tpu.memory_space<vmem>>, %arg6: memref<5x72x80xf32, #tpu.memory_space<vmem>>, %arg7: memref<1x80xf32, #tpu.memory_space<vmem>>, %arg8: memref<2x4x8xf32, #tpu.memory_space<vmem>>, %arg9: memref<2x80x40xf32, #tpu.memory_space<vmem>>, %arg10: memref<4x40x128xf32, #tpu.memory_space<vmem>>, %arg11: memref<1x128xf32, #tpu.memory_space<vmem>>, %arg12: memref<128x128xf32, #tpu.memory_space<vmem>>, %arg13: memref<1x128xf32, #tpu.memory_space<vmem>>, %arg14: memref<128x128xf32, #tpu.memory_space<vmem>>, %arg15: memref<1x128xf32, #tpu.memory_space<vmem>>, %arg16: memref<1x1x128xf32, #tpu.memory_space<vmem>>, %arg17: memref<1x1x128xf32, #tpu.memory_space<vmem>>) attributes {dimension_semantics = [#tpu.dimension_semantics<parallel>], iteration_bounds = array<i64: 2>, scalar_prefetch = 0 : i64, scratch_operands = 0 : i64, tpu.core_type = #tpu.core_type<tc>, window_params = [{transform_indices = @transform_0, window_bounds = array<i64: 1, 28, 28>}, {pipeline_mode = #tpu.pipeline_mode<synchronous>, transform_indices = @transform_1, window_bounds = array<i64: 5, 28, 144>}, {pipeline_mode = #tpu.pipeline_mode<synchronous>, transform_indices = @transform_2, window_bounds = array<i64: 1, 144>}, {pipeline_mode = #tpu.pipeline_mode<synchronous>, transform_indices = @transform_3, window_bounds = array<i64: 2, 12, 24>}, {pipeline_mode = #tpu.pipeline_mode<synchronous>, transform_indices = @transform_4, window_bounds = array<i64: 2, 144, 72>}, {pipeline_mode = #tpu.pipeline_mode<synchronous>, transform_indices = @transform_5, window_bounds = array<i64: 5, 72, 80>}, {pipeline_mode = #tpu.pipeline_mode<synchronous>, transform_indices = @transform_6, window_bounds = array<i64: 1, 80>}, {pipeline_mode = #tpu.pipeline_mode<synchronous>, transform_indices = @transform_7, window_bounds = array<i64: 2, 4, 8>}, {pipeline_mode = #tpu.pipeline_mode<synchronous>, transform_indices = @transform_8, window_bounds = array<i64: 2, 80, 40>}, {pipeline_mode = #tpu.pipeline_mode<synchronous>, transform_indices = @transform_9, window_bounds = array<i64: 4, 40, 128>}, {pipeline_mode = #tpu.pipeline_mode<synchronous>, transform_indices = @transform_10, window_bounds = array<i64: 1, 128>}, {pipeline_mode = #tpu.pipeline_mode<synchronous>, transform_indices = @transform_11, window_bounds = array<i64: 128, 128>}, {pipeline_mode = #tpu.pipeline_mode<synchronous>, transform_indices = @transform_12, window_bounds = array<i64: 1, 128>}, {pipeline_mode = #tpu.pipeline_mode<synchronous>, transform_indices = @transform_13, window_bounds = array<i64: 128, 128>}, {pipeline_mode = #tpu.pipeline_mode<synchronous>, transform_indices = @transform_14, window_bounds = array<i64: 1, 128>}, {transform_indices = @transform_15, window_bounds = array<i64: 1, 1, 128>}, {transform_indices = @transform_16, window_bounds = array<i64: 1, 1, 128>}]} {
    %c0 = arith.constant 0 : index
    %c0_0 = arith.constant 0 : index
    %c0_1 = arith.constant 0 : index
    %0 = vector.load %arg1[%c0, %c0_0, %c0_1] : memref<1x28x28xf32, #tpu.memory_space<vmem>>, vector<1x28x28xf32>
    %1 = vector.shape_cast %0 : vector<1x28x28xf32> to vector<28x28xf32>
    %2 = vector.extract_strided_slice %1 {offsets = [0, 0], sizes = [24, 28], strides = [1, 1]} : vector<28x28xf32> to vector<24x28xf32>
    %c0_2 = arith.constant 0 : index
    %c0_3 = arith.constant 0 : index
    %c0_4 = arith.constant 0 : index
    %3 = vector.load %arg2[%c0_2, %c0_3, %c0_4] : memref<5x28x144xf32, #tpu.memory_space<vmem>>, vector<1x28x144xf32>
    %4 = vector.shape_cast %3 : vector<1x28x144xf32> to vector<28x144xf32>
    %cst = arith.constant dense<0.000000e+00> : vector<24x144xf32>
    %5 = tpu.matmul %2, %4, %cst {dimension_numbers = #tpu.dot_dimension_numbers<[1], [0], [0], [1], [0, 0, 1, 1], [], []>} : vector<24x28xf32>, vector<28x144xf32>, vector<24x144xf32> -> vector<24x144xf32>
    %6 = vector.extract_strided_slice %1 {offsets = [1, 0], sizes = [24, 28], strides = [1, 1]} : vector<28x28xf32> to vector<24x28xf32>
    %c1 = arith.constant 1 : index
    %c0_5 = arith.constant 0 : index
    %c0_6 = arith.constant 0 : index
    %7 = vector.load %arg2[%c1, %c0_5, %c0_6] : memref<5x28x144xf32, #tpu.memory_space<vmem>>, vector<1x28x144xf32>
    %8 = vector.shape_cast %7 : vector<1x28x144xf32> to vector<28x144xf32>
    %cst_7 = arith.constant dense<0.000000e+00> : vector<24x144xf32>
    %9 = tpu.matmul %6, %8, %cst_7 {dimension_numbers = #tpu.dot_dimension_numbers<[1], [0], [0], [1], [0, 0, 1, 1], [], []>} : vector<24x28xf32>, vector<28x144xf32>, vector<24x144xf32> -> vector<24x144xf32>
    %10 = arith.addf %5, %9 : vector<24x144xf32>
    %11 = vector.extract_strided_slice %1 {offsets = [2, 0], sizes = [24, 28], strides = [1, 1]} : vector<28x28xf32> to vector<24x28xf32>
    %c2 = arith.constant 2 : index
    %c0_8 = arith.constant 0 : index
    %c0_9 = arith.constant 0 : index
    %12 = vector.load %arg2[%c2, %c0_8, %c0_9] : memref<5x28x144xf32, #tpu.memory_space<vmem>>, vector<1x28x144xf32>
    %13 = vector.shape_cast %12 : vector<1x28x144xf32> to vector<28x144xf32>
    %cst_10 = arith.constant dense<0.000000e+00> : vector<24x144xf32>
    %14 = tpu.matmul %11, %13, %cst_10 {dimension_numbers = #tpu.dot_dimension_numbers<[1], [0], [0], [1], [0, 0, 1, 1], [], []>} : vector<24x28xf32>, vector<28x144xf32>, vector<24x144xf32> -> vector<24x144xf32>
    %15 = arith.addf %10, %14 : vector<24x144xf32>
    %16 = vector.extract_strided_slice %1 {offsets = [3, 0], sizes = [24, 28], strides = [1, 1]} : vector<28x28xf32> to vector<24x28xf32>
    %c3 = arith.constant 3 : index
    %c0_11 = arith.constant 0 : index
    %c0_12 = arith.constant 0 : index
    %17 = vector.load %arg2[%c3, %c0_11, %c0_12] : memref<5x28x144xf32, #tpu.memory_space<vmem>>, vector<1x28x144xf32>
    %18 = vector.shape_cast %17 : vector<1x28x144xf32> to vector<28x144xf32>
    %cst_13 = arith.constant dense<0.000000e+00> : vector<24x144xf32>
    %19 = tpu.matmul %16, %18, %cst_13 {dimension_numbers = #tpu.dot_dimension_numbers<[1], [0], [0], [1], [0, 0, 1, 1], [], []>} : vector<24x28xf32>, vector<28x144xf32>, vector<24x144xf32> -> vector<24x144xf32>
    %20 = arith.addf %15, %19 : vector<24x144xf32>
    %21 = vector.extract_strided_slice %1 {offsets = [4, 0], sizes = [24, 28], strides = [1, 1]} : vector<28x28xf32> to vector<24x28xf32>
    %c4 = arith.constant 4 : index
    %c0_14 = arith.constant 0 : index
    %c0_15 = arith.constant 0 : index
    %22 = vector.load %arg2[%c4, %c0_14, %c0_15] : memref<5x28x144xf32, #tpu.memory_space<vmem>>, vector<1x28x144xf32>
    %23 = vector.shape_cast %22 : vector<1x28x144xf32> to vector<28x144xf32>
    %cst_16 = arith.constant dense<0.000000e+00> : vector<24x144xf32>
    %24 = tpu.matmul %21, %23, %cst_16 {dimension_numbers = #tpu.dot_dimension_numbers<[1], [0], [0], [1], [0, 0, 1, 1], [], []>} : vector<24x28xf32>, vector<28x144xf32>, vector<24x144xf32> -> vector<24x144xf32>
    %25 = arith.addf %20, %24 : vector<24x144xf32>
    %c0_17 = arith.constant 0 : index
    %c0_18 = arith.constant 0 : index
    %26 = vector.load %arg3[%c0_17, %c0_18] : memref<1x144xf32, #tpu.memory_space<vmem>>, vector<1x144xf32>
    %27 = vector.broadcast %26 : vector<1x144xf32> to vector<24x144xf32>
    %28 = arith.addf %25, %27 : vector<24x144xf32>
    %cst_19 = arith.constant 0.000000e+00 : f32
    %29 = vector.broadcast %cst_19 : f32 to vector<24x144xf32>
    %30 = arith.maximumf %28, %29 : vector<24x144xf32>
    %c0_20 = arith.constant 0 : index
    %c0_21 = arith.constant 0 : index
    %c0_22 = arith.constant 0 : index
    %31 = vector.load %arg4[%c0_20, %c0_21, %c0_22] : memref<2x12x24xf32, #tpu.memory_space<vmem>>, vector<1x12x24xf32>
    %32 = vector.shape_cast %31 : vector<1x12x24xf32> to vector<12x24xf32>
    %cst_23 = arith.constant dense<0.000000e+00> : vector<12x144xf32>
    %33 = tpu.matmul %32, %30, %cst_23 {dimension_numbers = #tpu.dot_dimension_numbers<[1], [0], [0], [1], [0, 0, 1, 1], [], []>} : vector<12x24xf32>, vector<24x144xf32>, vector<12x144xf32> -> vector<12x144xf32>
    %c1_24 = arith.constant 1 : index
    %c0_25 = arith.constant 0 : index
    %c0_26 = arith.constant 0 : index
    %34 = vector.load %arg4[%c1_24, %c0_25, %c0_26] : memref<2x12x24xf32, #tpu.memory_space<vmem>>, vector<1x12x24xf32>
    %35 = vector.shape_cast %34 : vector<1x12x24xf32> to vector<12x24xf32>
    %cst_27 = arith.constant dense<0.000000e+00> : vector<12x144xf32>
    %36 = tpu.matmul %35, %30, %cst_27 {dimension_numbers = #tpu.dot_dimension_numbers<[1], [0], [0], [1], [0, 0, 1, 1], [], []>} : vector<12x24xf32>, vector<24x144xf32>, vector<12x144xf32> -> vector<12x144xf32>
    %37 = arith.maximumf %33, %36 : vector<12x144xf32>
    %c0_28 = arith.constant 0 : index
    %c0_29 = arith.constant 0 : index
    %c0_30 = arith.constant 0 : index
    %38 = vector.load %arg5[%c0_28, %c0_29, %c0_30] : memref<2x144x72xf32, #tpu.memory_space<vmem>>, vector<1x144x72xf32>
    %39 = vector.shape_cast %38 : vector<1x144x72xf32> to vector<144x72xf32>
    %cst_31 = arith.constant dense<0.000000e+00> : vector<12x72xf32>
    %40 = tpu.matmul %37, %39, %cst_31 {dimension_numbers = #tpu.dot_dimension_numbers<[1], [0], [0], [1], [0, 0, 1, 1], [], []>} : vector<12x144xf32>, vector<144x72xf32>, vector<12x72xf32> -> vector<12x72xf32>
    %c1_32 = arith.constant 1 : index
    %c0_33 = arith.constant 0 : index
    %c0_34 = arith.constant 0 : index
    %41 = vector.load %arg5[%c1_32, %c0_33, %c0_34] : memref<2x144x72xf32, #tpu.memory_space<vmem>>, vector<1x144x72xf32>
    %42 = vector.shape_cast %41 : vector<1x144x72xf32> to vector<144x72xf32>
    %cst_35 = arith.constant dense<0.000000e+00> : vector<12x72xf32>
    %43 = tpu.matmul %37, %42, %cst_35 {dimension_numbers = #tpu.dot_dimension_numbers<[1], [0], [0], [1], [0, 0, 1, 1], [], []>} : vector<12x144xf32>, vector<144x72xf32>, vector<12x72xf32> -> vector<12x72xf32>
    %44 = arith.maximumf %40, %43 : vector<12x72xf32>
    %45 = vector.extract_strided_slice %44 {offsets = [0, 0], sizes = [8, 72], strides = [1, 1]} : vector<12x72xf32> to vector<8x72xf32>
    %c0_36 = arith.constant 0 : index
    %c0_37 = arith.constant 0 : index
    %c0_38 = arith.constant 0 : index
    %46 = vector.load %arg6[%c0_36, %c0_37, %c0_38] : memref<5x72x80xf32, #tpu.memory_space<vmem>>, vector<1x72x80xf32>
    %47 = vector.shape_cast %46 : vector<1x72x80xf32> to vector<72x80xf32>
    %cst_39 = arith.constant dense<0.000000e+00> : vector<8x80xf32>
    %48 = tpu.matmul %45, %47, %cst_39 {dimension_numbers = #tpu.dot_dimension_numbers<[1], [0], [0], [1], [0, 0, 1, 1], [], []>} : vector<8x72xf32>, vector<72x80xf32>, vector<8x80xf32> -> vector<8x80xf32>
    %49 = vector.extract_strided_slice %44 {offsets = [1, 0], sizes = [8, 72], strides = [1, 1]} : vector<12x72xf32> to vector<8x72xf32>
    %c1_40 = arith.constant 1 : index
    %c0_41 = arith.constant 0 : index
    %c0_42 = arith.constant 0 : index
    %50 = vector.load %arg6[%c1_40, %c0_41, %c0_42] : memref<5x72x80xf32, #tpu.memory_space<vmem>>, vector<1x72x80xf32>
    %51 = vector.shape_cast %50 : vector<1x72x80xf32> to vector<72x80xf32>
    %cst_43 = arith.constant dense<0.000000e+00> : vector<8x80xf32>
    %52 = tpu.matmul %49, %51, %cst_43 {dimension_numbers = #tpu.dot_dimension_numbers<[1], [0], [0], [1], [0, 0, 1, 1], [], []>} : vector<8x72xf32>, vector<72x80xf32>, vector<8x80xf32> -> vector<8x80xf32>
    %53 = arith.addf %48, %52 : vector<8x80xf32>
    %54 = vector.extract_strided_slice %44 {offsets = [2, 0], sizes = [8, 72], strides = [1, 1]} : vector<12x72xf32> to vector<8x72xf32>
    %c2_44 = arith.constant 2 : index
    %c0_45 = arith.constant 0 : index
    %c0_46 = arith.constant 0 : index
    %55 = vector.load %arg6[%c2_44, %c0_45, %c0_46] : memref<5x72x80xf32, #tpu.memory_space<vmem>>, vector<1x72x80xf32>
    %56 = vector.shape_cast %55 : vector<1x72x80xf32> to vector<72x80xf32>
    %cst_47 = arith.constant dense<0.000000e+00> : vector<8x80xf32>
    %57 = tpu.matmul %54, %56, %cst_47 {dimension_numbers = #tpu.dot_dimension_numbers<[1], [0], [0], [1], [0, 0, 1, 1], [], []>} : vector<8x72xf32>, vector<72x80xf32>, vector<8x80xf32> -> vector<8x80xf32>
    %58 = arith.addf %53, %57 : vector<8x80xf32>
    %59 = vector.extract_strided_slice %44 {offsets = [3, 0], sizes = [8, 72], strides = [1, 1]} : vector<12x72xf32> to vector<8x72xf32>
    %c3_48 = arith.constant 3 : index
    %c0_49 = arith.constant 0 : index
    %c0_50 = arith.constant 0 : index
    %60 = vector.load %arg6[%c3_48, %c0_49, %c0_50] : memref<5x72x80xf32, #tpu.memory_space<vmem>>, vector<1x72x80xf32>
    %61 = vector.shape_cast %60 : vector<1x72x80xf32> to vector<72x80xf32>
    %cst_51 = arith.constant dense<0.000000e+00> : vector<8x80xf32>
    %62 = tpu.matmul %59, %61, %cst_51 {dimension_numbers = #tpu.dot_dimension_numbers<[1], [0], [0], [1], [0, 0, 1, 1], [], []>} : vector<8x72xf32>, vector<72x80xf32>, vector<8x80xf32> -> vector<8x80xf32>
    %63 = arith.addf %58, %62 : vector<8x80xf32>
    %64 = vector.extract_strided_slice %44 {offsets = [4, 0], sizes = [8, 72], strides = [1, 1]} : vector<12x72xf32> to vector<8x72xf32>
    %c4_52 = arith.constant 4 : index
    %c0_53 = arith.constant 0 : index
    %c0_54 = arith.constant 0 : index
    %65 = vector.load %arg6[%c4_52, %c0_53, %c0_54] : memref<5x72x80xf32, #tpu.memory_space<vmem>>, vector<1x72x80xf32>
    %66 = vector.shape_cast %65 : vector<1x72x80xf32> to vector<72x80xf32>
    %cst_55 = arith.constant dense<0.000000e+00> : vector<8x80xf32>
    %67 = tpu.matmul %64, %66, %cst_55 {dimension_numbers = #tpu.dot_dimension_numbers<[1], [0], [0], [1], [0, 0, 1, 1], [], []>} : vector<8x72xf32>, vector<72x80xf32>, vector<8x80xf32> -> vector<8x80xf32>
    %68 = arith.addf %63, %67 : vector<8x80xf32>
    %c0_56 = arith.constant 0 : index
    %c0_57 = arith.constant 0 : index
    %69 = vector.load %arg7[%c0_56, %c0_57] : memref<1x80xf32, #tpu.memory_space<vmem>>, vector<1x80xf32>
    %70 = vector.broadcast %69 : vector<1x80xf32> to vector<8x80xf32>
    %71 = arith.addf %68, %70 : vector<8x80xf32>
    %cst_58 = arith.constant 0.000000e+00 : f32
    %72 = vector.broadcast %cst_58 : f32 to vector<8x80xf32>
    %73 = arith.maximumf %71, %72 : vector<8x80xf32>
    %c0_59 = arith.constant 0 : index
    %c0_60 = arith.constant 0 : index
    %c0_61 = arith.constant 0 : index
    %74 = vector.load %arg8[%c0_59, %c0_60, %c0_61] : memref<2x4x8xf32, #tpu.memory_space<vmem>>, vector<1x4x8xf32>
    %75 = vector.shape_cast %74 : vector<1x4x8xf32> to vector<4x8xf32>
    %cst_62 = arith.constant dense<0.000000e+00> : vector<4x80xf32>
    %76 = tpu.matmul %75, %73, %cst_62 {dimension_numbers = #tpu.dot_dimension_numbers<[1], [0], [0], [1], [0, 0, 1, 1], [], []>} : vector<4x8xf32>, vector<8x80xf32>, vector<4x80xf32> -> vector<4x80xf32>
    %c1_63 = arith.constant 1 : index
    %c0_64 = arith.constant 0 : index
    %c0_65 = arith.constant 0 : index
    %77 = vector.load %arg8[%c1_63, %c0_64, %c0_65] : memref<2x4x8xf32, #tpu.memory_space<vmem>>, vector<1x4x8xf32>
    %78 = vector.shape_cast %77 : vector<1x4x8xf32> to vector<4x8xf32>
    %cst_66 = arith.constant dense<0.000000e+00> : vector<4x80xf32>
    %79 = tpu.matmul %78, %73, %cst_66 {dimension_numbers = #tpu.dot_dimension_numbers<[1], [0], [0], [1], [0, 0, 1, 1], [], []>} : vector<4x8xf32>, vector<8x80xf32>, vector<4x80xf32> -> vector<4x80xf32>
    %80 = arith.maximumf %76, %79 : vector<4x80xf32>
    %c0_67 = arith.constant 0 : index
    %c0_68 = arith.constant 0 : index
    %c0_69 = arith.constant 0 : index
    %81 = vector.load %arg9[%c0_67, %c0_68, %c0_69] : memref<2x80x40xf32, #tpu.memory_space<vmem>>, vector<1x80x40xf32>
    %82 = vector.shape_cast %81 : vector<1x80x40xf32> to vector<80x40xf32>
    %cst_70 = arith.constant dense<0.000000e+00> : vector<4x40xf32>
    %83 = tpu.matmul %80, %82, %cst_70 {dimension_numbers = #tpu.dot_dimension_numbers<[1], [0], [0], [1], [0, 0, 1, 1], [], []>} : vector<4x80xf32>, vector<80x40xf32>, vector<4x40xf32> -> vector<4x40xf32>
    %c1_71 = arith.constant 1 : index
    %c0_72 = arith.constant 0 : index
    %c0_73 = arith.constant 0 : index
    %84 = vector.load %arg9[%c1_71, %c0_72, %c0_73] : memref<2x80x40xf32, #tpu.memory_space<vmem>>, vector<1x80x40xf32>
    %85 = vector.shape_cast %84 : vector<1x80x40xf32> to vector<80x40xf32>
    %cst_74 = arith.constant dense<0.000000e+00> : vector<4x40xf32>
    %86 = tpu.matmul %80, %85, %cst_74 {dimension_numbers = #tpu.dot_dimension_numbers<[1], [0], [0], [1], [0, 0, 1, 1], [], []>} : vector<4x80xf32>, vector<80x40xf32>, vector<4x40xf32> -> vector<4x40xf32>
    %87 = arith.maximumf %83, %86 : vector<4x40xf32>
    %c0_75 = arith.constant 0 : index
    %c0_76 = arith.constant 0 : index
    %88 = vector.load %arg11[%c0_75, %c0_76] : memref<1x128xf32, #tpu.memory_space<vmem>>, vector<1x128xf32>
    %89 = vector.extract_strided_slice %87 {offsets = [0, 0], sizes = [1, 40], strides = [1, 1]} : vector<4x40xf32> to vector<1x40xf32>
    %c0_77 = arith.constant 0 : index
    %c0_78 = arith.constant 0 : index
    %c0_79 = arith.constant 0 : index
    %90 = vector.load %arg10[%c0_77, %c0_78, %c0_79] : memref<4x40x128xf32, #tpu.memory_space<vmem>>, vector<1x40x128xf32>
    %91 = vector.shape_cast %90 : vector<1x40x128xf32> to vector<40x128xf32>
    %cst_80 = arith.constant dense<0.000000e+00> : vector<1x128xf32>
    %92 = tpu.matmul %89, %91, %cst_80 {dimension_numbers = #tpu.dot_dimension_numbers<[1], [0], [0], [1], [0, 0, 1, 1], [], []>} : vector<1x40xf32>, vector<40x128xf32>, vector<1x128xf32> -> vector<1x128xf32>
    %93 = arith.addf %88, %92 : vector<1x128xf32>
    %94 = vector.extract_strided_slice %87 {offsets = [1, 0], sizes = [1, 40], strides = [1, 1]} : vector<4x40xf32> to vector<1x40xf32>
    %c1_81 = arith.constant 1 : index
    %c0_82 = arith.constant 0 : index
    %c0_83 = arith.constant 0 : index
    %95 = vector.load %arg10[%c1_81, %c0_82, %c0_83] : memref<4x40x128xf32, #tpu.memory_space<vmem>>, vector<1x40x128xf32>
    %96 = vector.shape_cast %95 : vector<1x40x128xf32> to vector<40x128xf32>
    %cst_84 = arith.constant dense<0.000000e+00> : vector<1x128xf32>
    %97 = tpu.matmul %94, %96, %cst_84 {dimension_numbers = #tpu.dot_dimension_numbers<[1], [0], [0], [1], [0, 0, 1, 1], [], []>} : vector<1x40xf32>, vector<40x128xf32>, vector<1x128xf32> -> vector<1x128xf32>
    %98 = arith.addf %93, %97 : vector<1x128xf32>
    %99 = vector.extract_strided_slice %87 {offsets = [2, 0], sizes = [1, 40], strides = [1, 1]} : vector<4x40xf32> to vector<1x40xf32>
    %c2_85 = arith.constant 2 : index
    %c0_86 = arith.constant 0 : index
    %c0_87 = arith.constant 0 : index
    %100 = vector.load %arg10[%c2_85, %c0_86, %c0_87] : memref<4x40x128xf32, #tpu.memory_space<vmem>>, vector<1x40x128xf32>
    %101 = vector.shape_cast %100 : vector<1x40x128xf32> to vector<40x128xf32>
    %cst_88 = arith.constant dense<0.000000e+00> : vector<1x128xf32>
    %102 = tpu.matmul %99, %101, %cst_88 {dimension_numbers = #tpu.dot_dimension_numbers<[1], [0], [0], [1], [0, 0, 1, 1], [], []>} : vector<1x40xf32>, vector<40x128xf32>, vector<1x128xf32> -> vector<1x128xf32>
    %103 = arith.addf %98, %102 : vector<1x128xf32>
    %104 = vector.extract_strided_slice %87 {offsets = [3, 0], sizes = [1, 40], strides = [1, 1]} : vector<4x40xf32> to vector<1x40xf32>
    %c3_89 = arith.constant 3 : index
    %c0_90 = arith.constant 0 : index
    %c0_91 = arith.constant 0 : index
    %105 = vector.load %arg10[%c3_89, %c0_90, %c0_91] : memref<4x40x128xf32, #tpu.memory_space<vmem>>, vector<1x40x128xf32>
    %106 = vector.shape_cast %105 : vector<1x40x128xf32> to vector<40x128xf32>
    %cst_92 = arith.constant dense<0.000000e+00> : vector<1x128xf32>
    %107 = tpu.matmul %104, %106, %cst_92 {dimension_numbers = #tpu.dot_dimension_numbers<[1], [0], [0], [1], [0, 0, 1, 1], [], []>} : vector<1x40xf32>, vector<40x128xf32>, vector<1x128xf32> -> vector<1x128xf32>
    %108 = arith.addf %103, %107 : vector<1x128xf32>
    %cst_93 = arith.constant 0.000000e+00 : f32
    %109 = vector.broadcast %cst_93 : f32 to vector<1x128xf32>
    %110 = arith.maximumf %108, %109 : vector<1x128xf32>
    %c0_94 = arith.constant 0 : index
    %c0_95 = arith.constant 0 : index
    %111 = vector.load %arg12[%c0_94, %c0_95] : memref<128x128xf32, #tpu.memory_space<vmem>>, vector<128x128xf32>
    %cst_96 = arith.constant dense<0.000000e+00> : vector<1x128xf32>
    %112 = tpu.matmul %110, %111, %cst_96 {dimension_numbers = #tpu.dot_dimension_numbers<[1], [0], [0], [1], [0, 0, 1, 1], [], []>} : vector<1x128xf32>, vector<128x128xf32>, vector<1x128xf32> -> vector<1x128xf32>
    %c0_97 = arith.constant 0 : index
    %c0_98 = arith.constant 0 : index
    %113 = vector.load %arg13[%c0_97, %c0_98] : memref<1x128xf32, #tpu.memory_space<vmem>>, vector<1x128xf32>
    %114 = arith.addf %112, %113 : vector<1x128xf32>
    %c0_99 = arith.constant 0 : index
    %c0_100 = arith.constant 0 : index
    %c0_101 = arith.constant 0 : index
    %115 = vector.load %arg17[%c0_99, %c0_100, %c0_101] : memref<1x1x128xf32, #tpu.memory_space<vmem>>, vector<1x1x128xf32>
    %116 = vector.shape_cast %115 : vector<1x1x128xf32> to vector<1x128xf32>
    %117 = vector.shape_cast %114 : vector<1x128xf32> to vector<1x1x128xf32>
    tpu.vector_store %arg17[%c0_99, %c0_100, %c0_101], %117 {strides = array<i32>} : memref<1x1x128xf32, #tpu.memory_space<vmem>>, vector<1x1x128xf32>,
    %cst_102 = arith.constant 0.000000e+00 : f32
    %118 = vector.broadcast %cst_102 : f32 to vector<1x128xf32>
    %119 = arith.maximumf %114, %118 : vector<1x128xf32>
    %c0_103 = arith.constant 0 : index
    %c0_104 = arith.constant 0 : index
    %120 = vector.load %arg14[%c0_103, %c0_104] : memref<128x128xf32, #tpu.memory_space<vmem>>, vector<128x128xf32>
    %cst_105 = arith.constant dense<0.000000e+00> : vector<1x128xf32>
    %121 = tpu.matmul %119, %120, %cst_105 {dimension_numbers = #tpu.dot_dimension_numbers<[1], [0], [0], [1], [0, 0, 1, 1], [], []>} : vector<1x128xf32>, vector<128x128xf32>, vector<1x128xf32> -> vector<1x128xf32>
    %c0_106 = arith.constant 0 : index
    %c0_107 = arith.constant 0 : index
    %122 = vector.load %arg15[%c0_106, %c0_107] : memref<1x128xf32, #tpu.memory_space<vmem>>, vector<1x128xf32>
    %123 = arith.addf %121, %122 : vector<1x128xf32>
    %c0_108 = arith.constant 0 : index
    %c0_109 = arith.constant 0 : index
    %c0_110 = arith.constant 0 : index
    %124 = vector.load %arg16[%c0_108, %c0_109, %c0_110] : memref<1x1x128xf32, #tpu.memory_space<vmem>>, vector<1x1x128xf32>
    %125 = vector.shape_cast %124 : vector<1x1x128xf32> to vector<1x128xf32>
    %126 = vector.shape_cast %123 : vector<1x128xf32> to vector<1x1x128xf32>
    tpu.vector_store %arg16[%c0_108, %c0_109, %c0_110], %126 {strides = array<i32>} : memref<1x1x128xf32, #tpu.memory_space<vmem>>, vector<1x1x128xf32>,
    return
  }
  func.func @transform_0(%arg0: i32) -> (i32, i32, i32) {
    %c0_i32 = arith.constant 0 : i32
    %c0_i32_0 = arith.constant 0 : i32
    %c0_i32_1 = arith.constant 0 : i32
    return %arg0, %c0_i32, %c0_i32_0 : i32, i32, i32
  }
  func.func @transform_1(%arg0: i32) -> (i32, i32, i32) {
    %c0_i32 = arith.constant 0 : i32
    %c0_i32_0 = arith.constant 0 : i32
    %c0_i32_1 = arith.constant 0 : i32
    %c0_i32_2 = arith.constant 0 : i32
    return %c0_i32, %c0_i32_0, %c0_i32_1 : i32, i32, i32
  }
  func.func @transform_2(%arg0: i32) -> (i32, i32) {
    %c0_i32 = arith.constant 0 : i32
    %c0_i32_0 = arith.constant 0 : i32
    %c0_i32_1 = arith.constant 0 : i32
    return %c0_i32, %c0_i32_0 : i32, i32
  }
  func.func @transform_3(%arg0: i32) -> (i32, i32, i32) {
    %c0_i32 = arith.constant 0 : i32
    %c0_i32_0 = arith.constant 0 : i32
    %c0_i32_1 = arith.constant 0 : i32
    %c0_i32_2 = arith.constant 0 : i32
    return %c0_i32, %c0_i32_0, %c0_i32_1 : i32, i32, i32
  }
  func.func @transform_4(%arg0: i32) -> (i32, i32, i32) {
    %c0_i32 = arith.constant 0 : i32
    %c0_i32_0 = arith.constant 0 : i32
    %c0_i32_1 = arith.constant 0 : i32
    %c0_i32_2 = arith.constant 0 : i32
    return %c0_i32, %c0_i32_0, %c0_i32_1 : i32, i32, i32
  }
  func.func @transform_5(%arg0: i32) -> (i32, i32, i32) {
    %c0_i32 = arith.constant 0 : i32
    %c0_i32_0 = arith.constant 0 : i32
    %c0_i32_1 = arith.constant 0 : i32
    %c0_i32_2 = arith.constant 0 : i32
    return %c0_i32, %c0_i32_0, %c0_i32_1 : i32, i32, i32
  }
  func.func @transform_6(%arg0: i32) -> (i32, i32) {
    %c0_i32 = arith.constant 0 : i32
    %c0_i32_0 = arith.constant 0 : i32
    %c0_i32_1 = arith.constant 0 : i32
    return %c0_i32, %c0_i32_0 : i32, i32
  }
  func.func @transform_7(%arg0: i32) -> (i32, i32, i32) {
    %c0_i32 = arith.constant 0 : i32
    %c0_i32_0 = arith.constant 0 : i32
    %c0_i32_1 = arith.constant 0 : i32
    %c0_i32_2 = arith.constant 0 : i32
    return %c0_i32, %c0_i32_0, %c0_i32_1 : i32, i32, i32
  }
  func.func @transform_8(%arg0: i32) -> (i32, i32, i32) {
    %c0_i32 = arith.constant 0 : i32
    %c0_i32_0 = arith.constant 0 : i32
    %c0_i32_1 = arith.constant 0 : i32
    %c0_i32_2 = arith.constant 0 : i32
    return %c0_i32, %c0_i32_0, %c0_i32_1 : i32, i32, i32
  }
  func.func @transform_9(%arg0: i32) -> (i32, i32, i32) {
    %c0_i32 = arith.constant 0 : i32
    %c0_i32_0 = arith.constant 0 : i32
    %c0_i32_1 = arith.constant 0 : i32
    %c0_i32_2 = arith.constant 0 : i32
    return %c0_i32, %c0_i32_0, %c0_i32_1 : i32, i32, i32
  }
  func.func @transform_10(%arg0: i32) -> (i32, i32) {
    %c0_i32 = arith.constant 0 : i32
    %c0_i32_0 = arith.constant 0 : i32
    %c0_i32_1 = arith.constant 0 : i32
    return %c0_i32, %c0_i32_0 : i32, i32
  }
  func.func @transform_11(%arg0: i32) -> (i32, i32) {
    %c0_i32 = arith.constant 0 : i32
    %c0_i32_0 = arith.constant 0 : i32
    %c0_i32_1 = arith.constant 0 : i32
    return %c0_i32, %c0_i32_0 : i32, i32
  }
  func.func @transform_12(%arg0: i32) -> (i32, i32) {
    %c0_i32 = arith.constant 0 : i32
    %c0_i32_0 = arith.constant 0 : i32
    %c0_i32_1 = arith.constant 0 : i32
    return %c0_i32, %c0_i32_0 : i32, i32
  }
  func.func @transform_13(%arg0: i32) -> (i32, i32) {
    %c0_i32 = arith.constant 0 : i32
    %c0_i32_0 = arith.constant 0 : i32
    %c0_i32_1 = arith.constant 0 : i32
    return %c0_i32, %c0_i32_0 : i32, i32
  }
  func.func @transform_14(%arg0: i32) -> (i32, i32) {
    %c0_i32 = arith.constant 0 : i32
    %c0_i32_0 = arith.constant 0 : i32
    %c0_i32_1 = arith.constant 0 : i32
    return %c0_i32, %c0_i32_0 : i32, i32
  }
  func.func @transform_15(%arg0: i32) -> (i32, i32, i32) {
    %c0_i32 = arith.constant 0 : i32
    %c0_i32_0 = arith.constant 0 : i32
    %c0_i32_1 = arith.constant 0 : i32
    return %arg0, %c0_i32, %c0_i32_0 : i32, i32, i32
  }
  func.func @transform_16(%arg0: i32) -> (i32, i32, i32) {
    %c0_i32 = arith.constant 0 : i32
    %c0_i32_0 = arith.constant 0 : i32
    %c0_i32_1 = arith.constant 0 : i32
    return %arg0, %c0_i32, %c0_i32_0 : i32, i32, i32
  }
}

</mosaic_0001>

<llo_original>
// kernel: tile.13
$region0: #{tile.13}
  #allocation0 [shape = 's32[1]{0}', space=sflag, size = 0x4, scoped, tag = 'scoped memory for tile.13']
  %s0 = inlined_call_operand.vmem [shape: f32[6], index: 0, kind: input, shape index: {}]
  %s1 = inlined_call_operand.vmem [shape: f32[24,6], index: 1, kind: output, shape index: {}]
  // Predicated region
  $region2: #{tile.13} parent=0 // pred_check
    _
  $region3: #{tile.13} parent=0 // pred_check_branch
    %3 = sbr.rel (0) target = $region5
  $region4: #{tile.13} parent=0 // pred_region
    _
  $region5: #{tile.13} parent=0 // pred_fallthru
    _
  %v4 = vld [vmem:[%s0] ss:$0 sm:$0xff]
  %5 = vst [vmem:[%s1] sm:$0xff] %v4
  %s6 = scalar_lea.vmem %s1, 8
  %7 = vst [vmem:[%s6] sm:$0xff] %v4
  %s8 = scalar_lea.vmem %s1, 16
  %9 = vst [vmem:[%s8] sm:$0xff] %v4

// kernel: tile.14
$region0: #{tile.14}
  %s0 = inlined_call_operand.vmem [shape: f32[24,6], index: 0, kind: input, shape index: {}]
  %s1 = inlined_call_operand.vmem [shape: f32[1,144], index: 1, kind: output, shape index: {}]
  $region1: #{tile.14} parent=0
    #allocation0 [shape = 'u8[8192]{0}', space=vmem, size = 0x2000, scoped, tag = 'scoped mem for output reshape']
    %v2 = vld [vmem:[%s0] sm:$0x1]
    %vm3 = vcmask 48128
    %4 = vst.msk [vmem:[#allocation0] sm:$0x1] %vm3, %v2
    %s5 = scalar_lea.vmem %s0, 21
    %v6 = vld [vmem:[%s5] sm:$0x1]
    %s7 = scalar_lea.vmem %s0, 21
    %v8 = vld [vmem:[%s7] sm:$0x1]
    %vm9 = vcmask 15360
    %v10 = vsel %vm9, %v8, %v6
    %11 = vrot.lane.b32.xlu0 %v10, 126
    %v12 = vpop.permute.xlu0 %11
    %vm13 = vcmask 31744
    %s14 = scalar_lea.vmem [#allocation0], 8
    %15 = vst.msk [vmem:[%s14] sm:$0x1] %vm13, %v12
    %vm16 = vcmask 1048560
    %17 = vst.msk [vmem:[#allocation0] sm:$0x1] %vm16, %v12
    %s18 = scalar_lea.vmem %s0, 20
    %v19 = vld [vmem:[%s18] sm:$0x1]
    %20 = vrot.lane.b32.xlu0 %v19, 120
    %v21 = vpop.permute.xlu0 %20
    %vm22 = vcmask 1032128
    %23 = vst.msk [vmem:[#allocation0] sm:$0x1] %vm22, %v21
    %s24 = scalar_lea.vmem %s0, 19
    %v25 = vld [vmem:[%s24] sm:$0x1]
    %26 = vrot.lane.b32.xlu0 %v25, 114
    %v27 = vpop.permute.xlu0 %26
    %vm28 = vcmask 982928
    %29 = vst.msk [vmem:[#allocation0] sm:$0x1] %vm28, %v27
    %s30 = scalar_lea.vmem %s0, 18
    %v31 = vld [vmem:[%s30] sm:$0x1]
    %32 = vrot.lane.b32.xlu0 %v31, 108
    %v33 = vpop.permute.xlu0 %32
    %vm34 = vcmask 933728
    %35 = vst.msk [vmem:[#allocation0] sm:$0x1] %vm34, %v33
    %s36 = scalar_lea.vmem %s0, 17
    %v37 = vld [vmem:[%s36] sm:$0x1]
    %38 = vrot.lane.b32.xlu0 %v37, 102
    %v39 = vpop.permute.xlu0 %38
    %vm40 = vcmask 884528
    %41 = vst.msk [vmem:[#allocation0] sm:$0x1] %vm40, %v39
    %s42 = scalar_lea.vmem %s0, 16
    %v43 = vld [vmem:[%s42] sm:$0x1]
    %44 = vrot.lane.b32.xlu0 %v43, 96
    %v45 = vpop.permute.xlu0 %44
    %vm46 = vcmask 835328
    %47 = vst.msk [vmem:[#allocation0] sm:$0x1] %vm46, %v45
    %s48 = scalar_lea.vmem %s0, 15
    %v49 = vld [vmem:[%s48] sm:$0x1]
    %50 = vrot.lane.b32.xlu0 %v49, 90
    %v51 = vpop.permute.xlu0 %50
    %vm52 = vcmask 786128
    %53 = vst.msk [vmem:[#allocation0] sm:$0x1] %vm52, %v51
    %s54 = scalar_lea.vmem %s0, 14
    %v55 = vld [vmem:[%s54] sm:$0x1]
    %56 = vrot.lane.b32.xlu0 %v55, 84
    %v57 = vpop.permute.xlu0 %56
    %vm58 = vcmask 736928
    %59 = vst.msk [vmem:[#allocation0] sm:$0x1] %vm58, %v57
    %s60 = scalar_lea.vmem %s0, 13
    %v61 = vld [vmem:[%s60] sm:$0x1]
    %62 = vrot.lane.b32.xlu0 %v61, 78
    %v63 = vpop.permute.xlu0 %62
    %vm64 = vcmask 687728
    %65 = vst.msk [vmem:[#allocation0] sm:$0x1] %vm64, %v63
    %s66 = scalar_lea.vmem %s0, 12
    %v67 = vld [vmem:[%s66] sm:$0x1]
    %68 = vrot.lane.b32.xlu0 %v67, 72
    %v69 = vpop.permute.xlu0 %68
    %vm70 = vcmask 638528
    %71 = vst.msk [vmem:[#allocation0] sm:$0x1] %vm70, %v69
    %s72 = scalar_lea.vmem %s0, 11
    %v73 = vld [vmem:[%s72] sm:$0x1]
    %74 = vrot.lane.b32.xlu0 %v73, 66
    %v75 = vpop.permute.xlu0 %74
    %vm76 = vcmask 589328
    %77 = vst.msk [vmem:[#allocation0] sm:$0x1] %vm76, %v75
    %s78 = scalar_lea.vmem %s0, 10
    %v79 = vld [vmem:[%s78] sm:$0x1]
    %80 = vrot.lane.b32.xlu0 %v79, 60
    %v81 = vpop.permute.xlu0 %80
    %vm82 = vcmask 540128
    %83 = vst.msk [vmem:[#allocation0] sm:$0x1] %vm82, %v81
    %s84 = scalar_lea.vmem %s0, 9
    %v85 = vld [vmem:[%s84] sm:$0x1]
    %86 = vrot.lane.b32.xlu0 %v85, 54
    %v87 = vpop.permute.xlu0 %86
    %vm88 = vcmask 490928
    %89 = vst.msk [vmem:[#allocation0] sm:$0x1] %vm88, %v87
    %s90 = scalar_lea.vmem %s0, 8
    %v91 = vld [vmem:[%s90] sm:$0x1]
    %92 = vrot.lane.b32.xlu0 %v91, 48
    %v93 = vpop.permute.xlu0 %92
    %vm94 = vcmask 441728
    %95 = vst.msk [vmem:[#allocation0] sm:$0x1] %vm94, %v93
    %s96 = scalar_lea.vmem %s0, 7
    %v97 = vld [vmem:[%s96] sm:$0x1]
    %98 = vrot.lane.b32.xlu0 %v97, 42
    %v99 = vpop.permute.xlu0 %98
    %vm100 = vcmask 392528
    %101 = vst.msk [vmem:[#allocation0] sm:$0x1] %vm100, %v99
    %s102 = scalar_lea.vmem %s0, 6
    %v103 = vld [vmem:[%s102] sm:$0x1]
    %104 = vrot.lane.b32.xlu0 %v103, 36
    %v105 = vpop.permute.xlu0 %104
    %vm106 = vcmask 343328
    %107 = vst.msk [vmem:[#allocation0] sm:$0x1] %vm106, %v105
    %s108 = scalar_lea.vmem %s0, 5
    %v109 = vld [vmem:[%s108] sm:$0x1]
    %110 = vrot.lane.b32.xlu0 %v109, 30
    %v111 = vpop.permute.xlu0 %110
    %vm112 = vcmask 294128
    %113 = vst.msk [vmem:[#allocation0] sm:$0x1] %vm112, %v111
    %s114 = scalar_lea.vmem %s0, 4
    %v115 = vld [vmem:[%s114] sm:$0x1]
    %116 = vrot.lane.b32.xlu0 %v115, 24
    %v117 = vpop.permute.xlu0 %116
    %vm118 = vcmask 244928
    %119 = vst.msk [vmem:[#allocation0] sm:$0x1] %vm118, %v117
    %s120 = scalar_lea.vmem %s0, 3
    %v121 = vld [vmem:[%s120] sm:$0x1]
    %122 = vrot.lane.b32.xlu0 %v121, 18
    %v123 = vpop.permute.xlu0 %122
    %vm124 = vcmask 195728
    %125 = vst.msk [vmem:[#allocation0] sm:$0x1] %vm124, %v123
    %s126 = scalar_lea.vmem %s0, 2
    %v127 = vld [vmem:[%s126] sm:$0x1]
    %128 = vrot.lane.b32.xlu0 %v127, 12
    %v129 = vpop.permute.xlu0 %128
    %vm130 = vcmask 146528
    %131 = vst.msk [vmem:[#allocation0] sm:$0x1] %vm130, %v129
    %s132 = scalar_lea.vmem %s0, 23
    %v133 = vld [vmem:[%s132] sm:$0x1]
    %134 = vrot.lane.b32.xlu0 %v133, 10
    %v135 = vpop.permute.xlu0 %134
    %vm136 = vcmask 130128
    %s137 = scalar_lea.vmem [#allocation0], 8
    %138 = vst.msk [vmem:[%s137] sm:$0x1] %vm136, %v135
    %s139 = scalar_lea.vmem %s0, 1
    %v140 = vld [vmem:[%s139] sm:$0x1]
    %141 = vrot.lane.b32.xlu0 %v140, 6
    %v142 = vpop.permute.xlu0 %141
    %vm143 = vcmask 97328
    %144 = vst.msk [vmem:[#allocation0] sm:$0x1] %vm143, %v142
    %s145 = scalar_lea.vmem %s0, 22
    %v146 = vld [vmem:[%s145] sm:$0x1]
    %147 = vrot.lane.b32.xlu0 %v146, 4
    %v148 = vpop.permute.xlu0 %147
    %vm149 = vcmask 80928
    %s150 = scalar_lea.vmem [#allocation0], 8
    %151 = vst.msk [vmem:[%s150] sm:$0x1] %vm149, %v148
    %s153 = sshllo.u32 0, 1
    %v155 = vld [vmem:[#allocation0] sm:%s153]
    %s156 = sshllo.u32 0, 1
    %157 = vst [vmem:[%s1] sm:%s156] %v155
    %s158 = scalar_lea.vmem [#allocation0], 8
    %v159 = vld [vmem:[%s158] sm:%s153]
    %s160 = sshllo.u32 0, 1
    %s161 = scalar_lea.vmem %s1, 1
    %162 = vst [vmem:[%s161] sm:%s160] %v159

// kernel: tile.18
$region0: #{tile.18}
  #allocation0 [shape = 's32[1]{0}', space=sflag, size = 0x4, scoped, tag = 'scoped memory for tile.18']
  %s0 = inlined_call_operand.vmem [shape: f32[10], index: 0, kind: input, shape index: {}]
  %s1 = inlined_call_operand.vmem [shape: f32[8,10], index: 1, kind: output, shape index: {}]
  // Predicated region
  $region2: #{tile.18} parent=0 // pred_check
    _
  $region3: #{tile.18} parent=0 // pred_check_branch
    %3 = sbr.rel (0) target = $region5
  $region4: #{tile.18} parent=0 // pred_region
    _
  $region5: #{tile.18} parent=0 // pred_fallthru
    _
  %v4 = vld [vmem:[%s0] ss:$0 sm:$0xff]
  %5 = vst [vmem:[%s1] sm:$0xff] %v4

// kernel: tile.19
$region0: #{tile.19}
  %s0 = inlined_call_operand.vmem [shape: f32[8,10], index: 0, kind: input, shape index: {}]
  %s1 = inlined_call_operand.vmem [shape: f32[1,80], index: 1, kind: output, shape index: {}]
  $region1: #{tile.19} parent=0
    #allocation0 [shape = 'u8[4096]{0}', space=vmem, size = 0x1000, scoped, tag = 'scoped mem for output reshape']
    %v2 = vld [vmem:[%s0] sm:$0x1]
    %vm3 = vcmask 80896
    %4 = vst.msk [vmem:[#allocation0] sm:$0x1] %vm3, %v2
    %s5 = scalar_lea.vmem %s0, 7
    %v6 = vld [vmem:[%s5] sm:$0x1]
    %7 = vrot.lane.b32.xlu0 %v6, 70
    %v8 = vpop.permute.xlu0 %7
    %vm9 = vcmask 654896
    %10 = vst.msk [vmem:[#allocation0] sm:$0x1] %vm9, %v8
    %s11 = scalar_lea.vmem %s0, 6
    %v12 = vld [vmem:[%s11] sm:$0x1]
    %13 = vrot.lane.b32.xlu0 %v12, 60
    %v14 = vpop.permute.xlu0 %13
    %vm15 = vcmask 572896
    %16 = vst.msk [vmem:[#allocation0] sm:$0x1] %vm15, %v14
    %s17 = scalar_lea.vmem %s0, 5
    %v18 = vld [vmem:[%s17] sm:$0x1]
    %19 = vrot.lane.b32.xlu0 %v18, 50
    %v20 = vpop.permute.xlu0 %19
    %vm21 = vcmask 490896
    %22 = vst.msk [vmem:[#allocation0] sm:$0x1] %vm21, %v20
    %s23 = scalar_lea.vmem %s0, 4
    %v24 = vld [vmem:[%s23] sm:$0x1]
    %25 = vrot.lane.b32.xlu0 %v24, 40
    %v26 = vpop.permute.xlu0 %25
    %vm27 = vcmask 408896
    %28 = vst.msk [vmem:[#allocation0] sm:$0x1] %vm27, %v26
    %s29 = scalar_lea.vmem %s0, 3
    %v30 = vld [vmem:[%s29] sm:$0x1]
    %31 = vrot.lane.b32.xlu0 %v30, 30
    %v32 = vpop.permute.xlu0 %31
    %vm33 = vcmask 326896
    %34 = vst.msk [vmem:[#allocation0] sm:$0x1] %vm33, %v32
    %s35 = scalar_lea.vmem %s0, 2
    %v36 = vld [vmem:[%s35] sm:$0x1]
    %37 = vrot.lane.b32.xlu0 %v36, 20
    %v38 = vpop.permute.xlu0 %37
    %vm39 = vcmask 244896
    %40 = vst.msk [vmem:[#allocation0] sm:$0x1] %vm39, %v38
    %s41 = scalar_lea.vmem %s0, 1
    %v42 = vld [vmem:[%s41] sm:$0x1]
    %43 = vrot.lane.b32.xlu0 %v42, 10
    %v44 = vpop.permute.xlu0 %43
    %vm45 = vcmask 162896
    %46 = vst.msk [vmem:[#allocation0] sm:$0x1] %vm45, %v44
    %s48 = sshllo.u32 0, 1
    %v50 = vld [vmem:[#allocation0] sm:%s48]
    %s51 = sshllo.u32 0, 1
    %52 = vst [vmem:[%s1] sm:%s51] %v50

// kernel: clusternet_forward.1
$region0: #{clusternet_forward.1}
  #allocation0 [shape = 'u32[]', space=smem, size = 0x4, offset = 0x4, fixed_abs, tag = 'smem constant byte address 0x4 - core index']
  #allocation1 [shape = 'u32[144,128]{1,0:T(1,128)}', space=vmem, size = 0x12000, scoped, tag = 'internal scratch']
  %s0 = inlined_call_operand.vmem [shape: f32[2,28,28], index: 0, kind: input, shape index: {}]
  %s1 = inlined_call_operand.vmem [shape: f32[5,28,144], index: 1, kind: input, shape index: {}]
  %s2 = inlined_call_operand.vmem [shape: f32[1,144], index: 2, kind: input, shape index: {}]
  %s3 = inlined_call_operand.vmem [shape: f32[2,12,24], index: 3, kind: input, shape index: {}]
  %s4 = inlined_call_operand.vmem [shape: f32[2,144,72], index: 4, kind: input, shape index: {}]
  %s5 = inlined_call_operand.vmem [shape: f32[5,72,80], index: 5, kind: input, shape index: {}]
  %s6 = inlined_call_operand.vmem [shape: f32[1,80], index: 6, kind: input, shape index: {}]
  %s7 = inlined_call_operand.vmem [shape: f32[2,4,8], index: 7, kind: input, shape index: {}]
  %s8 = inlined_call_operand.vmem [shape: f32[2,80,40], index: 8, kind: input, shape index: {}]
  %s9 = inlined_call_operand.vmem [shape: f32[4,40,128], index: 9, kind: input, shape index: {}]
  %s10 = inlined_call_operand.vmem [shape: f32[1,128], index: 10, kind: input, shape index: {}]
  %s11 = inlined_call_operand.vmem [shape: f32[128,128], index: 11, kind: input, shape index: {}]
  %s12 = inlined_call_operand.vmem [shape: f32[1,128], index: 12, kind: input, shape index: {}]
  %s13 = inlined_call_operand.vmem [shape: f32[128,128], index: 13, kind: input, shape index: {}]
  %s14 = inlined_call_operand.vmem [shape: f32[1,128], index: 14, kind: input, shape index: {}]
  %s15 = inlined_call_operand.hbm [shape: f32[2,1,128], index: 15, kind: output, shape index: {0}]
  %s16 = inlined_call_operand.hbm [shape: f32[2,1,128], index: 16, kind: output, shape index: {1}]
  %17 = xla_tuple %s15, %s16
  %s18 = sld [smem:[#allocation0]]
  $region101: #{clusternet_forward.1} parent=0
    _
  %s20 = ssub.s32 1, %s18
  %s21 = scalar_select 0, %s20, %s18
  $region1: #{clusternet_forward.1} parent=0
    #allocation2 [shape = 'u8[1024]{0}', space=vmem, size = 0x400, scoped, tag = 'output window, operand 0']
    #allocation3 [shape = 's32[2]{0}', space=sflag, size = 0x8, scoped, tag = 'scoped memory for clusternet_forward.1']
    #allocation4 [shape = 'u8[1024]{0}', space=vmem, size = 0x400, scoped, tag = 'output window, operand 1']
    #allocation5 [shape = 's32[2]{0}', space=sflag, size = 0x8, scoped, tag = 'scoped memory for clusternet_forward.1']
    %22 = vsyncpa [#allocation3], 0
    %s23 = scalar_lea.sflag [#allocation3], 1
    %24 = vsyncpa %s23, 0
    %25 = vsyncpa [#allocation5], 0
    %s26 = scalar_lea.sflag [#allocation5], 1
    %27 = vsyncpa %s26, 0
    loop: start=0, step=1, limit=4
    $region2: #{clusternet_forward.1} parent=1 // loop_pre_header
      _
    $region3: #{clusternet_forward.1} parent=1 // loop_header
      %s29 = sphi 0, %s33
      %p30 = scmp.ge.s32.totalorder %s29, 4
      %s39 = sphi 0, %s41
      %s42 = sphi 0, %s39
      %s43 = sphi 0, %s42
      %s59 = sphi 0, %s43
      %s63 = sphi 0, %s63
      %s65 = sphi 0, %s63
      %s66 = sphi 0, %s65
      %s80 = sphi 0, %s66
      %s84 = sphi 0, %s84
      %s86 = sphi 0, %s84
      %s87 = sphi 0, %s86
      %s101 = sphi 0, %s87
      %s105 = sphi 0, %s105
      %s107 = sphi 0, %s105
      %s108 = sphi 0, %s107
      %s122 = sphi 0, %s108
      %s126 = sphi 0, %s126
      %s128 = sphi 0, %s126
      %s129 = sphi 0, %s128
      %s143 = sphi 0, %s129
      %s147 = sphi 0, %s147
      %s149 = sphi 0, %s147
      %s150 = sphi 0, %s149
      %s164 = sphi 0, %s150
      %s168 = sphi 0, %s168
      %s170 = sphi 0, %s168
      %s171 = sphi 0, %s170
      %s185 = sphi 0, %s171
      %s189 = sphi 0, %s189
      %s191 = sphi 0, %s189
      %s192 = sphi 0, %s191
      %s206 = sphi 0, %s192
      %s210 = sphi 0, %s210
      %s212 = sphi 0, %s210
      %s213 = sphi 0, %s212
      %s227 = sphi 0, %s213
      %s231 = sphi 0, %s231
      %s233 = sphi 0, %s231
      %s234 = sphi 0, %s233
      %s248 = sphi 0, %s234
      %s252 = sphi 0, %s252
      %s254 = sphi 0, %s252
      %s255 = sphi 0, %s254
      %s269 = sphi 0, %s255
      %s273 = sphi 0, %s273
      %s275 = sphi 0, %s273
      %s276 = sphi 0, %s275
      %s290 = sphi 0, %s276
      %s294 = sphi 0, %s294
      %s296 = sphi 0, %s294
      %s297 = sphi 0, %s296
      %s311 = sphi 0, %s297
      %s315 = sphi 0, %s315
      %s317 = sphi 0, %s315
      %s318 = sphi 0, %s317
      %s332 = sphi 0, %s318
      %s336 = sphi 0, %s336
      %s338 = sphi 0, %s336
      %s339 = sphi 0, %s338
      %s353 = sphi 0, %s339
      %s359 = sphi 0, %s361
      %s362 = sphi 0, %s359
      %s363 = sphi 0, %s362
      %s379 = sphi 0, %s363
      %s385 = sphi 0, %s387
      %s388 = sphi 0, %s385
      %s389 = sphi 0, %s388
      %s405 = sphi 0, %s389
    $region4: #{clusternet_forward.1} parent=1 // loop_header_branch
      %32 = sbr.rel (%p30) target = $region8
    $region5: #{clusternet_forward.1} parent=1 // loop_body
      %s34 = ssub.s32 %s29, 1
      %s35 = ssub.s32 %s29, 2
      %s36 = sadd.s32 %s29, 1
      %s37 = ssub.s32 %s29, %s36
      %p38 = scmp.eq.s32.totalorder %s37, 0
      %s40 = sadd.s32 %s39, 1
      %s41 = scalar_select %p38, %s39, %s40
      %p44 = pneg %p38
      %p45 = scmp.eq.s32.totalorder %s29, 1
      %p46 = por %p44, %p45
      %p47 = scmp.ne.s32.totalorder %s39, %s42
      %p48 = scmp.eq.s32.totalorder %s29, 0
      %p49 = por %p47, %p48
      %p50 = scmp.ne.s32.totalorder %s39, %s42
      %p51 = scmp.eq.s32.totalorder %s34, 1
      %p52 = por %p50, %p51
      %p53 = scmp.ne.s32.totalorder %s42, %s43
      %p54 = scmp.eq.s32.totalorder %s34, 0
      %p55 = por %p53, %p54
      %p56 = scmp.ne.s32.totalorder %s42, %s43
      %p57 = scmp.eq.s32.totalorder %s35, 1
      %p58 = por %p56, %p57
      %p60 = scmp.ne.s32.totalorder %s43, %s59
      %p61 = scmp.eq.s32.totalorder %s35, 0
      %p62 = por %p60, %p61
      %s64 = sadd.s32 %s63, 1
      %p67 = scmp.eq.s32.totalorder %s29, 1
      %p68 = scmp.ne.s32.totalorder %s63, %s65
      %p69 = scmp.eq.s32.totalorder %s29, 0
      %p70 = por %p68, %p69
      %p71 = scmp.ne.s32.totalorder %s63, %s65
      %p72 = scmp.eq.s32.totalorder %s34, 1
      %p73 = por %p71, %p72
      %p74 = scmp.ne.s32.totalorder %s65, %s66
      %p75 = scmp.eq.s32.totalorder %s34, 0
      %p76 = por %p74, %p75
      %p77 = scmp.ne.s32.totalorder %s65, %s66
      %p78 = scmp.eq.s32.totalorder %s35, 1
      %p79 = por %p77, %p78
      %p81 = scmp.ne.s32.totalorder %s66, %s80
      %p82 = scmp.eq.s32.totalorder %s35, 0
      %p83 = por %p81, %p82
      %s85 = sadd.s32 %s84, 1
      %p88 = scmp.eq.s32.totalorder %s29, 1
      %p89 = scmp.ne.s32.totalorder %s84, %s86
      %p90 = scmp.eq.s32.totalorder %s29, 0
      %p91 = por %p89, %p90
      %p92 = scmp.ne.s32.totalorder %s84, %s86
      %p93 = scmp.eq.s32.totalorder %s34, 1
      %p94 = por %p92, %p93
      %p95 = scmp.ne.s32.totalorder %s86, %s87
      %p96 = scmp.eq.s32.totalorder %s34, 0
      %p97 = por %p95, %p96
      %p98 = scmp.ne.s32.totalorder %s86, %s87
      %p99 = scmp.eq.s32.totalorder %s35, 1
      %p100 = por %p98, %p99
      %p102 = scmp.ne.s32.totalorder %s87, %s101
      %p103 = scmp.eq.s32.totalorder %s35, 0
      %p104 = por %p102, %p103
      %s106 = sadd.s32 %s105, 1
      %p109 = scmp.eq.s32.totalorder %s29, 1
      %p110 = scmp.ne.s32.totalorder %s105, %s107
      %p111 = scmp.eq.s32.totalorder %s29, 0
      %p112 = por %p110, %p111
      %p113 = scmp.ne.s32.totalorder %s105, %s107
      %p114 = scmp.eq.s32.totalorder %s34, 1
      %p115 = por %p113, %p114
      %p116 = scmp.ne.s32.totalorder %s107, %s108
      %p117 = scmp.eq.s32.totalorder %s34, 0
      %p118 = por %p116, %p117
      %p119 = scmp.ne.s32.totalorder %s107, %s108
      %p120 = scmp.eq.s32.totalorder %s35, 1
      %p121 = por %p119, %p120
      %p123 = scmp.ne.s32.totalorder %s108, %s122
      %p124 = scmp.eq.s32.totalorder %s35, 0
      %p125 = por %p123, %p124
      %s127 = sadd.s32 %s126, 1
      %p130 = scmp.eq.s32.totalorder %s29, 1
      %p131 = scmp.ne.s32.totalorder %s126, %s128
      %p132 = scmp.eq.s32.totalorder %s29, 0
      %p133 = por %p131, %p132
      %p134 = scmp.ne.s32.totalorder %s126, %s128
      %p135 = scmp.eq.s32.totalorder %s34, 1
      %p136 = por %p134, %p135
      %p137 = scmp.ne.s32.totalorder %s128, %s129
      %p138 = scmp.eq.s32.totalorder %s34, 0
      %p139 = por %p137, %p138
      %p140 = scmp.ne.s32.totalorder %s128, %s129
      %p141 = scmp.eq.s32.totalorder %s35, 1
      %p142 = por %p140, %p141
      %p144 = scmp.ne.s32.totalorder %s129, %s143
      %p145 = scmp.eq.s32.totalorder %s35, 0
      %p146 = por %p144, %p145
      %s148 = sadd.s32 %s147, 1
      %p151 = scmp.eq.s32.totalorder %s29, 1
      %p152 = scmp.ne.s32.totalorder %s147, %s149
      %p153 = scmp.eq.s32.totalorder %s29, 0
      %p154 = por %p152, %p153
      %p155 = scmp.ne.s32.totalorder %s147, %s149
      %p156 = scmp.eq.s32.totalorder %s34, 1
      %p157 = por %p155, %p156
      %p158 = scmp.ne.s32.totalorder %s149, %s150
      %p159 = scmp.eq.s32.totalorder %s34, 0
      %p160 = por %p158, %p159
      %p161 = scmp.ne.s32.totalorder %s149, %s150
      %p162 = scmp.eq.s32.totalorder %s35, 1
      %p163 = por %p161, %p162
      %p165 = scmp.ne.s32.totalorder %s150, %s164
      %p166 = scmp.eq.s32.totalorder %s35, 0
      %p167 = por %p165, %p166
      %s169 = sadd.s32 %s168, 1
      %p172 = scmp.eq.s32.totalorder %s29, 1
      %p173 = scmp.ne.s32.totalorder %s168, %s170
      %p174 = scmp.eq.s32.totalorder %s29, 0
      %p175 = por %p173, %p174
      %p176 = scmp.ne.s32.totalorder %s168, %s170
      %p177 = scmp.eq.s32.totalorder %s34, 1
      %p178 = por %p176, %p177
      %p179 = scmp.ne.s32.totalorder %s170, %s171
      %p180 = scmp.eq.s32.totalorder %s34, 0
      %p181 = por %p179, %p180
      %p182 = scmp.ne.s32.totalorder %s170, %s171
      %p183 = scmp.eq.s32.totalorder %s35, 1
      %p184 = por %p182, %p183
      %p186 = scmp.ne.s32.totalorder %s171, %s185
      %p187 = scmp.eq.s32.totalorder %s35, 0
      %p188 = por %p186, %p187
      %s190 = sadd.s32 %s189, 1
      %p193 = scmp.eq.s32.totalorder %s29, 1
      %p194 = scmp.ne.s32.totalorder %s189, %s191
      %p195 = scmp.eq.s32.totalorder %s29, 0
      %p196 = por %p194, %p195
      %p197 = scmp.ne.s32.totalorder %s189, %s191
      %p198 = scmp.eq.s32.totalorder %s34, 1
      %p199 = por %p197, %p198
      %p200 = scmp.ne.s32.totalorder %s191, %s192
      %p201 = scmp.eq.s32.totalorder %s34, 0
      %p202 = por %p200, %p201
      %p203 = scmp.ne.s32.totalorder %s191, %s192
      %p204 = scmp.eq.s32.totalorder %s35, 1
      %p205 = por %p203, %p204
      %p207 = scmp.ne.s32.totalorder %s192, %s206
      %p208 = scmp.eq.s32.totalorder %s35, 0
      %p209 = por %p207, %p208
      %s211 = sadd.s32 %s210, 1
      %p214 = scmp.eq.s32.totalorder %s29, 1
      %p215 = scmp.ne.s32.totalorder %s210, %s212
      %p216 = scmp.eq.s32.totalorder %s29, 0
      %p217 = por %p215, %p216
      %p218 = scmp.ne.s32.totalorder %s210, %s212
      %p219 = scmp.eq.s32.totalorder %s34, 1
      %p220 = por %p218, %p219
      %p221 = scmp.ne.s32.totalorder %s212, %s213
      %p222 = scmp.eq.s32.totalorder %s34, 0
      %p223 = por %p221, %p222
      %p224 = scmp.ne.s32.totalorder %s212, %s213
      %p225 = scmp.eq.s32.totalorder %s35, 1
      %p226 = por %p224, %p225
      %p228 = scmp.ne.s32.totalorder %s213, %s227
      %p229 = scmp.eq.s32.totalorder %s35, 0
      %p230 = por %p228, %p229
      %s232 = sadd.s32 %s231, 1
      %p235 = scmp.eq.s32.totalorder %s29, 1
      %p236 = scmp.ne.s32.totalorder %s231, %s233
      %p237 = scmp.eq.s32.totalorder %s29, 0
      %p238 = por %p236, %p237
      %p239 = scmp.ne.s32.totalorder %s231, %s233
      %p240 = scmp.eq.s32.totalorder %s34, 1
      %p241 = por %p239, %p240
      %p242 = scmp.ne.s32.totalorder %s233, %s234
      %p243 = scmp.eq.s32.totalorder %s34, 0
      %p244 = por %p242, %p243
      %p245 = scmp.ne.s32.totalorder %s233, %s234
      %p246 = scmp.eq.s32.totalorder %s35, 1
      %p247 = por %p245, %p246
      %p249 = scmp.ne.s32.totalorder %s234, %s248
      %p250 = scmp.eq.s32.totalorder %s35, 0
      %p251 = por %p249, %p250
      %s253 = sadd.s32 %s252, 1
      %p256 = scmp.eq.s32.totalorder %s29, 1
      %p257 = scmp.ne.s32.totalorder %s252, %s254
      %p258 = scmp.eq.s32.totalorder %s29, 0
      %p259 = por %p257, %p258
      %p260 = scmp.ne.s32.totalorder %s252, %s254
      %p261 = scmp.eq.s32.totalorder %s34, 1
      %p262 = por %p260, %p261
      %p263 = scmp.ne.s32.totalorder %s254, %s255
      %p264 = scmp.eq.s32.totalorder %s34, 0
      %p265 = por %p263, %p264
      %p266 = scmp.ne.s32.totalorder %s254, %s255
      %p267 = scmp.eq.s32.totalorder %s35, 1
      %p268 = por %p266, %p267
      %p270 = scmp.ne.s32.totalorder %s255, %s269
      %p271 = scmp.eq.s32.totalorder %s35, 0
      %p272 = por %p270, %p271
      %s274 = sadd.s32 %s273, 1
      %p277 = scmp.eq.s32.totalorder %s29, 1
      %p278 = scmp.ne.s32.totalorder %s273, %s275
      %p279 = scmp.eq.s32.totalorder %s29, 0
      %p280 = por %p278, %p279
      %p281 = scmp.ne.s32.totalorder %s273, %s275
      %p282 = scmp.eq.s32.totalorder %s34, 1
      %p283 = por %p281, %p282
      %p284 = scmp.ne.s32.totalorder %s275, %s276
      %p285 = scmp.eq.s32.totalorder %s34, 0
      %p286 = por %p284, %p285
      %p287 = scmp.ne.s32.totalorder %s275, %s276
      %p288 = scmp.eq.s32.totalorder %s35, 1
      %p289 = por %p287, %p288
      %p291 = scmp.ne.s32.totalorder %s276, %s290
      %p292 = scmp.eq.s32.totalorder %s35, 0
      %p293 = por %p291, %p292
      %s295 = sadd.s32 %s294, 1
      %p298 = scmp.eq.s32.totalorder %s29, 1
      %p299 = scmp.ne.s32.totalorder %s294, %s296
      %p300 = scmp.eq.s32.totalorder %s29, 0
      %p301 = por %p299, %p300
      %p302 = scmp.ne.s32.totalorder %s294, %s296
      %p303 = scmp.eq.s32.totalorder %s34, 1
      %p304 = por %p302, %p303
      %p305 = scmp.ne.s32.totalorder %s296, %s297
      %p306 = scmp.eq.s32.totalorder %s34, 0
      %p307 = por %p305, %p306
      %p308 = scmp.ne.s32.totalorder %s296, %s297
      %p309 = scmp.eq.s32.totalorder %s35, 1
      %p310 = por %p308, %p309
      %p312 = scmp.ne.s32.totalorder %s297, %s311
      %p313 = scmp.eq.s32.totalorder %s35, 0
      %p314 = por %p312, %p313
      %s316 = sadd.s32 %s315, 1
      %p319 = scmp.eq.s32.totalorder %s29, 1
      %p320 = scmp.ne.s32.totalorder %s315, %s317
      %p321 = scmp.eq.s32.totalorder %s29, 0
      %p322 = por %p320, %p321
      %p323 = scmp.ne.s32.totalorder %s315, %s317
      %p324 = scmp.eq.s32.totalorder %s34, 1
      %p325 = por %p323, %p324
      %p326 = scmp.ne.s32.totalorder %s317, %s318
      %p327 = scmp.eq.s32.totalorder %s34, 0
      %p328 = por %p326, %p327
      %p329 = scmp.ne.s32.totalorder %s317, %s318
      %p330 = scmp.eq.s32.totalorder %s35, 1
      %p331 = por %p329, %p330
      %p333 = scmp.ne.s32.totalorder %s318, %s332
      %p334 = scmp.eq.s32.totalorder %s35, 0
      %p335 = por %p333, %p334
      %s337 = sadd.s32 %s336, 1
      %p340 = scmp.eq.s32.totalorder %s29, 1
      %p341 = scmp.ne.s32.totalorder %s336, %s338
      %p342 = scmp.eq.s32.totalorder %s29, 0
      %p343 = por %p341, %p342
      %p344 = scmp.ne.s32.totalorder %s336, %s338
      %p345 = scmp.eq.s32.totalorder %s34, 1
      %p346 = por %p344, %p345
      %p347 = scmp.ne.s32.totalorder %s338, %s339
      %p348 = scmp.eq.s32.totalorder %s34, 0
      %p349 = por %p347, %p348
      %p350 = scmp.ne.s32.totalorder %s338, %s339
      %p351 = scmp.eq.s32.totalorder %s35, 1
      %p352 = por %p350, %p351
      %p354 = scmp.ne.s32.totalorder %s339, %s353
      %p355 = scmp.eq.s32.totalorder %s35, 0
      %p356 = por %p354, %p355
      %s357 = ssub.s32 %s29, %s36
      %p358 = scmp.eq.s32.totalorder %s357, 0
      %s360 = sadd.s32 %s359, 1
      %s361 = scalar_select %p358, %s359, %s360
      %p364 = pneg %p358
      %p365 = scmp.eq.s32.totalorder %s29, 1
      %p366 = por %p364, %p365
      %p367 = scmp.ne.s32.totalorder %s359, %s362
      %p368 = scmp.eq.s32.totalorder %s29, 0
      %p369 = por %p367, %p368
      %p370 = scmp.ne.s32.totalorder %s359, %s362
      %p371 = scmp.eq.s32.totalorder %s34, 1
      %p372 = por %p370, %p371
      %p373 = scmp.ne.s32.totalorder %s362, %s363
      %p374 = scmp.eq.s32.totalorder %s34, 0
      %p375 = por %p373, %p374
      %p376 = scmp.ne.s32.totalorder %s362, %s363
      %p377 = scmp.eq.s32.totalorder %s35, 1
      %p378 = por %p376, %p377
      %p380 = scmp.ne.s32.totalorder %s363, %s379
      %p381 = scmp.eq.s32.totalorder %s35, 0
      %p382 = por %p380, %p381
      %s383 = ssub.s32 %s29, %s36
      %p384 = scmp.eq.s32.totalorder %s383, 0
      %s386 = sadd.s32 %s385, 1
      %s387 = scalar_select %p384, %s385, %s386
      %p390 = pneg %p384
      %p391 = scmp.eq.s32.totalorder %s29, 1
      %p392 = por %p390, %p391
      %p393 = scmp.ne.s32.totalorder %s385, %s388
      %p394 = scmp.eq.s32.totalorder %s29, 0
      %p395 = por %p393, %p394
      %p396 = scmp.ne.s32.totalorder %s385, %s388
      %p397 = scmp.eq.s32.totalorder %s34, 1
      %p398 = por %p396, %p397
      %p399 = scmp.ne.s32.totalorder %s388, %s389
      %p400 = scmp.eq.s32.totalorder %s34, 0
      %p401 = por %p399, %p400
      %p402 = scmp.ne.s32.totalorder %s388, %s389
      %p403 = scmp.eq.s32.totalorder %s35, 1
      %p404 = por %p402, %p403
      %p406 = scmp.ne.s32.totalorder %s389, %s405
      %p407 = scmp.eq.s32.totalorder %s35, 0
      %p408 = por %p406, %p407
      %p409 = scmp.le.s32.totalorder 1, %s29
      %p410 = scmp.lt.s32.totalorder %s29, 3
      %p411 = pnand %p409, %p410
      %p412 = pneg %p411
      // Predicated region
      $region9: #{clusternet_forward.1} parent=5 // pred_check
        _
      $region10: #{clusternet_forward.1} parent=5 // pred_check_branch
        %414 = sbr.rel (%p411) target = $region12
      $region11: #{clusternet_forward.1} parent=5 // pred_region
        %s415 = ssub.s32 %s29, 1
        // Predicated region
        $region13: #{clusternet_forward.1} parent=11 // pred_check
          %p416 = pneg %p76
        $region14: #{clusternet_forward.1} parent=11 // pred_check_branch
          %418 = sbr.rel (%p416) target = $region16
        $region15: #{clusternet_forward.1} parent=11 // pred_region
          _
        $region16: #{clusternet_forward.1} parent=11 // pred_fallthru
          _
        // Predicated region
        $region17: #{clusternet_forward.1} parent=11 // pred_check
          %p419 = pneg %p97
        $region18: #{clusternet_forward.1} parent=11 // pred_check_branch
          %421 = sbr.rel (%p419) target = $region20
        $region19: #{clusternet_forward.1} parent=11 // pred_region
          _
        $region20: #{clusternet_forward.1} parent=11 // pred_fallthru
          _
        // Predicated region
        $region21: #{clusternet_forward.1} parent=11 // pred_check
          %p422 = pneg %p118
        $region22: #{clusternet_forward.1} parent=11 // pred_check_branch
          %424 = sbr.rel (%p422) target = $region24
        $region23: #{clusternet_forward.1} parent=11 // pred_region
          _
        $region24: #{clusternet_forward.1} parent=11 // pred_fallthru
          _
        // Predicated region
        $region25: #{clusternet_forward.1} parent=11 // pred_check
          %p425 = pneg %p139
        $region26: #{clusternet_forward.1} parent=11 // pred_check_branch
          %427 = sbr.rel (%p425) target = $region28
        $region27: #{clusternet_forward.1} parent=11 // pred_region
          _
        $region28: #{clusternet_forward.1} parent=11 // pred_fallthru
          _
        // Predicated region
        $region29: #{clusternet_forward.1} parent=11 // pred_check
          %p428 = pneg %p160
        $region30: #{clusternet_forward.1} parent=11 // pred_check_branch
          %430 = sbr.rel (%p428) target = $region32
        $region31: #{clusternet_forward.1} parent=11 // pred_region
          _
        $region32: #{clusternet_forward.1} parent=11 // pred_fallthru
          _
        // Predicated region
        $region33: #{clusternet_forward.1} parent=11 // pred_check
          %p431 = pneg %p181
        $region34: #{clusternet_forward.1} parent=11 // pred_check_branch
          %433 = sbr.rel (%p431) target = $region36
        $region35: #{clusternet_forward.1} parent=11 // pred_region
          _
        $region36: #{clusternet_forward.1} parent=11 // pred_fallthru
          _
        // Predicated region
        $region37: #{clusternet_forward.1} parent=11 // pred_check
          %p434 = pneg %p202
        $region38: #{clusternet_forward.1} parent=11 // pred_check_branch
          %436 = sbr.rel (%p434) target = $region40
        $region39: #{clusternet_forward.1} parent=11 // pred_region
          _
        $region40: #{clusternet_forward.1} parent=11 // pred_fallthru
          _
        // Predicated region
        $region41: #{clusternet_forward.1} parent=11 // pred_check
          %p437 = pneg %p223
        $region42: #{clusternet_forward.1} parent=11 // pred_check_branch
          %439 = sbr.rel (%p437) target = $region44
        $region43: #{clusternet_forward.1} parent=11 // pred_region
          _
        $region44: #{clusternet_forward.1} parent=11 // pred_fallthru
          _
        // Predicated region
        $region45: #{clusternet_forward.1} parent=11 // pred_check
          %p440 = pneg %p244
        $region46: #{clusternet_forward.1} parent=11 // pred_check_branch
          %442 = sbr.rel (%p440) target = $region48
        $region47: #{clusternet_forward.1} parent=11 // pred_region
          _
        $region48: #{clusternet_forward.1} parent=11 // pred_fallthru
          _
        // Predicated region
        $region49: #{clusternet_forward.1} parent=11 // pred_check
          %p443 = pneg %p265
        $region50: #{clusternet_forward.1} parent=11 // pred_check_branch
          %445 = sbr.rel (%p443) target = $region52
        $region51: #{clusternet_forward.1} parent=11 // pred_region
          _
        $region52: #{clusternet_forward.1} parent=11 // pred_fallthru
          _
        // Predicated region
        $region53: #{clusternet_forward.1} parent=11 // pred_check
          %p446 = pneg %p286
        $region54: #{clusternet_forward.1} parent=11 // pred_check_branch
          %448 = sbr.rel (%p446) target = $region56
        $region55: #{clusternet_forward.1} parent=11 // pred_region
          _
        $region56: #{clusternet_forward.1} parent=11 // pred_fallthru
          _
        // Predicated region
        $region57: #{clusternet_forward.1} parent=11 // pred_check
          %p449 = pneg %p307
        $region58: #{clusternet_forward.1} parent=11 // pred_check_branch
          %451 = sbr.rel (%p449) target = $region60
        $region59: #{clusternet_forward.1} parent=11 // pred_region
          _
        $region60: #{clusternet_forward.1} parent=11 // pred_fallthru
          _
        // Predicated region
        $region61: #{clusternet_forward.1} parent=11 // pred_check
          %p452 = pneg %p328
        $region62: #{clusternet_forward.1} parent=11 // pred_check_branch
          %454 = sbr.rel (%p452) target = $region64
        $region63: #{clusternet_forward.1} parent=11 // pred_region
          _
        $region64: #{clusternet_forward.1} parent=11 // pred_fallthru
          _
        // Predicated region
        $region65: #{clusternet_forward.1} parent=11 // pred_check
          %p455 = pneg %p349
        $region66: #{clusternet_forward.1} parent=11 // pred_check_branch
          %457 = sbr.rel (%p455) target = $region68
        $region67: #{clusternet_forward.1} parent=11 // pred_region
          _
        $region68: #{clusternet_forward.1} parent=11 // pred_fallthru
          _
      $region12: #{clusternet_forward.1} parent=5 // pred_fallthru
        _
      %p458 = scmp.lt.s32.totalorder %s29, 2
      // Predicated region
      $region69: #{clusternet_forward.1} parent=5 // pred_check
        %p459 = pneg %p458
      $region70: #{clusternet_forward.1} parent=5 // pred_check_branch
        %461 = sbr.rel (%p459) target = $region72
      $region71: #{clusternet_forward.1} parent=5 // pred_region
        // Predicated region
        $region73: #{clusternet_forward.1} parent=71 // pred_check
          %p462 = pneg %p49
        $region74: #{clusternet_forward.1} parent=71 // pred_check_branch
          %464 = sbr.rel (%p462) target = $region76
        $region75: #{clusternet_forward.1} parent=71 // pred_region
          %p465 = scmp.lt.s32.totalorder %s29, 1
          %s466 = scalar_select %p465, %s29, 1
          %s467 = smul.addr %s466, 4
          %s468 = smul.addr %s467, 8
          %s469 = scalar_lea.vmem %s0, %s468
        $region76: #{clusternet_forward.1} parent=71 // pred_fallthru
          _
      $region72: #{clusternet_forward.1} parent=5 // pred_fallthru
        _
      %p470 = scmp.le.s32.totalorder 1, %s29
      %p471 = scmp.lt.s32.totalorder %s29, 3
      %p472 = pnand %p470, %p471
      %p473 = pneg %p472
      // Predicated region
      $region77: #{clusternet_forward.1} parent=5 // pred_check
        _
      $region78: #{clusternet_forward.1} parent=5 // pred_check_branch
        %475 = sbr.rel (%p472) target = $region80
      $region79: #{clusternet_forward.1} parent=5 // pred_region
        %s476 = ssub.s32 %s29, 1
        %p477 = scmp.lt.s32.totalorder %s34, 1
        %s478 = scalar_select %p477, %s34, 1
        %s479 = smul.addr %s478, 4
        %s480 = smul.addr %s479, 8
        %s481 = scalar_lea.vmem %s0, %s480
        %p482 = pneg %p55
        %p483 = pneg %p52
        %p484 = pneg %p76
        %p485 = pneg %p73
        %p486 = pneg %p97
        %p487 = pneg %p94
        %p488 = pneg %p118
        %p489 = pneg %p115
        %p490 = pneg %p139
        %p491 = pneg %p136
        %p492 = pneg %p160
        %p493 = pneg %p157
        %p494 = pneg %p181
        %p495 = pneg %p178
        %p496 = pneg %p202
        %p497 = pneg %p199
        %p498 = pneg %p223
        %p499 = pneg %p220
        %p500 = pneg %p244
        %p501 = pneg %p241
        %p502 = pneg %p265
        %p503 = pneg %p262
        %p504 = pneg %p286
        %p505 = pneg %p283
        %p506 = pneg %p307
        %p507 = pneg %p304
        %p508 = pneg %p328
        %p509 = pneg %p325
        %p510 = pneg %p349
        %p511 = pneg %p346
        %p512 = pneg %p375
        %p513 = pneg %p372
        %s514 = sand.u32 %s362, 1
        %s515 = scalar_lea.sflag [#allocation3], %s514
        %s516 = sand.u32 %s362, 1
        %s517 = scalar_lea.vmem [#allocation2], %s516
        %p518 = pneg %p401
        %p519 = pneg %p398
        %s520 = sand.u32 %s388, 1
        %s521 = scalar_lea.sflag [#allocation5], %s520
        %s522 = sand.u32 %s388, 1
        %s523 = scalar_lea.vmem [#allocation4], %s522
        %p524 = scmp.lt.s32.totalorder %s34, 1
        %s525 = scalar_select %p524, %s34, 1
        %s526 = smul.addr %s525, 4
        %s527 = smul.addr %s526, 8
        %s528 = scalar_lea.vmem %s0, %s527
        %v529 = vld [vmem:[%s528] sm:$0xff]
        %v530 = vld [vmem:[%s528 + $0x8] sm:$0xff]
        %v531 = vld [vmem:[%s528 + $0x10] sm:$0xff]
        %v532 = vld [vmem:[%s528 + $0x18] sm:$0xf]
        %v533 = vld [vmem:[%s1] sm:$0xff]
        %v534 = vld [vmem:[%s1 + $0x8] sm:$0xff]
        %v535 = vld [vmem:[%s1 + $0x10] sm:$0xff]
        %v536 = vld [vmem:[%s1 + $0x18] sm:$0xff]
        %v537 = vld [vmem:[%s1 + $0x20] sm:$0xff]
        %v538 = vld [vmem:[%s1 + $0x28] sm:$0xff]
        %v539 = vld [vmem:[%s1 + $0x30] sm:$0xf]
        %v540 = vld [vmem:[%s1 + $0x38] sm:$0xf]
        %s541 = scalar_lea.vmem %s1, 64
        %v542 = vld [vmem:[%s541] sm:$0xff]
        %v543 = vld [vmem:[%s541 + $0x8] sm:$0xff]
        %v544 = vld [vmem:[%s541 + $0x10] sm:$0xff]
        %v545 = vld [vmem:[%s541 + $0x18] sm:$0xff]
        %v546 = vld [vmem:[%s541 + $0x20] sm:$0xff]
        %v547 = vld [vmem:[%s541 + $0x28] sm:$0xff]
        %v548 = vld [vmem:[%s541 + $0x30] sm:$0xf]
        %v549 = vld [vmem:[%s541 + $0x38] sm:$0xf]
        %vm554 = vcmask 1046528
        %v555 = vrot.slane %v529, 1
        %v556 = vrot.slane %v530, 1
        %v557 = vsel %vm554, %v555, %v556
        %v558 = vrot.slane %v531, 1
        %v559 = vsel %vm554, %v556, %v558
        %v560 = vrot.slane %v532, 1
        %v561 = vsel %vm554, %v558, %v560
        %vm562 = vcmask 228352
        %v563 = vsel %vm562, %v557, 0
        %v565 = vsel %vm562, %v559, 0
        %v567 = vsel %vm562, %v561, 0
        %vm569 = vcmask 1043456
        %v571 = vsel %vm569, %v548, 0
        %v574 = vsel %vm569, %v549, 0
        %576 = vmatprep.subr.mxu0 %v543
        %577 = vmatpush1.msra.mxu0 %v542
        %578 = vmatprep.subr.mxu0 %v545
        %579 = vmatpush1.msra.mxu0 %v544
        %580 = vmatprep.subr.mxu0 %v547
        %581 = vmatpush1.msra.mxu0 %v546
        %582 = vmatprep.subr.mxu0 %v574
        %583 = vmatpush1.msra.mxu0 %v571
        %584 = vmatprep.subr.mxu0 0.0
        %585 = vmatpush1.msra.mxu0 0.0
        %586 = vmatprep.subr.mxu0 0.0
        %587 = vmatpush1.msra.mxu0 0.0
        %588 = vmatprep.subr.mxu0 0.0
        %589 = vmatpush1.msra.mxu0 0.0
        %590 = vmatprep.subr.mxu0 0.0
        %591 = vmatpush1.msra.mxu0 0.0
        %592 = vmatprep.subr.mxu0 0.0
        %593 = vmatpush1.msra.mxu0 0.0
        %594 = vmatprep.subr.mxu0 0.0
        %595 = vmatpush1.msra.mxu0 0.0
        %596 = vmatprep.subr.mxu0 0.0
        %597 = vmatpush1.msra.mxu0 0.0
        %598 = vmatprep.subr.mxu0 0.0
        %599 = vmatpush1.msra.mxu0 0.0
        %600 = vmatprep.subr.mxu0 0.0
        %601 = vmatpush1.msra.mxu0 0.0
        %602 = vmatprep.subr.mxu0 0.0
        %603 = vmatpush1.msra.mxu0 0.0
        %604 = vmatprep.subr.mxu0 0.0
        %605 = vmatpush1.msra.mxu0 0.0
        %606 = vmatprep.subr.mxu0 0.0
        %607 = vmatpush1.msra.mxu0 0.0
        %608 = vmatprep.subr.mxu0 0.0
        %609 = vmatpush1.msra.mxu0 0.0
        %610 = vmatprep.subr.mxu0 0.0
        %611 = vmatpush1.msra.mxu0 0.0
        %612 = vmatprep.subr.mxu0 0.0
        %613 = vmatpush1.msra.mxu0 0.0
        %614 = vmatprep.subr.mxu0 0.0
        %615 = vmatpush1.msra.mxu0 0.0
        %616 = vmatprep.subr.mxu0 0.0
        %617 = vmatpush1.msra.mxu0 0.0
        %618 = vmatprep.subr.mxu0 0.0
        %619 = vmatpush1.msra.mxu0 0.0
        %620 = vmatprep.subr.mxu0 0.0
        %621 = vmatpush1.msra.mxu0 0.0
        %622 = vmatprep.subr.mxu0 0.0
        %623 = vmatpush1.msra.mxu0 0.0
        %624 = vmatprep.subr.mxu0 0.0
        %625 = vmatpush1.msra.mxu0 0.0
        %626 = vmatprep.subr.mxu0 0.0
        %627 = vmatpush1.msra.mxu0 0.0
        %628 = vmatprep.subr.mxu0 0.0
        %629 = vmatpush1.msra.mxu0 0.0
        %630 = vmatprep.subr.mxu0 0.0
        %631 = vmatpush1.msra.mxu0 0.0
        %632 = vmatprep.subr.mxu0 0.0
        %633 = vmatpush1.msra.mxu0 0.0
        %634 = vmatprep.subr.mxu0 0.0
        %635 = vmatpush1.msra.mxu0 0.0
        %636 = vmatprep.subr.mxu0 0.0
        %637 = vmatpush1.msra.mxu0 0.0
        %638 = vmatprep.subr.mxu0 0.0
        %639 = vmatpush1.msra.mxu0 0.0
        %640 = vmatprep.mubr.f32.mxu0 0.0
        %641 = vmatmul.mubr.f32.gmra.mrb[0].mxu0 %v563
        %v642 = vpop.f32.mrb[0].mxu0
        %v643 = vadd.f32 0.0, %v642
        %v644 = vpop.f32.mrb[0].mxu0
        %v645 = vadd.f32 0.0, %v644
        %646 = vmatprep.mubr.f32.mxu0 0.0
        %647 = vmatmul.mubr.f32.gmra.mrb[0].mxu0 %v565
        %v648 = vpop.f32.mrb[0].mxu0
        %v649 = vadd.f32 0.0, %v648
        %v650 = vpop.f32.mrb[0].mxu0
        %v651 = vadd.f32 0.0, %v650
        %652 = vmatprep.mubr.f32.mxu0 0.0
        %653 = vmatmul.mubr.f32.gmra.mrb[0].mxu0 %v567
        %v654 = vpop.f32.mrb[0].mxu0
        %v655 = vadd.f32 0.0, %v654
        %v656 = vpop.f32.mrb[0].mxu0
        %v657 = vadd.f32 0.0, %v656
        %658 = vdwg.mxu0
        %v659 = vsel %vm562, %v529, 0
        %v661 = vsel %vm562, %v530, 0
        %v663 = vsel %vm562, %v531, 0
        %v666 = vsel %vm569, %v539, 0
        %v669 = vsel %vm569, %v540, 0
        %671 = vmatprep.subr.mxu0 %v534
        %672 = vmatpush1.msra.mxu0 %v533
        %673 = vmatprep.subr.mxu0 %v536
        %674 = vmatpush1.msra.mxu0 %v535
        %675 = vmatprep.subr.mxu0 %v538
        %676 = vmatpush1.msra.mxu0 %v537
        %677 = vmatprep.subr.mxu0 %v669
        %678 = vmatpush1.msra.mxu0 %v666
        %679 = vmatprep.subr.mxu0 0.0
        %680 = vmatpush1.msra.mxu0 0.0
        %681 = vmatprep.subr.mxu0 0.0
        %682 = vmatpush1.msra.mxu0 0.0
        %683 = vmatprep.subr.mxu0 0.0
        %684 = vmatpush1.msra.mxu0 0.0
        %685 = vmatprep.subr.mxu0 0.0
        %686 = vmatpush1.msra.mxu0 0.0
        %687 = vmatprep.subr.mxu0 0.0
        %688 = vmatpush1.msra.mxu0 0.0
        %689 = vmatprep.subr.mxu0 0.0
        %690 = vmatpush1.msra.mxu0 0.0
        %691 = vmatprep.subr.mxu0 0.0
        %692 = vmatpush1.msra.mxu0 0.0
        %693 = vmatprep.subr.mxu0 0.0
        %694 = vmatpush1.msra.mxu0 0.0
        %695 = vmatprep.subr.mxu0 0.0
        %696 = vmatpush1.msra.mxu0 0.0
        %697 = vmatprep.subr.mxu0 0.0
        %698 = vmatpush1.msra.mxu0 0.0
        %699 = vmatprep.subr.mxu0 0.0
        %700 = vmatpush1.msra.mxu0 0.0
        %701 = vmatprep.subr.mxu0 0.0
        %702 = vmatpush1.msra.mxu0 0.0
        %703 = vmatprep.subr.mxu0 0.0
        %704 = vmatpush1.msra.mxu0 0.0
        %705 = vmatprep.subr.mxu0 0.0
        %706 = vmatpush1.msra.mxu0 0.0
        %707 = vmatprep.subr.mxu0 0.0
        %708 = vmatpush1.msra.mxu0 0.0
        %709 = vmatprep.subr.mxu0 0.0
        %710 = vmatpush1.msra.mxu0 0.0
        %711 = vmatprep.subr.mxu0 0.0
        %712 = vmatpush1.msra.mxu0 0.0
        %713 = vmatprep.subr.mxu0 0.0
        %714 = vmatpush1.msra.mxu0 0.0
        %715 = vmatprep.subr.mxu0 0.0
        %716 = vmatpush1.msra.mxu0 0.0
        %717 = vmatprep.subr.mxu0 0.0
        %718 = vmatpush1.msra.mxu0 0.0
        %719 = vmatprep.subr.mxu0 0.0
        %720 = vmatpush1.msra.mxu0 0.0
        %721 = vmatprep.subr.mxu0 0.0
        %722 = vmatpush1.msra.mxu0 0.0
        %723 = vmatprep.subr.mxu0 0.0
        %724 = vmatpush1.msra.mxu0 0.0
        %725 = vmatprep.subr.mxu0 0.0
        %726 = vmatpush1.msra.mxu0 0.0
        %727 = vmatprep.subr.mxu0 0.0
        %728 = vmatpush1.msra.mxu0 0.0
        %729 = vmatprep.subr.mxu0 0.0
        %730 = vmatpush1.msra.mxu0 0.0
        %731 = vmatprep.subr.mxu0 0.0
        %732 = vmatpush1.msra.mxu0 0.0
        %733 = vmatprep.subr.mxu0 0.0
        %734 = vmatpush1.msra.mxu0 0.0
        %735 = vmatprep.mubr.f32.mxu0 0.0
        %736 = vmatmul.mubr.f32.gmra.mrb[0].mxu0 %v659
        %v737 = vpop.f32.mrb[0].mxu0
        %v738 = vadd.f32 %v643, %v737
        %v739 = vpop.f32.mrb[0].mxu0
        %v740 = vadd.f32 %v645, %v739
        %741 = vmatprep.mubr.f32.mxu0 0.0
        %742 = vmatmul.mubr.f32.gmra.mrb[0].mxu0 %v661
        %v743 = vpop.f32.mrb[0].mxu0
        %v744 = vadd.f32 %v649, %v743
        %v745 = vpop.f32.mrb[0].mxu0
        %v746 = vadd.f32 %v651, %v745
        %747 = vmatprep.mubr.f32.mxu0 0.0
        %748 = vmatmul.mubr.f32.gmra.mrb[0].mxu0 %v663
        %v749 = vpop.f32.mrb[0].mxu0
        %v750 = vadd.f32 %v655, %v749
        %v751 = vpop.f32.mrb[0].mxu0
        %v752 = vadd.f32 %v657, %v751
        %753 = vdwg.mxu0
        %s754 = scalar_lea.vmem %s1, 128
        %v755 = vld [vmem:[%s754] sm:$0xff]
        %v756 = vld [vmem:[%s754 + $0x8] sm:$0xff]
        %v757 = vld [vmem:[%s754 + $0x10] sm:$0xff]
        %v758 = vld [vmem:[%s754 + $0x18] sm:$0xff]
        %v759 = vld [vmem:[%s754 + $0x20] sm:$0xff]
        %v760 = vld [vmem:[%s754 + $0x28] sm:$0xff]
        %v761 = vld [vmem:[%s754 + $0x30] sm:$0xf]
        %v762 = vld [vmem:[%s754 + $0x38] sm:$0xf]
        %vm763 = vcmask 1045504
        %v764 = vrot.slane %v529, 2
        %v765 = vrot.slane %v530, 2
        %v766 = vsel %vm763, %v764, %v765
        %v767 = vrot.slane %v531, 2
        %v768 = vsel %vm763, %v765, %v767
        %v769 = vrot.slane %v532, 2
        %v770 = vsel %vm763, %v767, %v769
        %v771 = vsel %vm562, %v766, 0
        %v773 = vsel %vm562, %v768, 0
        %v775 = vsel %vm562, %v770, 0
        %v778 = vsel %vm569, %v761, 0
        %v781 = vsel %vm569, %v762, 0
        %783 = vmatprep.subr.mxu0 %v756
        %784 = vmatpush1.msra.mxu0 %v755
        %785 = vmatprep.subr.mxu0 %v758
        %786 = vmatpush1.msra.mxu0 %v757
        %787 = vmatprep.subr.mxu0 %v760
        %788 = vmatpush1.msra.mxu0 %v759
        %789 = vmatprep.subr.mxu0 %v781
        %790 = vmatpush1.msra.mxu0 %v778
        %791 = vmatprep.subr.mxu0 0.0
        %792 = vmatpush1.msra.mxu0 0.0
        %793 = vmatprep.subr.mxu0 0.0
        %794 = vmatpush1.msra.mxu0 0.0
        %795 = vmatprep.subr.mxu0 0.0
        %796 = vmatpush1.msra.mxu0 0.0
        %797 = vmatprep.subr.mxu0 0.0
        %798 = vmatpush1.msra.mxu0 0.0
        %799 = vmatprep.subr.mxu0 0.0
        %800 = vmatpush1.msra.mxu0 0.0
        %801 = vmatprep.subr.mxu0 0.0
        %802 = vmatpush1.msra.mxu0 0.0
        %803 = vmatprep.subr.mxu0 0.0
        %804 = vmatpush1.msra.mxu0 0.0
        %805 = vmatprep.subr.mxu0 0.0
        %806 = vmatpush1.msra.mxu0 0.0
        %807 = vmatprep.subr.mxu0 0.0
        %808 = vmatpush1.msra.mxu0 0.0
        %809 = vmatprep.subr.mxu0 0.0
        %810 = vmatpush1.msra.mxu0 0.0
        %811 = vmatprep.subr.mxu0 0.0
        %812 = vmatpush1.msra.mxu0 0.0
        %813 = vmatprep.subr.mxu0 0.0
        %814 = vmatpush1.msra.mxu0 0.0
        %815 = vmatprep.subr.mxu0 0.0
        %816 = vmatpush1.msra.mxu0 0.0
        %817 = vmatprep.subr.mxu0 0.0
        %818 = vmatpush1.msra.mxu0 0.0
        %819 = vmatprep.subr.mxu0 0.0
        %820 = vmatpush1.msra.mxu0 0.0
        %821 = vmatprep.subr.mxu0 0.0
        %822 = vmatpush1.msra.mxu0 0.0
        %823 = vmatprep.subr.mxu0 0.0
        %824 = vmatpush1.msra.mxu0 0.0
        %825 = vmatprep.subr.mxu0 0.0
        %826 = vmatpush1.msra.mxu0 0.0
        %827 = vmatprep.subr.mxu0 0.0
        %828 = vmatpush1.msra.mxu0 0.0
        %829 = vmatprep.subr.mxu0 0.0
        %830 = vmatpush1.msra.mxu0 0.0
        %831 = vmatprep.subr.mxu0 0.0
        %832 = vmatpush1.msra.mxu0 0.0
        %833 = vmatprep.subr.mxu0 0.0
        %834 = vmatpush1.msra.mxu0 0.0
        %835 = vmatprep.subr.mxu0 0.0
        %836 = vmatpush1.msra.mxu0 0.0
        %837 = vmatprep.subr.mxu0 0.0
        %838 = vmatpush1.msra.mxu0 0.0
        %839 = vmatprep.subr.mxu0 0.0
        %840 = vmatpush1.msra.mxu0 0.0
        %841 = vmatprep.subr.mxu0 0.0
        %842 = vmatpush1.msra.mxu0 0.0
        %843 = vmatprep.subr.mxu0 0.0
        %844 = vmatpush1.msra.mxu0 0.0
        %845 = vmatprep.subr.mxu0 0.0
        %846 = vmatpush1.msra.mxu0 0.0
        %847 = vmatprep.mubr.f32.mxu0 0.0
        %848 = vmatmul.mubr.f32.gmra.mrb[0].mxu0 %v771
        %v849 = vpop.f32.mrb[0].mxu0
        %v850 = vadd.f32 0.0, %v849
        %v851 = vpop.f32.mrb[0].mxu0
        %v852 = vadd.f32 0.0, %v851
        %853 = vmatprep.mubr.f32.mxu0 0.0
        %854 = vmatmul.mubr.f32.gmra.mrb[0].mxu0 %v773
        %v855 = vpop.f32.mrb[0].mxu0
        %v856 = vadd.f32 0.0, %v855
        %v857 = vpop.f32.mrb[0].mxu0
        %v858 = vadd.f32 0.0, %v857
        %859 = vmatprep.mubr.f32.mxu0 0.0
        %860 = vmatmul.mubr.f32.gmra.mrb[0].mxu0 %v775
        %v861 = vpop.f32.mrb[0].mxu0
        %v862 = vadd.f32 0.0, %v861
        %v863 = vpop.f32.mrb[0].mxu0
        %v864 = vadd.f32 0.0, %v863
        %865 = vdwg.mxu0
        %v866 = vadd.f32 %v738, %v850
        %v867 = vadd.f32 %v740, %v852
        %v868 = vadd.f32 %v744, %v856
        %v869 = vadd.f32 %v746, %v858
        %v870 = vadd.f32 %v750, %v862
        %v871 = vadd.f32 %v752, %v864
        %s872 = scalar_lea.vmem %s1, 192
        %v873 = vld [vmem:[%s872] sm:$0xff]
        %v874 = vld [vmem:[%s872 + $0x8] sm:$0xff]
        %v875 = vld [vmem:[%s872 + $0x10] sm:$0xff]
        %v876 = vld [vmem:[%s872 + $0x18] sm:$0xff]
        %v877 = vld [vmem:[%s872 + $0x20] sm:$0xff]
        %v878 = vld [vmem:[%s872 + $0x28] sm:$0xff]
        %v879 = vld [vmem:[%s872 + $0x30] sm:$0xf]
        %v880 = vld [vmem:[%s872 + $0x38] sm:$0xf]
        %vm881 = vcmask 1044480
        %v882 = vrot.slane %v529, 3
        %v883 = vrot.slane %v530, 3
        %v884 = vsel %vm881, %v882, %v883
        %v885 = vrot.slane %v531, 3
        %v886 = vsel %vm881, %v883, %v885
        %v887 = vrot.slane %v532, 3
        %v888 = vsel %vm881, %v885, %v887
        %v889 = vsel %vm562, %v884, 0
        %v891 = vsel %vm562, %v886, 0
        %v893 = vsel %vm562, %v888, 0
        %v896 = vsel %vm569, %v879, 0
        %v899 = vsel %vm569, %v880, 0
        %901 = vmatprep.subr.mxu0 %v874
        %902 = vmatpush1.msra.mxu0 %v873
        %903 = vmatprep.subr.mxu0 %v876
        %904 = vmatpush1.msra.mxu0 %v875
        %905 = vmatprep.subr.mxu0 %v878
        %906 = vmatpush1.msra.mxu0 %v877
        %907 = vmatprep.subr.mxu0 %v899
        %908 = vmatpush1.msra.mxu0 %v896
        %909 = vmatprep.subr.mxu0 0.0
        %910 = vmatpush1.msra.mxu0 0.0
        %911 = vmatprep.subr.mxu0 0.0
        %912 = vmatpush1.msra.mxu0 0.0
        %913 = vmatprep.subr.mxu0 0.0
        %914 = vmatpush1.msra.mxu0 0.0
        %915 = vmatprep.subr.mxu0 0.0
        %916 = vmatpush1.msra.mxu0 0.0
        %917 = vmatprep.subr.mxu0 0.0
        %918 = vmatpush1.msra.mxu0 0.0
        %919 = vmatprep.subr.mxu0 0.0
        %920 = vmatpush1.msra.mxu0 0.0
        %921 = vmatprep.subr.mxu0 0.0
        %922 = vmatpush1.msra.mxu0 0.0
        %923 = vmatprep.subr.mxu0 0.0
        %924 = vmatpush1.msra.mxu0 0.0
        %925 = vmatprep.subr.mxu0 0.0
        %926 = vmatpush1.msra.mxu0 0.0
        %927 = vmatprep.subr.mxu0 0.0
        %928 = vmatpush1.msra.mxu0 0.0
        %929 = vmatprep.subr.mxu0 0.0
        %930 = vmatpush1.msra.mxu0 0.0
        %931 = vmatprep.subr.mxu0 0.0
        %932 = vmatpush1.msra.mxu0 0.0
        %933 = vmatprep.subr.mxu0 0.0
        %934 = vmatpush1.msra.mxu0 0.0
        %935 = vmatprep.subr.mxu0 0.0
        %936 = vmatpush1.msra.mxu0 0.0
        %937 = vmatprep.subr.mxu0 0.0
        %938 = vmatpush1.msra.mxu0 0.0
        %939 = vmatprep.subr.mxu0 0.0
        %940 = vmatpush1.msra.mxu0 0.0
        %941 = vmatprep.subr.mxu0 0.0
        %942 = vmatpush1.msra.mxu0 0.0
        %943 = vmatprep.subr.mxu0 0.0
        %944 = vmatpush1.msra.mxu0 0.0
        %945 = vmatprep.subr.mxu0 0.0
        %946 = vmatpush1.msra.mxu0 0.0
        %947 = vmatprep.subr.mxu0 0.0
        %948 = vmatpush1.msra.mxu0 0.0
        %949 = vmatprep.subr.mxu0 0.0
        %950 = vmatpush1.msra.mxu0 0.0
        %951 = vmatprep.subr.mxu0 0.0
        %952 = vmatpush1.msra.mxu0 0.0
        %953 = vmatprep.subr.mxu0 0.0
        %954 = vmatpush1.msra.mxu0 0.0
        %955 = vmatprep.subr.mxu0 0.0
        %956 = vmatpush1.msra.mxu0 0.0
        %957 = vmatprep.subr.mxu0 0.0
        %958 = vmatpush1.msra.mxu0 0.0
        %959 = vmatprep.subr.mxu0 0.0
        %960 = vmatpush1.msra.mxu0 0.0
        %961 = vmatprep.subr.mxu0 0.0
        %962 = vmatpush1.msra.mxu0 0.0
        %963 = vmatprep.subr.mxu0 0.0
        %964 = vmatpush1.msra.mxu0 0.0
        %965 = vmatprep.mubr.f32.mxu0 0.0
        %966 = vmatmul.mubr.f32.gmra.mrb[0].mxu0 %v889
        %v967 = vpop.f32.mrb[0].mxu0
        %v968 = vadd.f32 0.0, %v967
        %v969 = vpop.f32.mrb[0].mxu0
        %v970 = vadd.f32 0.0, %v969
        %971 = vmatprep.mubr.f32.mxu0 0.0
        %972 = vmatmul.mubr.f32.gmra.mrb[0].mxu0 %v891
        %v973 = vpop.f32.mrb[0].mxu0
        %v974 = vadd.f32 0.0, %v973
        %v975 = vpop.f32.mrb[0].mxu0
        %v976 = vadd.f32 0.0, %v975
        %977 = vmatprep.mubr.f32.mxu0 0.0
        %978 = vmatmul.mubr.f32.gmra.mrb[0].mxu0 %v893
        %v979 = vpop.f32.mrb[0].mxu0
        %v980 = vadd.f32 0.0, %v979
        %v981 = vpop.f32.mrb[0].mxu0
        %v982 = vadd.f32 0.0, %v981
        %983 = vdwg.mxu0
        %v984 = vadd.f32 %v866, %v968
        %v985 = vadd.f32 %v867, %v970
        %v986 = vadd.f32 %v868, %v974
        %v987 = vadd.f32 %v869, %v976
        %v988 = vadd.f32 %v870, %v980
        %v989 = vadd.f32 %v871, %v982
        %s990 = scalar_lea.vmem %s1, 256
        %v991 = vld [vmem:[%s990] sm:$0xff]
        %v992 = vld [vmem:[%s990 + $0x8] sm:$0xff]
        %v993 = vld [vmem:[%s990 + $0x10] sm:$0xff]
        %v994 = vld [vmem:[%s990 + $0x18] sm:$0xff]
        %v995 = vld [vmem:[%s990 + $0x20] sm:$0xff]
        %v996 = vld [vmem:[%s990 + $0x28] sm:$0xff]
        %v997 = vld [vmem:[%s990 + $0x30] sm:$0xf]
        %v998 = vld [vmem:[%s990 + $0x38] sm:$0xf]
        %v999 = vrot.slane %v529, 4
        %v1000 = vrot.slane %v530, 4
        %v1001 = vsel %vm569, %v999, %v1000
        %v1002 = vrot.slane %v531, 4
        %v1003 = vsel %vm569, %v1000, %v1002
        %v1004 = vrot.slane %v532, 4
        %v1005 = vsel %vm569, %v1002, %v1004
        %v1006 = vsel %vm562, %v1001, 0
        %v1008 = vsel %vm562, %v1003, 0
        %v1010 = vsel %vm562, %v1005, 0
        %v1013 = vsel %vm569, %v997, 0
        %v1016 = vsel %vm569, %v998, 0
        %1018 = vmatprep.subr.mxu0 %v992
        %1019 = vmatpush1.msra.mxu0 %v991
        %1020 = vmatprep.subr.mxu0 %v994
        %1021 = vmatpush1.msra.mxu0 %v993
        %1022 = vmatprep.subr.mxu0 %v996
        %1023 = vmatpush1.msra.mxu0 %v995
        %1024 = vmatprep.subr.mxu0 %v1016
        %1025 = vmatpush1.msra.mxu0 %v1013
        %1026 = vmatprep.subr.mxu0 0.0
        %1027 = vmatpush1.msra.mxu0 0.0
        %1028 = vmatprep.subr.mxu0 0.0
        %1029 = vmatpush1.msra.mxu0 0.0
        %1030 = vmatprep.subr.mxu0 0.0
        %1031 = vmatpush1.msra.mxu0 0.0
        %1032 = vmatprep.subr.mxu0 0.0
        %1033 = vmatpush1.msra.mxu0 0.0
        %1034 = vmatprep.subr.mxu0 0.0
        %1035 = vmatpush1.msra.mxu0 0.0
        %1036 = vmatprep.subr.mxu0 0.0
        %1037 = vmatpush1.msra.mxu0 0.0
        %1038 = vmatprep.subr.mxu0 0.0
        %1039 = vmatpush1.msra.mxu0 0.0
        %1040 = vmatprep.subr.mxu0 0.0
        %1041 = vmatpush1.msra.mxu0 0.0
        %1042 = vmatprep.subr.mxu0 0.0
        %1043 = vmatpush1.msra.mxu0 0.0
        %1044 = vmatprep.subr.mxu0 0.0
        %1045 = vmatpush1.msra.mxu0 0.0
        %1046 = vmatprep.subr.mxu0 0.0
        %1047 = vmatpush1.msra.mxu0 0.0
        %1048 = vmatprep.subr.mxu0 0.0
        %1049 = vmatpush1.msra.mxu0 0.0
        %1050 = vmatprep.subr.mxu0 0.0
        %1051 = vmatpush1.msra.mxu0 0.0
        %1052 = vmatprep.subr.mxu0 0.0
        %1053 = vmatpush1.msra.mxu0 0.0
        %1054 = vmatprep.subr.mxu0 0.0
        %1055 = vmatpush1.msra.mxu0 0.0
        %1056 = vmatprep.subr.mxu0 0.0
        %1057 = vmatpush1.msra.mxu0 0.0
        %1058 = vmatprep.subr.mxu0 0.0
        %1059 = vmatpush1.msra.mxu0 0.0
        %1060 = vmatprep.subr.mxu0 0.0
        %1061 = vmatpush1.msra.mxu0 0.0
        %1062 = vmatprep.subr.mxu0 0.0
        %1063 = vmatpush1.msra.mxu0 0.0
        %1064 = vmatprep.subr.mxu0 0.0
        %1065 = vmatpush1.msra.mxu0 0.0
        %1066 = vmatprep.subr.mxu0 0.0
        %1067 = vmatpush1.msra.mxu0 0.0
        %1068 = vmatprep.subr.mxu0 0.0
        %1069 = vmatpush1.msra.mxu0 0.0
        %1070 = vmatprep.subr.mxu0 0.0
        %1071 = vmatpush1.msra.mxu0 0.0
        %1072 = vmatprep.subr.mxu0 0.0
        %1073 = vmatpush1.msra.mxu0 0.0
        %1074 = vmatprep.subr.mxu0 0.0
        %1075 = vmatpush1.msra.mxu0 0.0
        %1076 = vmatprep.subr.mxu0 0.0
        %1077 = vmatpush1.msra.mxu0 0.0
        %1078 = vmatprep.subr.mxu0 0.0
        %1079 = vmatpush1.msra.mxu0 0.0
        %1080 = vmatprep.subr.mxu0 0.0
        %1081 = vmatpush1.msra.mxu0 0.0
        %1082 = vmatprep.mubr.f32.mxu0 0.0
        %1083 = vmatmul.mubr.f32.gmra.mrb[0].mxu0 %v1006
        %v1084 = vpop.f32.mrb[0].mxu0
        %v1085 = vadd.f32 0.0, %v1084
        %v1086 = vpop.f32.mrb[0].mxu0
        %v1087 = vadd.f32 0.0, %v1086
        %1088 = vmatprep.mubr.f32.mxu0 0.0
        %1089 = vmatmul.mubr.f32.gmra.mrb[0].mxu0 %v1008
        %v1090 = vpop.f32.mrb[0].mxu0
        %v1091 = vadd.f32 0.0, %v1090
        %v1092 = vpop.f32.mrb[0].mxu0
        %v1093 = vadd.f32 0.0, %v1092
        %1094 = vmatprep.mubr.f32.mxu0 0.0
        %1095 = vmatmul.mubr.f32.gmra.mrb[0].mxu0 %v1010
        %v1096 = vpop.f32.mrb[0].mxu0
        %v1097 = vadd.f32 0.0, %v1096
        %v1098 = vpop.f32.mrb[0].mxu0
        %v1099 = vadd.f32 0.0, %v1098
        %1100 = vdwg.mxu0
        %v1101 = vadd.f32 %v984, %v1085
        %v1102 = vadd.f32 %v985, %v1087
        %v1103 = vadd.f32 %v986, %v1091
        %v1104 = vadd.f32 %v987, %v1093
        %v1105 = vadd.f32 %v988, %v1097
        %v1106 = vadd.f32 %v989, %v1099
        %v1107 = vld [vmem:[%s2] sm:$0x3]
        %v1109 = vlaneseq
        %v1110 = vshrl.u32 %v1109, 7
        %v1111 = vsub.s32 0, %v1110
        %v1112 = vrot.slane %v1107, %v1111
        %v1113 = vlaneseq
        %v1114 = vshrl.u32 %v1113, 7
        %v1115 = vsub.s32 1, %v1114
        %v1116 = vrot.slane %v1107, %v1115
        %v1119 = vadd.f32 %v1101, %v1112
        %v1120 = vadd.f32 %v1102, %v1116
        %v1121 = vadd.f32 %v1103, %v1112
        %v1122 = vadd.f32 %v1104, %v1116
        %v1123 = vadd.f32 %v1105, %v1112
        %v1124 = vadd.f32 %v1106, %v1116
        %v1125 = vmax.f32 %v1119, 0.0
        %v1126 = vmax.f32 %v1120, 0.0
        %v1127 = vmax.f32 %v1121, 0.0
        %v1128 = vmax.f32 %v1122, 0.0
        %v1129 = vmax.f32 %v1123, 0.0
        %v1130 = vmax.f32 %v1124, 0.0
        %v1131 = vld [vmem:[%s3] sm:$0xff]
        %v1132 = vld [vmem:[%s3 + $0x8] sm:$0xf]
        %vm1133 = vcmask 195584
        %v1135 = vsel %vm1133, %v1131, 0
        %v1138 = vsel %vm1133, %v1132, 0
        %1140 = vmatprep.subr.mxu0 %v1126
        %1141 = vmatpush1.msra.mxu0 %v1125
        %1142 = vmatprep.subr.mxu0 %v1128
        %1143 = vmatpush1.msra.mxu0 %v1127
        %1144 = vmatprep.subr.mxu0 %v1130
        %1145 = vmatpush1.msra.mxu0 %v1129
        %1146 = vmatprep.subr.mxu0 0.0
        %1147 = vmatpush1.msra.mxu0 0.0
        %1148 = vmatprep.subr.mxu0 0.0
        %1149 = vmatpush1.msra.mxu0 0.0
        %1150 = vmatprep.subr.mxu0 0.0
        %1151 = vmatpush1.msra.mxu0 0.0
        %1152 = vmatprep.subr.mxu0 0.0
        %1153 = vmatpush1.msra.mxu0 0.0
        %1154 = vmatprep.subr.mxu0 0.0
        %1155 = vmatpush1.msra.mxu0 0.0
        %1156 = vmatprep.subr.mxu0 0.0
        %1157 = vmatpush1.msra.mxu0 0.0
        %1158 = vmatprep.subr.mxu0 0.0
        %1159 = vmatpush1.msra.mxu0 0.0
        %1160 = vmatprep.subr.mxu0 0.0
        %1161 = vmatpush1.msra.mxu0 0.0
        %1162 = vmatprep.subr.mxu0 0.0
        %1163 = vmatpush1.msra.mxu0 0.0
        %1164 = vmatprep.subr.mxu0 0.0
        %1165 = vmatpush1.msra.mxu0 0.0
        %1166 = vmatprep.subr.mxu0 0.0
        %1167 = vmatpush1.msra.mxu0 0.0
        %1168 = vmatprep.subr.mxu0 0.0
        %1169 = vmatpush1.msra.mxu0 0.0
        %1170 = vmatprep.subr.mxu0 0.0
        %1171 = vmatpush1.msra.mxu0 0.0
        %1172 = vmatprep.subr.mxu0 0.0
        %1173 = vmatpush1.msra.mxu0 0.0
        %1174 = vmatprep.subr.mxu0 0.0
        %1175 = vmatpush1.msra.mxu0 0.0
        %1176 = vmatprep.subr.mxu0 0.0
        %1177 = vmatpush1.msra.mxu0 0.0
        %1178 = vmatprep.subr.mxu0 0.0
        %1179 = vmatpush1.msra.mxu0 0.0
        %1180 = vmatprep.subr.mxu0 0.0
        %1181 = vmatpush1.msra.mxu0 0.0
        %1182 = vmatprep.subr.mxu0 0.0
        %1183 = vmatpush1.msra.mxu0 0.0
        %1184 = vmatprep.subr.mxu0 0.0
        %1185 = vmatpush1.msra.mxu0 0.0
        %1186 = vmatprep.subr.mxu0 0.0
        %1187 = vmatpush1.msra.mxu0 0.0
        %1188 = vmatprep.subr.mxu0 0.0
        %1189 = vmatpush1.msra.mxu0 0.0
        %1190 = vmatprep.subr.mxu0 0.0
        %1191 = vmatpush1.msra.mxu0 0.0
        %1192 = vmatprep.subr.mxu0 0.0
        %1193 = vmatpush1.msra.mxu0 0.0
        %1194 = vmatprep.subr.mxu0 0.0
        %1195 = vmatpush1.msra.mxu0 0.0
        %1196 = vmatprep.subr.mxu0 0.0
        %1197 = vmatpush1.msra.mxu0 0.0
        %1198 = vmatprep.subr.mxu0 0.0
        %1199 = vmatpush1.msra.mxu0 0.0
        %1200 = vmatprep.subr.mxu0 0.0
        %1201 = vmatpush1.msra.mxu0 0.0
        %1202 = vmatprep.subr.mxu0 0.0
        %1203 = vmatpush1.msra.mxu0 0.0
        %1204 = vmatprep.mubr.f32.mxu0 0.0
        %1205 = vmatmul.mubr.f32.gmra.mrb[0].mxu0 %v1135
        %v1206 = vpop.f32.mrb[0].mxu0
        %v1207 = vadd.f32 0.0, %v1206
        %v1208 = vpop.f32.mrb[0].mxu0
        %v1209 = vadd.f32 0.0, %v1208
        %1210 = vmatprep.mubr.f32.mxu0 0.0
        %1211 = vmatmul.mubr.f32.gmra.mrb[0].mxu0 %v1138
        %v1212 = vpop.f32.mrb[0].mxu0
        %v1213 = vadd.f32 0.0, %v1212
        %v1214 = vpop.f32.mrb[0].mxu0
        %v1215 = vadd.f32 0.0, %v1214
        %1216 = vdwg.mxu0
        %s1217 = scalar_lea.vmem %s3, 16
        %v1218 = vld [vmem:[%s1217] sm:$0xff]
        %v1219 = vld [vmem:[%s1217 + $0x8] sm:$0xf]
        %v1221 = vsel %vm1133, %v1218, 0
        %v1224 = vsel %vm1133, %v1219, 0
        %1226 = vmatprep.subr.mxu0 %v1126
        %1227 = vmatpush1.msra.mxu0 %v1125
        %1228 = vmatprep.subr.mxu0 %v1128
        %1229 = vmatpush1.msra.mxu0 %v1127
        %1230 = vmatprep.subr.mxu0 %v1130
        %1231 = vmatpush1.msra.mxu0 %v1129
        %1232 = vmatprep.subr.mxu0 0.0
        %1233 = vmatpush1.msra.mxu0 0.0
        %1234 = vmatprep.subr.mxu0 0.0
        %1235 = vmatpush1.msra.mxu0 0.0
        %1236 = vmatprep.subr.mxu0 0.0
        %1237 = vmatpush1.msra.mxu0 0.0
        %1238 = vmatprep.subr.mxu0 0.0
        %1239 = vmatpush1.msra.mxu0 0.0
        %1240 = vmatprep.subr.mxu0 0.0
        %1241 = vmatpush1.msra.mxu0 0.0
        %1242 = vmatprep.subr.mxu0 0.0
        %1243 = vmatpush1.msra.mxu0 0.0
        %1244 = vmatprep.subr.mxu0 0.0
        %1245 = vmatpush1.msra.mxu0 0.0
        %1246 = vmatprep.subr.mxu0 0.0
        %1247 = vmatpush1.msra.mxu0 0.0
        %1248 = vmatprep.subr.mxu0 0.0
        %1249 = vmatpush1.msra.mxu0 0.0
        %1250 = vmatprep.subr.mxu0 0.0
        %1251 = vmatpush1.msra.mxu0 0.0
        %1252 = vmatprep.subr.mxu0 0.0
        %1253 = vmatpush1.msra.mxu0 0.0
        %1254 = vmatprep.subr.mxu0 0.0
        %1255 = vmatpush1.msra.mxu0 0.0
        %1256 = vmatprep.subr.mxu0 0.0
        %1257 = vmatpush1.msra.mxu0 0.0
        %1258 = vmatprep.subr.mxu0 0.0
        %1259 = vmatpush1.msra.mxu0 0.0
        %1260 = vmatprep.subr.mxu0 0.0
        %1261 = vmatpush1.msra.mxu0 0.0
        %1262 = vmatprep.subr.mxu0 0.0
        %1263 = vmatpush1.msra.mxu0 0.0
        %1264 = vmatprep.subr.mxu0 0.0
        %1265 = vmatpush1.msra.mxu0 0.0
        %1266 = vmatprep.subr.mxu0 0.0
        %1267 = vmatpush1.msra.mxu0 0.0
        %1268 = vmatprep.subr.mxu0 0.0
        %1269 = vmatpush1.msra.mxu0 0.0
        %1270 = vmatprep.subr.mxu0 0.0
        %1271 = vmatpush1.msra.mxu0 0.0
        %1272 = vmatprep.subr.mxu0 0.0
        %1273 = vmatpush1.msra.mxu0 0.0
        %1274 = vmatprep.subr.mxu0 0.0
        %1275 = vmatpush1.msra.mxu0 0.0
        %1276 = vmatprep.subr.mxu0 0.0
        %1277 = vmatpush1.msra.mxu0 0.0
        %1278 = vmatprep.subr.mxu0 0.0
        %1279 = vmatpush1.msra.mxu0 0.0
        %1280 = vmatprep.subr.mxu0 0.0
        %1281 = vmatpush1.msra.mxu0 0.0
        %1282 = vmatprep.subr.mxu0 0.0
        %1283 = vmatpush1.msra.mxu0 0.0
        %1284 = vmatprep.subr.mxu0 0.0
        %1285 = vmatpush1.msra.mxu0 0.0
        %1286 = vmatprep.subr.mxu0 0.0
        %1287 = vmatpush1.msra.mxu0 0.0
        %1288 = vmatprep.subr.mxu0 0.0
        %1289 = vmatpush1.msra.mxu0 0.0
        %1290 = vmatprep.mubr.f32.mxu0 0.0
        %1291 = vmatmul.mubr.f32.gmra.mrb[0].mxu0 %v1221
        %v1292 = vpop.f32.mrb[0].mxu0
        %v1293 = vadd.f32 0.0, %v1292
        %v1294 = vpop.f32.mrb[0].mxu0
        %v1295 = vadd.f32 0.0, %v1294
        %1296 = vmatprep.mubr.f32.mxu0 0.0
        %1297 = vmatmul.mubr.f32.gmra.mrb[0].mxu0 %v1224
        %v1298 = vpop.f32.mrb[0].mxu0
        %v1299 = vadd.f32 0.0, %v1298
        %v1300 = vpop.f32.mrb[0].mxu0
        %v1301 = vadd.f32 0.0, %v1300
        %1302 = vdwg.mxu0
        %v1303 = vmax.f32 %v1207, %v1293
        %v1304 = vmax.f32 %v1209, %v1295
        %v1305 = vmax.f32 %v1213, %v1299
        %v1306 = vmax.f32 %v1215, %v1301
        %v1307 = vld [vmem:[%s4] sm:$0xff]
        %v1308 = vld [vmem:[%s4 + $0x8] sm:$0xff]
        %v1309 = vld [vmem:[%s4 + $0x10] sm:$0xff]
        %v1310 = vld [vmem:[%s4 + $0x18] sm:$0xff]
        %v1311 = vld [vmem:[%s4 + $0x20] sm:$0xff]
        %v1312 = vld [vmem:[%s4 + $0x28] sm:$0xff]
        %v1313 = vld [vmem:[%s4 + $0x30] sm:$0xff]
        %v1314 = vld [vmem:[%s4 + $0x38] sm:$0xff]
        %v1315 = vld [vmem:[%s4 + $0x40] sm:$0xff]
        %v1316 = vld [vmem:[%s4 + $0x48] sm:$0xff]
        %v1317 = vld [vmem:[%s4 + $0x50] sm:$0xff]
        %v1318 = vld [vmem:[%s4 + $0x58] sm:$0xff]
        %v1319 = vld [vmem:[%s4 + $0x60] sm:$0xff]
        %v1320 = vld [vmem:[%s4 + $0x68] sm:$0xff]
        %v1321 = vld [vmem:[%s4 + $0x70] sm:$0xff]
        %v1322 = vld [vmem:[%s4 + $0x78] sm:$0xff]
        %v1323 = vld [vmem:[%s4 + $0x80] sm:$0xff]
        %v1324 = vld [vmem:[%s4 + $0x88] sm:$0xff]
        %vm1325 = vcmask 130048
        %v1327 = vsel %vm1325, %v1304, 0
        %v1330 = vsel %vm1325, %v1306, 0
        %1332 = vmatprep.subr.mxu0 0.0
        %1333 = vmatpush1.msra.mxu0 %v1307
        %1334 = vmatprep.subr.mxu0 0.0
        %1335 = vmatpush1.msra.mxu0 %v1308
        %1336 = vmatprep.subr.mxu0 0.0
        %1337 = vmatpush1.msra.mxu0 %v1309
        %1338 = vmatprep.subr.mxu0 0.0
        %1339 = vmatpush1.msra.mxu0 %v1310
        %1340 = vmatprep.subr.mxu0 0.0
        %1341 = vmatpush1.msra.mxu0 %v1311
        %1342 = vmatprep.subr.mxu0 0.0
        %1343 = vmatpush1.msra.mxu0 %v1312
        %1344 = vmatprep.subr.mxu0 0.0
        %1345 = vmatpush1.msra.mxu0 %v1313
        %1346 = vmatprep.subr.mxu0 0.0
        %1347 = vmatpush1.msra.mxu0 %v1314
        %1348 = vmatprep.subr.mxu0 0.0
        %1349 = vmatpush1.msra.mxu0 %v1315
        %1350 = vmatprep.subr.mxu0 0.0
        %1351 = vmatpush1.msra.mxu0 %v1316
        %1352 = vmatprep.subr.mxu0 0.0
        %1353 = vmatpush1.msra.mxu0 %v1317
        %1354 = vmatprep.subr.mxu0 0.0
        %1355 = vmatpush1.msra.mxu0 %v1318
        %1356 = vmatprep.subr.mxu0 0.0
        %1357 = vmatpush1.msra.mxu0 %v1319
        %1358 = vmatprep.subr.mxu0 0.0
        %1359 = vmatpush1.msra.mxu0 %v1320
        %1360 = vmatprep.subr.mxu0 0.0
        %1361 = vmatpush1.msra.mxu0 %v1321
        %1362 = vmatprep.subr.mxu0 0.0
        %1363 = vmatpush1.msra.mxu0 %v1322
        %1364 = vmatprep.subr.mxu0 0.0
        %1365 = vmatpush1.msra.mxu0 %v1323
        %1366 = vmatprep.subr.mxu0 0.0
        %1367 = vmatpush1.msra.mxu0 %v1324
        %1368 = vmatprep.subr.mxu0 0.0
        %1369 = vmatpush1.msra.mxu0 0.0
        %1370 = vmatprep.subr.mxu0 0.0
        %1371 = vmatpush1.msra.mxu0 0.0
        %1372 = vmatprep.subr.mxu0 0.0
        %1373 = vmatpush1.msra.mxu0 0.0
        %1374 = vmatprep.subr.mxu0 0.0
        %1375 = vmatpush1.msra.mxu0 0.0
        %1376 = vmatprep.subr.mxu0 0.0
        %1377 = vmatpush1.msra.mxu0 0.0
        %1378 = vmatprep.subr.mxu0 0.0
        %1379 = vmatpush1.msra.mxu0 0.0
        %1380 = vmatprep.subr.mxu0 0.0
        %1381 = vmatpush1.msra.mxu0 0.0
        %1382 = vmatprep.subr.mxu0 0.0
        %1383 = vmatpush1.msra.mxu0 0.0
        %1384 = vmatprep.subr.mxu0 0.0
        %1385 = vmatpush1.msra.mxu0 0.0
        %1386 = vmatprep.subr.mxu0 0.0
        %1387 = vmatpush1.msra.mxu0 0.0
        %1388 = vmatprep.subr.mxu0 0.0
        %1389 = vmatpush1.msra.mxu0 0.0
        %1390 = vmatprep.subr.mxu0 0.0
        %1391 = vmatpush1.msra.mxu0 0.0
        %1392 = vmatprep.subr.mxu0 0.0
        %1393 = vmatpush1.msra.mxu0 0.0
        %1394 = vmatprep.subr.mxu0 0.0
        %1395 = vmatpush1.msra.mxu0 0.0
        %1396 = vmatprep.mubr.f32.mxu0 %v1327
        %1397 = vmatmul.mubr.f32.gmra.mrb[0].mxu0 %v1303
        %v1398 = vpop.f32.mrb[0].mxu0
        %v1399 = vadd.f32 0.0, %v1398
        %v1400 = vpop.f32.mrb[0].mxu0
        %1401 = vmatprep.mubr.f32.mxu0 %v1330
        %1402 = vmatmul.mubr.f32.gmra.mrb[0].mxu0 %v1305
        %v1403 = vpop.f32.mrb[0].mxu0
        %v1404 = vadd.f32 0.0, %v1403
        %v1405 = vpop.f32.mrb[0].mxu0
        %1406 = vdwg.mxu0
        %s1407 = scalar_lea.vmem %s4, 144
        %v1408 = vld [vmem:[%s1407] sm:$0xff]
        %v1409 = vld [vmem:[%s1407 + $0x8] sm:$0xff]
        %v1410 = vld [vmem:[%s1407 + $0x10] sm:$0xff]
        %v1411 = vld [vmem:[%s1407 + $0x18] sm:$0xff]
        %v1412 = vld [vmem:[%s1407 + $0x20] sm:$0xff]
        %v1413 = vld [vmem:[%s1407 + $0x28] sm:$0xff]
        %v1414 = vld [vmem:[%s1407 + $0x30] sm:$0xff]
        %v1415 = vld [vmem:[%s1407 + $0x38] sm:$0xff]
        %v1416 = vld [vmem:[%s1407 + $0x40] sm:$0xff]
        %v1417 = vld [vmem:[%s1407 + $0x48] sm:$0xff]
        %v1418 = vld [vmem:[%s1407 + $0x50] sm:$0xff]
        %v1419 = vld [vmem:[%s1407 + $0x58] sm:$0xff]
        %v1420 = vld [vmem:[%s1407 + $0x60] sm:$0xff]
        %v1421 = vld [vmem:[%s1407 + $0x68] sm:$0xff]
        %v1422 = vld [vmem:[%s1407 + $0x70] sm:$0xff]
        %v1423 = vld [vmem:[%s1407 + $0x78] sm:$0xff]
        %v1424 = vld [vmem:[%s1407 + $0x80] sm:$0xff]
        %v1425 = vld [vmem:[%s1407 + $0x88] sm:$0xff]
        %1426 = vmatprep.subr.mxu0 0.0
        %1427 = vmatpush1.msra.mxu0 %v1408
        %1428 = vmatprep.subr.mxu0 0.0
        %1429 = vmatpush1.msra.mxu0 %v1409
        %1430 = vmatprep.subr.mxu0 0.0
        %1431 = vmatpush1.msra.mxu0 %v1410
        %1432 = vmatprep.subr.mxu0 0.0
        %1433 = vmatpush1.msra.mxu0 %v1411
        %1434 = vmatprep.subr.mxu0 0.0
        %1435 = vmatpush1.msra.mxu0 %v1412
        %1436 = vmatprep.subr.mxu0 0.0
        %1437 = vmatpush1.msra.mxu0 %v1413
        %1438 = vmatprep.subr.mxu0 0.0
        %1439 = vmatpush1.msra.mxu0 %v1414
        %1440 = vmatprep.subr.mxu0 0.0
        %1441 = vmatpush1.msra.mxu0 %v1415
        %1442 = vmatprep.subr.mxu0 0.0
        %1443 = vmatpush1.msra.mxu0 %v1416
        %1444 = vmatprep.subr.mxu0 0.0
        %1445 = vmatpush1.msra.mxu0 %v1417
        %1446 = vmatprep.subr.mxu0 0.0
        %1447 = vmatpush1.msra.mxu0 %v1418
        %1448 = vmatprep.subr.mxu0 0.0
        %1449 = vmatpush1.msra.mxu0 %v1419
        %1450 = vmatprep.subr.mxu0 0.0
        %1451 = vmatpush1.msra.mxu0 %v1420
        %1452 = vmatprep.subr.mxu0 0.0
        %1453 = vmatpush1.msra.mxu0 %v1421
        %1454 = vmatprep.subr.mxu0 0.0
        %1455 = vmatpush1.msra.mxu0 %v1422
        %1456 = vmatprep.subr.mxu0 0.0
        %1457 = vmatpush1.msra.mxu0 %v1423
        %1458 = vmatprep.subr.mxu0 0.0
        %1459 = vmatpush1.msra.mxu0 %v1424
        %1460 = vmatprep.subr.mxu0 0.0
        %1461 = vmatpush1.msra.mxu0 %v1425
        %1462 = vmatprep.subr.mxu0 0.0
        %1463 = vmatpush1.msra.mxu0 0.0
        %1464 = vmatprep.subr.mxu0 0.0
        %1465 = vmatpush1.msra.mxu0 0.0
        %1466 = vmatprep.subr.mxu0 0.0
        %1467 = vmatpush1.msra.mxu0 0.0
        %1468 = vmatprep.subr.mxu0 0.0
        %1469 = vmatpush1.msra.mxu0 0.0
        %1470 = vmatprep.subr.mxu0 0.0
        %1471 = vmatpush1.msra.mxu0 0.0
        %1472 = vmatprep.subr.mxu0 0.0
        %1473 = vmatpush1.msra.mxu0 0.0
        %1474 = vmatprep.subr.mxu0 0.0
        %1475 = vmatpush1.msra.mxu0 0.0
        %1476 = vmatprep.subr.mxu0 0.0
        %1477 = vmatpush1.msra.mxu0 0.0
        %1478 = vmatprep.subr.mxu0 0.0
        %1479 = vmatpush1.msra.mxu0 0.0
        %1480 = vmatprep.subr.mxu0 0.0
        %1481 = vmatpush1.msra.mxu0 0.0
        %1482 = vmatprep.subr.mxu0 0.0
        %1483 = vmatpush1.msra.mxu0 0.0
        %1484 = vmatprep.subr.mxu0 0.0
        %1485 = vmatpush1.msra.mxu0 0.0
        %1486 = vmatprep.subr.mxu0 0.0
        %1487 = vmatpush1.msra.mxu0 0.0
        %1488 = vmatprep.subr.mxu0 0.0
        %1489 = vmatpush1.msra.mxu0 0.0
        %1490 = vmatprep.mubr.f32.mxu0 %v1327
        %1491 = vmatmul.mubr.f32.gmra.mrb[0].mxu0 %v1303
        %v1492 = vpop.f32.mrb[0].mxu0
        %v1493 = vadd.f32 0.0, %v1492
        %v1494 = vpop.f32.mrb[0].mxu0
        %1495 = vmatprep.mubr.f32.mxu0 %v1330
        %1496 = vmatmul.mubr.f32.gmra.mrb[0].mxu0 %v1305
        %v1497 = vpop.f32.mrb[0].mxu0
        %v1498 = vadd.f32 0.0, %v1497
        %v1499 = vpop.f32.mrb[0].mxu0
        %1500 = vdwg.mxu0
        %v1501 = vmax.f32 %v1399, %v1493
        %v1502 = vmax.f32 %v1404, %v1498
        %v1503 = vld [vmem:[%s5] sm:$0xff]
        %v1504 = vld [vmem:[%s5 + $0x8] sm:$0xff]
        %v1505 = vld [vmem:[%s5 + $0x10] sm:$0xff]
        %v1506 = vld [vmem:[%s5 + $0x18] sm:$0xff]
        %v1507 = vld [vmem:[%s5 + $0x20] sm:$0xff]
        %v1508 = vld [vmem:[%s5 + $0x28] sm:$0xff]
        %v1509 = vld [vmem:[%s5 + $0x30] sm:$0xff]
        %v1510 = vld [vmem:[%s5 + $0x38] sm:$0xff]
        %v1511 = vld [vmem:[%s5 + $0x40] sm:$0xff]
        %s1512 = scalar_lea.vmem %s5, 72
        %v1513 = vld [vmem:[%s1512] sm:$0xff]
        %v1514 = vld [vmem:[%s1512 + $0x8] sm:$0xff]
        %v1515 = vld [vmem:[%s1512 + $0x10] sm:$0xff]
        %v1516 = vld [vmem:[%s1512 + $0x18] sm:$0xff]
        %v1517 = vld [vmem:[%s1512 + $0x20] sm:$0xff]
        %v1518 = vld [vmem:[%s1512 + $0x28] sm:$0xff]
        %v1519 = vld [vmem:[%s1512 + $0x30] sm:$0xff]
        %v1520 = vld [vmem:[%s1512 + $0x38] sm:$0xff]
        %v1521 = vld [vmem:[%s1512 + $0x40] sm:$0xff]
        %v1524 = vrot.slane %v1501, 1
        %v1525 = vrot.slane %v1502, 1
        %v1526 = vsel %vm554, %v1524, %v1525
        %vm1527 = vcmask 588800
        %v1528 = vsel %vm1527, %v1526, 0
        %1530 = vmatprep.subr.mxu0 0.0
        %1531 = vmatpush1.msra.mxu0 %v1513
        %1532 = vmatprep.subr.mxu0 0.0
        %1533 = vmatpush1.msra.mxu0 %v1514
        %1534 = vmatprep.subr.mxu0 0.0
        %1535 = vmatpush1.msra.mxu0 %v1515
        %1536 = vmatprep.subr.mxu0 0.0
        %1537 = vmatpush1.msra.mxu0 %v1516
        %1538 = vmatprep.subr.mxu0 0.0
        %1539 = vmatpush1.msra.mxu0 %v1517
        %1540 = vmatprep.subr.mxu0 0.0
        %1541 = vmatpush1.msra.mxu0 %v1518
        %1542 = vmatprep.subr.mxu0 0.0
        %1543 = vmatpush1.msra.mxu0 %v1519
        %1544 = vmatprep.subr.mxu0 0.0
        %1545 = vmatpush1.msra.mxu0 %v1520
        %1546 = vmatprep.subr.mxu0 0.0
        %1547 = vmatpush1.msra.mxu0 %v1521
        %1548 = vmatprep.subr.mxu0 0.0
        %1549 = vmatpush1.msra.mxu0 0.0
        %1550 = vmatprep.subr.mxu0 0.0
        %1551 = vmatpush1.msra.mxu0 0.0
        %1552 = vmatprep.subr.mxu0 0.0
        %1553 = vmatpush1.msra.mxu0 0.0
        %1554 = vmatprep.subr.mxu0 0.0
        %1555 = vmatpush1.msra.mxu0 0.0
        %1556 = vmatprep.subr.mxu0 0.0
        %1557 = vmatpush1.msra.mxu0 0.0
        %1558 = vmatprep.subr.mxu0 0.0
        %1559 = vmatpush1.msra.mxu0 0.0
        %1560 = vmatprep.subr.mxu0 0.0
        %1561 = vmatpush1.msra.mxu0 0.0
        %1562 = vmatprep.subr.mxu0 0.0
        %1563 = vmatpush1.msra.mxu0 0.0
        %1564 = vmatprep.subr.mxu0 0.0
        %1565 = vmatpush1.msra.mxu0 0.0
        %1566 = vmatprep.subr.mxu0 0.0
        %1567 = vmatpush1.msra.mxu0 0.0
        %1568 = vmatprep.subr.mxu0 0.0
        %1569 = vmatpush1.msra.mxu0 0.0
        %1570 = vmatprep.subr.mxu0 0.0
        %1571 = vmatpush1.msra.mxu0 0.0
        %1572 = vmatprep.subr.mxu0 0.0
        %1573 = vmatpush1.msra.mxu0 0.0
        %1574 = vmatprep.subr.mxu0 0.0
        %1575 = vmatpush1.msra.mxu0 0.0
        %1576 = vmatprep.subr.mxu0 0.0
        %1577 = vmatpush1.msra.mxu0 0.0
        %1578 = vmatprep.subr.mxu0 0.0
        %1579 = vmatpush1.msra.mxu0 0.0
        %1580 = vmatprep.subr.mxu0 0.0
        %1581 = vmatpush1.msra.mxu0 0.0
        %1582 = vmatprep.subr.mxu0 0.0
        %1583 = vmatpush1.msra.mxu0 0.0
        %1584 = vmatprep.subr.mxu0 0.0
        %1585 = vmatpush1.msra.mxu0 0.0
        %1586 = vmatprep.subr.mxu0 0.0
        %1587 = vmatpush1.msra.mxu0 0.0
        %1588 = vmatprep.subr.mxu0 0.0
        %1589 = vmatpush1.msra.mxu0 0.0
        %1590 = vmatprep.subr.mxu0 0.0
        %1591 = vmatpush1.msra.mxu0 0.0
        %1592 = vmatprep.subr.mxu0 0.0
        %1593 = vmatpush1.msra.mxu0 0.0
        %1594 = vmatprep.mubr.f32.mxu0 0.0
        %1595 = vmatmul.mubr.f32.gmra.mrb[0].mxu0 %v1528
        %v1596 = vpop.f32.mrb[0].mxu0
        %v1597 = vadd.f32 0.0, %v1596
        %v1598 = vpop.f32.mrb[0].mxu0
        %1599 = vdwg.mxu0
        %v1600 = vsel %vm1527, %v1501, 0
        %1602 = vmatprep.subr.mxu0 0.0
        %1603 = vmatpush1.msra.mxu0 %v1503
        %1604 = vmatprep.subr.mxu0 0.0
        %1605 = vmatpush1.msra.mxu0 %v1504
        %1606 = vmatprep.subr.mxu0 0.0
        %1607 = vmatpush1.msra.mxu0 %v1505
        %1608 = vmatprep.subr.mxu0 0.0
        %1609 = vmatpush1.msra.mxu0 %v1506
        %1610 = vmatprep.subr.mxu0 0.0
        %1611 = vmatpush1.msra.mxu0 %v1507
        %1612 = vmatprep.subr.mxu0 0.0
        %1613 = vmatpush1.msra.mxu0 %v1508
        %1614 = vmatprep.subr.mxu0 0.0
        %1615 = vmatpush1.msra.mxu0 %v1509
        %1616 = vmatprep.subr.mxu0 0.0
        %1617 = vmatpush1.msra.mxu0 %v1510
        %1618 = vmatprep.subr.mxu0 0.0
        %1619 = vmatpush1.msra.mxu0 %v1511
        %1620 = vmatprep.subr.mxu0 0.0
        %1621 = vmatpush1.msra.mxu0 0.0
        %1622 = vmatprep.subr.mxu0 0.0
        %1623 = vmatpush1.msra.mxu0 0.0
        %1624 = vmatprep.subr.mxu0 0.0
        %1625 = vmatpush1.msra.mxu0 0.0
        %1626 = vmatprep.subr.mxu0 0.0
        %1627 = vmatpush1.msra.mxu0 0.0
        %1628 = vmatprep.subr.mxu0 0.0
        %1629 = vmatpush1.msra.mxu0 0.0
        %1630 = vmatprep.subr.mxu0 0.0
        %1631 = vmatpush1.msra.mxu0 0.0
        %1632 = vmatprep.subr.mxu0 0.0
        %1633 = vmatpush1.msra.mxu0 0.0
        %1634 = vmatprep.subr.mxu0 0.0
        %1635 = vmatpush1.msra.mxu0 0.0
        %1636 = vmatprep.subr.mxu0 0.0
        %1637 = vmatpush1.msra.mxu0 0.0
        %1638 = vmatprep.subr.mxu0 0.0
        %1639 = vmatpush1.msra.mxu0 0.0
        %1640 = vmatprep.subr.mxu0 0.0
        %1641 = vmatpush1.msra.mxu0 0.0
        %1642 = vmatprep.subr.mxu0 0.0
        %1643 = vmatpush1.msra.mxu0 0.0
        %1644 = vmatprep.subr.mxu0 0.0
        %1645 = vmatpush1.msra.mxu0 0.0
        %1646 = vmatprep.subr.mxu0 0.0
        %1647 = vmatpush1.msra.mxu0 0.0
        %1648 = vmatprep.subr.mxu0 0.0
        %1649 = vmatpush1.msra.mxu0 0.0
        %1650 = vmatprep.subr.mxu0 0.0
        %1651 = vmatpush1.msra.mxu0 0.0
        %1652 = vmatprep.subr.mxu0 0.0
        %1653 = vmatpush1.msra.mxu0 0.0
        %1654 = vmatprep.subr.mxu0 0.0
        %1655 = vmatpush1.msra.mxu0 0.0
        %1656 = vmatprep.subr.mxu0 0.0
        %1657 = vmatpush1.msra.mxu0 0.0
        %1658 = vmatprep.subr.mxu0 0.0
        %1659 = vmatpush1.msra.mxu0 0.0
        %1660 = vmatprep.subr.mxu0 0.0
        %1661 = vmatpush1.msra.mxu0 0.0
        %1662 = vmatprep.subr.mxu0 0.0
        %1663 = vmatpush1.msra.mxu0 0.0
        %1664 = vmatprep.subr.mxu0 0.0
        %1665 = vmatpush1.msra.mxu0 0.0
        %1666 = vmatprep.mubr.f32.mxu0 0.0
        %1667 = vmatmul.mubr.f32.gmra.mrb[0].mxu0 %v1600
        %v1668 = vpop.f32.mrb[0].mxu0
        %v1669 = vadd.f32 %v1597, %v1668
        %v1670 = vpop.f32.mrb[0].mxu0
        %1671 = vdwg.mxu0
        %s1672 = scalar_lea.vmem %s5, 144
        %v1673 = vld [vmem:[%s1672] sm:$0xff]
        %v1674 = vld [vmem:[%s1672 + $0x8] sm:$0xff]
        %v1675 = vld [vmem:[%s1672 + $0x10] sm:$0xff]
        %v1676 = vld [vmem:[%s1672 + $0x18] sm:$0xff]
        %v1677 = vld [vmem:[%s1672 + $0x20] sm:$0xff]
        %v1678 = vld [vmem:[%s1672 + $0x28] sm:$0xff]
        %v1679 = vld [vmem:[%s1672 + $0x30] sm:$0xff]
        %v1680 = vld [vmem:[%s1672 + $0x38] sm:$0xff]
        %v1681 = vld [vmem:[%s1672 + $0x40] sm:$0xff]
        %v1682 = vrot.slane %v1501, 2
        %v1683 = vrot.slane %v1502, 2
        %v1684 = vsel %vm763, %v1682, %v1683
        %v1685 = vsel %vm1527, %v1684, 0
        %1687 = vmatprep.subr.mxu0 0.0
        %1688 = vmatpush1.msra.mxu0 %v1673
        %1689 = vmatprep.subr.mxu0 0.0
        %1690 = vmatpush1.msra.mxu0 %v1674
        %1691 = vmatprep.subr.mxu0 0.0
        %1692 = vmatpush1.msra.mxu0 %v1675
        %1693 = vmatprep.subr.mxu0 0.0
        %1694 = vmatpush1.msra.mxu0 %v1676
        %1695 = vmatprep.subr.mxu0 0.0
        %1696 = vmatpush1.msra.mxu0 %v1677
        %1697 = vmatprep.subr.mxu0 0.0
        %1698 = vmatpush1.msra.mxu0 %v1678
        %1699 = vmatprep.subr.mxu0 0.0
        %1700 = vmatpush1.msra.mxu0 %v1679
        %1701 = vmatprep.subr.mxu0 0.0
        %1702 = vmatpush1.msra.mxu0 %v1680
        %1703 = vmatprep.subr.mxu0 0.0
        %1704 = vmatpush1.msra.mxu0 %v1681
        %1705 = vmatprep.subr.mxu0 0.0
        %1706 = vmatpush1.msra.mxu0 0.0
        %1707 = vmatprep.subr.mxu0 0.0
        %1708 = vmatpush1.msra.mxu0 0.0
        %1709 = vmatprep.subr.mxu0 0.0
        %1710 = vmatpush1.msra.mxu0 0.0
        %1711 = vmatprep.subr.mxu0 0.0
        %1712 = vmatpush1.msra.mxu0 0.0
        %1713 = vmatprep.subr.mxu0 0.0
        %1714 = vmatpush1.msra.mxu0 0.0
        %1715 = vmatprep.subr.mxu0 0.0
        %1716 = vmatpush1.msra.mxu0 0.0
        %1717 = vmatprep.subr.mxu0 0.0
        %1718 = vmatpush1.msra.mxu0 0.0
        %1719 = vmatprep.subr.mxu0 0.0
        %1720 = vmatpush1.msra.mxu0 0.0
        %1721 = vmatprep.subr.mxu0 0.0
        %1722 = vmatpush1.msra.mxu0 0.0
        %1723 = vmatprep.subr.mxu0 0.0
        %1724 = vmatpush1.msra.mxu0 0.0
        %1725 = vmatprep.subr.mxu0 0.0
        %1726 = vmatpush1.msra.mxu0 0.0
        %1727 = vmatprep.subr.mxu0 0.0
        %1728 = vmatpush1.msra.mxu0 0.0
        %1729 = vmatprep.subr.mxu0 0.0
        %1730 = vmatpush1.msra.mxu0 0.0
        %1731 = vmatprep.subr.mxu0 0.0
        %1732 = vmatpush1.msra.mxu0 0.0
        %1733 = vmatprep.subr.mxu0 0.0
        %1734 = vmatpush1.msra.mxu0 0.0
        %1735 = vmatprep.subr.mxu0 0.0
        %1736 = vmatpush1.msra.mxu0 0.0
        %1737 = vmatprep.subr.mxu0 0.0
        %1738 = vmatpush1.msra.mxu0 0.0
        %1739 = vmatprep.subr.mxu0 0.0
        %1740 = vmatpush1.msra.mxu0 0.0
        %1741 = vmatprep.subr.mxu0 0.0
        %1742 = vmatpush1.msra.mxu0 0.0
        %1743 = vmatprep.subr.mxu0 0.0
        %1744 = vmatpush1.msra.mxu0 0.0
        %1745 = vmatprep.subr.mxu0 0.0
        %1746 = vmatpush1.msra.mxu0 0.0
        %1747 = vmatprep.subr.mxu0 0.0
        %1748 = vmatpush1.msra.mxu0 0.0
        %1749 = vmatprep.subr.mxu0 0.0
        %1750 = vmatpush1.msra.mxu0 0.0
        %1751 = vmatprep.mubr.f32.mxu0 0.0
        %1752 = vmatmul.mubr.f32.gmra.mrb[0].mxu0 %v1685
        %v1753 = vpop.f32.mrb[0].mxu0
        %v1754 = vadd.f32 0.0, %v1753
        %v1755 = vpop.f32.mrb[0].mxu0
        %1756 = vdwg.mxu0
        %v1757 = vadd.f32 %v1669, %v1754
        %s1758 = scalar_lea.vmem %s5, 216
        %v1759 = vld [vmem:[%s1758] sm:$0xff]
        %v1760 = vld [vmem:[%s1758 + $0x8] sm:$0xff]
        %v1761 = vld [vmem:[%s1758 + $0x10] sm:$0xff]
        %v1762 = vld [vmem:[%s1758 + $0x18] sm:$0xff]
        %v1763 = vld [vmem:[%s1758 + $0x20] sm:$0xff]
        %v1764 = vld [vmem:[%s1758 + $0x28] sm:$0xff]
        %v1765 = vld [vmem:[%s1758 + $0x30] sm:$0xff]
        %v1766 = vld [vmem:[%s1758 + $0x38] sm:$0xff]
        %v1767 = vld [vmem:[%s1758 + $0x40] sm:$0xff]
        %v1768 = vrot.slane %v1501, 3
        %v1769 = vrot.slane %v1502, 3
        %v1770 = vsel %vm881, %v1768, %v1769
        %v1771 = vsel %vm1527, %v1770, 0
        %1773 = vmatprep.subr.mxu0 0.0
        %1774 = vmatpush1.msra.mxu0 %v1759
        %1775 = vmatprep.subr.mxu0 0.0
        %1776 = vmatpush1.msra.mxu0 %v1760
        %1777 = vmatprep.subr.mxu0 0.0
        %1778 = vmatpush1.msra.mxu0 %v1761
        %1779 = vmatprep.subr.mxu0 0.0
        %1780 = vmatpush1.msra.mxu0 %v1762
        %1781 = vmatprep.subr.mxu0 0.0
        %1782 = vmatpush1.msra.mxu0 %v1763
        %1783 = vmatprep.subr.mxu0 0.0
        %1784 = vmatpush1.msra.mxu0 %v1764
        %1785 = vmatprep.subr.mxu0 0.0
        %1786 = vmatpush1.msra.mxu0 %v1765
        %1787 = vmatprep.subr.mxu0 0.0
        %1788 = vmatpush1.msra.mxu0 %v1766
        %1789 = vmatprep.subr.mxu0 0.0
        %1790 = vmatpush1.msra.mxu0 %v1767
        %1791 = vmatprep.subr.mxu0 0.0
        %1792 = vmatpush1.msra.mxu0 0.0
        %1793 = vmatprep.subr.mxu0 0.0
        %1794 = vmatpush1.msra.mxu0 0.0
        %1795 = vmatprep.subr.mxu0 0.0
        %1796 = vmatpush1.msra.mxu0 0.0
        %1797 = vmatprep.subr.mxu0 0.0
        %1798 = vmatpush1.msra.mxu0 0.0
        %1799 = vmatprep.subr.mxu0 0.0
        %1800 = vmatpush1.msra.mxu0 0.0
        %1801 = vmatprep.subr.mxu0 0.0
        %1802 = vmatpush1.msra.mxu0 0.0
        %1803 = vmatprep.subr.mxu0 0.0
        %1804 = vmatpush1.msra.mxu0 0.0
        %1805 = vmatprep.subr.mxu0 0.0
        %1806 = vmatpush1.msra.mxu0 0.0
        %1807 = vmatprep.subr.mxu0 0.0
        %1808 = vmatpush1.msra.mxu0 0.0
        %1809 = vmatprep.subr.mxu0 0.0
        %1810 = vmatpush1.msra.mxu0 0.0
        %1811 = vmatprep.subr.mxu0 0.0
        %1812 = vmatpush1.msra.mxu0 0.0
        %1813 = vmatprep.subr.mxu0 0.0
        %1814 = vmatpush1.msra.mxu0 0.0
        %1815 = vmatprep.subr.mxu0 0.0
        %1816 = vmatpush1.msra.mxu0 0.0
        %1817 = vmatprep.subr.mxu0 0.0
        %1818 = vmatpush1.msra.mxu0 0.0
        %1819 = vmatprep.subr.mxu0 0.0
        %1820 = vmatpush1.msra.mxu0 0.0
        %1821 = vmatprep.subr.mxu0 0.0
        %1822 = vmatpush1.msra.mxu0 0.0
        %1823 = vmatprep.subr.mxu0 0.0
        %1824 = vmatpush1.msra.mxu0 0.0
        %1825 = vmatprep.subr.mxu0 0.0
        %1826 = vmatpush1.msra.mxu0 0.0
        %1827 = vmatprep.subr.mxu0 0.0
        %1828 = vmatpush1.msra.mxu0 0.0
        %1829 = vmatprep.subr.mxu0 0.0
        %1830 = vmatpush1.msra.mxu0 0.0
        %1831 = vmatprep.subr.mxu0 0.0
        %1832 = vmatpush1.msra.mxu0 0.0
        %1833 = vmatprep.subr.mxu0 0.0
        %1834 = vmatpush1.msra.mxu0 0.0
        %1835 = vmatprep.subr.mxu0 0.0
        %1836 = vmatpush1.msra.mxu0 0.0
        %1837 = vmatprep.mubr.f32.mxu0 0.0
        %1838 = vmatmul.mubr.f32.gmra.mrb[0].mxu0 %v1771
        %v1839 = vpop.f32.mrb[0].mxu0
        %v1840 = vadd.f32 0.0, %v1839
        %v1841 = vpop.f32.mrb[0].mxu0
        %1842 = vdwg.mxu0
        %v1843 = vadd.f32 %v1757, %v1840
        %s1844 = scalar_lea.vmem %s5, 288
        %v1845 = vld [vmem:[%s1844] sm:$0xff]
        %v1846 = vld [vmem:[%s1844 + $0x8] sm:$0xff]
        %v1847 = vld [vmem:[%s1844 + $0x10] sm:$0xff]
        %v1848 = vld [vmem:[%s1844 + $0x18] sm:$0xff]
        %v1849 = vld [vmem:[%s1844 + $0x20] sm:$0xff]
        %v1850 = vld [vmem:[%s1844 + $0x28] sm:$0xff]
        %v1851 = vld [vmem:[%s1844 + $0x30] sm:$0xff]
        %v1852 = vld [vmem:[%s1844 + $0x38] sm:$0xff]
        %v1853 = vld [vmem:[%s1844 + $0x40] sm:$0xff]
        %v1854 = vrot.slane %v1501, 4
        %v1855 = vrot.slane %v1502, 4
        %v1856 = vsel %vm569, %v1854, %v1855
        %v1857 = vsel %vm1527, %v1856, 0
        %1859 = vmatprep.subr.mxu0 0.0
        %1860 = vmatpush1.msra.mxu0 %v1845
        %1861 = vmatprep.subr.mxu0 0.0
        %1862 = vmatpush1.msra.mxu0 %v1846
        %1863 = vmatprep.subr.mxu0 0.0
        %1864 = vmatpush1.msra.mxu0 %v1847
        %1865 = vmatprep.subr.mxu0 0.0
        %1866 = vmatpush1.msra.mxu0 %v1848
        %1867 = vmatprep.subr.mxu0 0.0
        %1868 = vmatpush1.msra.mxu0 %v1849
        %1869 = vmatprep.subr.mxu0 0.0
        %1870 = vmatpush1.msra.mxu0 %v1850
        %1871 = vmatprep.subr.mxu0 0.0
        %1872 = vmatpush1.msra.mxu0 %v1851
        %1873 = vmatprep.subr.mxu0 0.0
        %1874 = vmatpush1.msra.mxu0 %v1852
        %1875 = vmatprep.subr.mxu0 0.0
        %1876 = vmatpush1.msra.mxu0 %v1853
        %1877 = vmatprep.subr.mxu0 0.0
        %1878 = vmatpush1.msra.mxu0 0.0
        %1879 = vmatprep.subr.mxu0 0.0
        %1880 = vmatpush1.msra.mxu0 0.0
        %1881 = vmatprep.subr.mxu0 0.0
        %1882 = vmatpush1.msra.mxu0 0.0
        %1883 = vmatprep.subr.mxu0 0.0
        %1884 = vmatpush1.msra.mxu0 0.0
        %1885 = vmatprep.subr.mxu0 0.0
        %1886 = vmatpush1.msra.mxu0 0.0
        %1887 = vmatprep.subr.mxu0 0.0
        %1888 = vmatpush1.msra.mxu0 0.0
        %1889 = vmatprep.subr.mxu0 0.0
        %1890 = vmatpush1.msra.mxu0 0.0
        %1891 = vmatprep.subr.mxu0 0.0
        %1892 = vmatpush1.msra.mxu0 0.0
        %1893 = vmatprep.subr.mxu0 0.0
        %1894 = vmatpush1.msra.mxu0 0.0
        %1895 = vmatprep.subr.mxu0 0.0
        %1896 = vmatpush1.msra.mxu0 0.0
        %1897 = vmatprep.subr.mxu0 0.0
        %1898 = vmatpush1.msra.mxu0 0.0
        %1899 = vmatprep.subr.mxu0 0.0
        %1900 = vmatpush1.msra.mxu0 0.0
        %1901 = vmatprep.subr.mxu0 0.0
        %1902 = vmatpush1.msra.mxu0 0.0
        %1903 = vmatprep.subr.mxu0 0.0
        %1904 = vmatpush1.msra.mxu0 0.0
        %1905 = vmatprep.subr.mxu0 0.0
        %1906 = vmatpush1.msra.mxu0 0.0
        %1907 = vmatprep.subr.mxu0 0.0
        %1908 = vmatpush1.msra.mxu0 0.0
        %1909 = vmatprep.subr.mxu0 0.0
        %1910 = vmatpush1.msra.mxu0 0.0
        %1911 = vmatprep.subr.mxu0 0.0
        %1912 = vmatpush1.msra.mxu0 0.0
        %1913 = vmatprep.subr.mxu0 0.0
        %1914 = vmatpush1.msra.mxu0 0.0
        %1915 = vmatprep.subr.mxu0 0.0
        %1916 = vmatpush1.msra.mxu0 0.0
        %1917 = vmatprep.subr.mxu0 0.0
        %1918 = vmatpush1.msra.mxu0 0.0
        %1919 = vmatprep.subr.mxu0 0.0
        %1920 = vmatpush1.msra.mxu0 0.0
        %1921 = vmatprep.subr.mxu0 0.0
        %1922 = vmatpush1.msra.mxu0 0.0
        %1923 = vmatprep.mubr.f32.mxu0 0.0
        %1924 = vmatmul.mubr.f32.gmra.mrb[0].mxu0 %v1857
        %v1925 = vpop.f32.mrb[0].mxu0
        %v1926 = vadd.f32 0.0, %v1925
        %v1927 = vpop.f32.mrb[0].mxu0
        %1928 = vdwg.mxu0
        %v1929 = vadd.f32 %v1843, %v1926
        %v1930 = vld [vmem:[%s6] sm:$0x1]
        %v1932 = vlaneseq
        %v1933 = vshrl.u32 %v1932, 7
        %v1934 = vsub.s32 0, %v1933
        %v1935 = vrot.slane %v1930, %v1934
        %v1937 = vadd.f32 %v1929, %v1935
        %v1938 = vmax.f32 %v1937, 0.0
        %v1939 = vld [vmem:[%s7] sm:$0xf]
        %vm1940 = vcmask 64512
        %v1942 = vsel %vm1940, %v1939, 0
        %1944 = vmatprep.subr.mxu0 0.0
        %1945 = vmatpush1.msra.mxu0 %v1938
        %1946 = vmatprep.subr.mxu0 0.0
        %1947 = vmatpush1.msra.mxu0 0.0
        %1948 = vmatprep.subr.mxu0 0.0
        %1949 = vmatpush1.msra.mxu0 0.0
        %1950 = vmatprep.subr.mxu0 0.0
        %1951 = vmatpush1.msra.mxu0 0.0
        %1952 = vmatprep.subr.mxu0 0.0
        %1953 = vmatpush1.msra.mxu0 0.0
        %1954 = vmatprep.subr.mxu0 0.0
        %1955 = vmatpush1.msra.mxu0 0.0
        %1956 = vmatprep.subr.mxu0 0.0
        %1957 = vmatpush1.msra.mxu0 0.0
        %1958 = vmatprep.subr.mxu0 0.0
        %1959 = vmatpush1.msra.mxu0 0.0
        %1960 = vmatprep.subr.mxu0 0.0
        %1961 = vmatpush1.msra.mxu0 0.0
        %1962 = vmatprep.subr.mxu0 0.0
        %1963 = vmatpush1.msra.mxu0 0.0
        %1964 = vmatprep.subr.mxu0 0.0
        %1965 = vmatpush1.msra.mxu0 0.0
        %1966 = vmatprep.subr.mxu0 0.0
        %1967 = vmatpush1.msra.mxu0 0.0
        %1968 = vmatprep.subr.mxu0 0.0
        %1969 = vmatpush1.msra.mxu0 0.0
        %1970 = vmatprep.subr.mxu0 0.0
        %1971 = vmatpush1.msra.mxu0 0.0
        %1972 = vmatprep.subr.mxu0 0.0
        %1973 = vmatpush1.msra.mxu0 0.0
        %1974 = vmatprep.subr.mxu0 0.0
        %1975 = vmatpush1.msra.mxu0 0.0
        %1976 = vmatprep.subr.mxu0 0.0
        %1977 = vmatpush1.msra.mxu0 0.0
        %1978 = vmatprep.subr.mxu0 0.0
        %1979 = vmatpush1.msra.mxu0 0.0
        %1980 = vmatprep.subr.mxu0 0.0
        %1981 = vmatpush1.msra.mxu0 0.0
        %1982 = vmatprep.subr.mxu0 0.0
        %1983 = vmatpush1.msra.mxu0 0.0
        %1984 = vmatprep.subr.mxu0 0.0
        %1985 = vmatpush1.msra.mxu0 0.0
        %1986 = vmatprep.subr.mxu0 0.0
        %1987 = vmatpush1.msra.mxu0 0.0
        %1988 = vmatprep.subr.mxu0 0.0
        %1989 = vmatpush1.msra.mxu0 0.0
        %1990 = vmatprep.subr.mxu0 0.0
        %1991 = vmatpush1.msra.mxu0 0.0
        %1992 = vmatprep.subr.mxu0 0.0
        %1993 = vmatpush1.msra.mxu0 0.0
        %1994 = vmatprep.subr.mxu0 0.0
        %1995 = vmatpush1.msra.mxu0 0.0
        %1996 = vmatprep.subr.mxu0 0.0
        %1997 = vmatpush1.msra.mxu0 0.0
        %1998 = vmatprep.subr.mxu0 0.0
        %1999 = vmatpush1.msra.mxu0 0.0
        %2000 = vmatprep.subr.mxu0 0.0
        %2001 = vmatpush1.msra.mxu0 0.0
        %2002 = vmatprep.subr.mxu0 0.0
        %2003 = vmatpush1.msra.mxu0 0.0
        %2004 = vmatprep.subr.mxu0 0.0
        %2005 = vmatpush1.msra.mxu0 0.0
        %2006 = vmatprep.subr.mxu0 0.0
        %2007 = vmatpush1.msra.mxu0 0.0
        %2008 = vmatprep.mubr.f32.mxu0 0.0
        %2009 = vmatmul.mubr.f32.gmra.mrb[0].mxu0 %v1942
        %v2010 = vpop.f32.mrb[0].mxu0
        %v2011 = vadd.f32 0.0, %v2010
        %v2012 = vpop.f32.mrb[0].mxu0
        %2013 = vdwg.mxu0
        %s2014 = scalar_lea.vmem %s7, 4
        %v2015 = vld [vmem:[%s2014] sm:$0xf]
        %v2017 = vsel %vm1940, %v2015, 0
        %2019 = vmatprep.subr.mxu0 0.0
        %2020 = vmatpush1.msra.mxu0 %v1938
        %2021 = vmatprep.subr.mxu0 0.0
        %2022 = vmatpush1.msra.mxu0 0.0
        %2023 = vmatprep.subr.mxu0 0.0
        %2024 = vmatpush1.msra.mxu0 0.0
        %2025 = vmatprep.subr.mxu0 0.0
        %2026 = vmatpush1.msra.mxu0 0.0
        %2027 = vmatprep.subr.mxu0 0.0
        %2028 = vmatpush1.msra.mxu0 0.0
        %2029 = vmatprep.subr.mxu0 0.0
        %2030 = vmatpush1.msra.mxu0 0.0
        %2031 = vmatprep.subr.mxu0 0.0
        %2032 = vmatpush1.msra.mxu0 0.0
        %2033 = vmatprep.subr.mxu0 0.0
        %2034 = vmatpush1.msra.mxu0 0.0
        %2035 = vmatprep.subr.mxu0 0.0
        %2036 = vmatpush1.msra.mxu0 0.0
        %2037 = vmatprep.subr.mxu0 0.0
        %2038 = vmatpush1.msra.mxu0 0.0
        %2039 = vmatprep.subr.mxu0 0.0
        %2040 = vmatpush1.msra.mxu0 0.0
        %2041 = vmatprep.subr.mxu0 0.0
        %2042 = vmatpush1.msra.mxu0 0.0
        %2043 = vmatprep.subr.mxu0 0.0
        %2044 = vmatpush1.msra.mxu0 0.0
        %2045 = vmatprep.subr.mxu0 0.0
        %2046 = vmatpush1.msra.mxu0 0.0
        %2047 = vmatprep.subr.mxu0 0.0
        %2048 = vmatpush1.msra.mxu0 0.0
        %2049 = vmatprep.subr.mxu0 0.0
        %2050 = vmatpush1.msra.mxu0 0.0
        %2051 = vmatprep.subr.mxu0 0.0
        %2052 = vmatpush1.msra.mxu0 0.0
        %2053 = vmatprep.subr.mxu0 0.0
        %2054 = vmatpush1.msra.mxu0 0.0
        %2055 = vmatprep.subr.mxu0 0.0
        %2056 = vmatpush1.msra.mxu0 0.0
        %2057 = vmatprep.subr.mxu0 0.0
        %2058 = vmatpush1.msra.mxu0 0.0
        %2059 = vmatprep.subr.mxu0 0.0
        %2060 = vmatpush1.msra.mxu0 0.0
        %2061 = vmatprep.subr.mxu0 0.0
        %2062 = vmatpush1.msra.mxu0 0.0
        %2063 = vmatprep.subr.mxu0 0.0
        %2064 = vmatpush1.msra.mxu0 0.0
        %2065 = vmatprep.subr.mxu0 0.0
        %2066 = vmatpush1.msra.mxu0 0.0
        %2067 = vmatprep.subr.mxu0 0.0
        %2068 = vmatpush1.msra.mxu0 0.0
        %2069 = vmatprep.subr.mxu0 0.0
        %2070 = vmatpush1.msra.mxu0 0.0
        %2071 = vmatprep.subr.mxu0 0.0
        %2072 = vmatpush1.msra.mxu0 0.0
        %2073 = vmatprep.subr.mxu0 0.0
        %2074 = vmatpush1.msra.mxu0 0.0
        %2075 = vmatprep.subr.mxu0 0.0
        %2076 = vmatpush1.msra.mxu0 0.0
        %2077 = vmatprep.subr.mxu0 0.0
        %2078 = vmatpush1.msra.mxu0 0.0
        %2079 = vmatprep.subr.mxu0 0.0
        %2080 = vmatpush1.msra.mxu0 0.0
        %2081 = vmatprep.subr.mxu0 0.0
        %2082 = vmatpush1.msra.mxu0 0.0
        %2083 = vmatprep.mubr.f32.mxu0 0.0
        %2084 = vmatmul.mubr.f32.gmra.mrb[0].mxu0 %v2017
        %v2085 = vpop.f32.mrb[0].mxu0
        %v2086 = vadd.f32 0.0, %v2085
        %v2087 = vpop.f32.mrb[0].mxu0
        %2088 = vdwg.mxu0
        %v2089 = vmax.f32 %v2011, %v2086
        %v2090 = vld [vmem:[%s8] sm:$0xff]
        %v2091 = vld [vmem:[%s8 + $0x8] sm:$0xff]
        %v2092 = vld [vmem:[%s8 + $0x10] sm:$0xff]
        %v2093 = vld [vmem:[%s8 + $0x18] sm:$0xff]
        %v2094 = vld [vmem:[%s8 + $0x20] sm:$0xff]
        %v2095 = vld [vmem:[%s8 + $0x28] sm:$0xff]
        %v2096 = vld [vmem:[%s8 + $0x30] sm:$0xff]
        %v2097 = vld [vmem:[%s8 + $0x38] sm:$0xff]
        %v2098 = vld [vmem:[%s8 + $0x40] sm:$0xff]
        %v2099 = vld [vmem:[%s8 + $0x48] sm:$0xff]
        %vm2100 = vcmask 654336
        %v2102 = vsel %vm2100, %v2089, 0
        %2104 = vmatprep.subr.mxu0 0.0
        %2105 = vmatpush1.msra.mxu0 %v2090
        %2106 = vmatprep.subr.mxu0 0.0
        %2107 = vmatpush1.msra.mxu0 %v2091
        %2108 = vmatprep.subr.mxu0 0.0
        %2109 = vmatpush1.msra.mxu0 %v2092
        %2110 = vmatprep.subr.mxu0 0.0
        %2111 = vmatpush1.msra.mxu0 %v2093
        %2112 = vmatprep.subr.mxu0 0.0
        %2113 = vmatpush1.msra.mxu0 %v2094
        %2114 = vmatprep.subr.mxu0 0.0
        %2115 = vmatpush1.msra.mxu0 %v2095
        %2116 = vmatprep.subr.mxu0 0.0
        %2117 = vmatpush1.msra.mxu0 %v2096
        %2118 = vmatprep.subr.mxu0 0.0
        %2119 = vmatpush1.msra.mxu0 %v2097
        %2120 = vmatprep.subr.mxu0 0.0
        %2121 = vmatpush1.msra.mxu0 %v2098
        %2122 = vmatprep.subr.mxu0 0.0
        %2123 = vmatpush1.msra.mxu0 %v2099
        %2124 = vmatprep.subr.mxu0 0.0
        %2125 = vmatpush1.msra.mxu0 0.0
        %2126 = vmatprep.subr.mxu0 0.0
        %2127 = vmatpush1.msra.mxu0 0.0
        %2128 = vmatprep.subr.mxu0 0.0
        %2129 = vmatpush1.msra.mxu0 0.0
        %2130 = vmatprep.subr.mxu0 0.0
        %2131 = vmatpush1.msra.mxu0 0.0
        %2132 = vmatprep.subr.mxu0 0.0
        %2133 = vmatpush1.msra.mxu0 0.0
        %2134 = vmatprep.subr.mxu0 0.0
        %2135 = vmatpush1.msra.mxu0 0.0
        %2136 = vmatprep.subr.mxu0 0.0
        %2137 = vmatpush1.msra.mxu0 0.0
        %2138 = vmatprep.subr.mxu0 0.0
        %2139 = vmatpush1.msra.mxu0 0.0
        %2140 = vmatprep.subr.mxu0 0.0
        %2141 = vmatpush1.msra.mxu0 0.0
        %2142 = vmatprep.subr.mxu0 0.0
        %2143 = vmatpush1.msra.mxu0 0.0
        %2144 = vmatprep.subr.mxu0 0.0
        %2145 = vmatpush1.msra.mxu0 0.0
        %2146 = vmatprep.subr.mxu0 0.0
        %2147 = vmatpush1.msra.mxu0 0.0
        %2148 = vmatprep.subr.mxu0 0.0
        %2149 = vmatpush1.msra.mxu0 0.0
        %2150 = vmatprep.subr.mxu0 0.0
        %2151 = vmatpush1.msra.mxu0 0.0
        %2152 = vmatprep.subr.mxu0 0.0
        %2153 = vmatpush1.msra.mxu0 0.0
        %2154 = vmatprep.subr.mxu0 0.0
        %2155 = vmatpush1.msra.mxu0 0.0
        %2156 = vmatprep.subr.mxu0 0.0
        %2157 = vmatpush1.msra.mxu0 0.0
        %2158 = vmatprep.subr.mxu0 0.0
        %2159 = vmatpush1.msra.mxu0 0.0
        %2160 = vmatprep.subr.mxu0 0.0
        %2161 = vmatpush1.msra.mxu0 0.0
        %2162 = vmatprep.subr.mxu0 0.0
        %2163 = vmatpush1.msra.mxu0 0.0
        %2164 = vmatprep.subr.mxu0 0.0
        %2165 = vmatpush1.msra.mxu0 0.0
        %2166 = vmatprep.subr.mxu0 0.0
        %2167 = vmatpush1.msra.mxu0 0.0
        %2168 = vmatprep.mubr.f32.mxu0 0.0
        %2169 = vmatmul.mubr.f32.gmra.mrb[0].mxu0 %v2102
        %v2170 = vpop.f32.mrb[0].mxu0
        %v2171 = vadd.f32 0.0, %v2170
        %v2172 = vpop.f32.mrb[0].mxu0
        %2173 = vdwg.mxu0
        %s2174 = scalar_lea.vmem %s8, 80
        %v2175 = vld [vmem:[%s2174] sm:$0xff]
        %v2176 = vld [vmem:[%s2174 + $0x8] sm:$0xff]
        %v2177 = vld [vmem:[%s2174 + $0x10] sm:$0xff]
        %v2178 = vld [vmem:[%s2174 + $0x18] sm:$0xff]
        %v2179 = vld [vmem:[%s2174 + $0x20] sm:$0xff]
        %v2180 = vld [vmem:[%s2174 + $0x28] sm:$0xff]
        %v2181 = vld [vmem:[%s2174 + $0x30] sm:$0xff]
        %v2182 = vld [vmem:[%s2174 + $0x38] sm:$0xff]
        %v2183 = vld [vmem:[%s2174 + $0x40] sm:$0xff]
        %v2184 = vld [vmem:[%s2174 + $0x48] sm:$0xff]
        %2185 = vmatprep.subr.mxu0 0.0
        %2186 = vmatpush1.msra.mxu0 %v2175
        %2187 = vmatprep.subr.mxu0 0.0
        %2188 = vmatpush1.msra.mxu0 %v2176
        %2189 = vmatprep.subr.mxu0 0.0
        %2190 = vmatpush1.msra.mxu0 %v2177
        %2191 = vmatprep.subr.mxu0 0.0
        %2192 = vmatpush1.msra.mxu0 %v2178
        %2193 = vmatprep.subr.mxu0 0.0
        %2194 = vmatpush1.msra.mxu0 %v2179
        %2195 = vmatprep.subr.mxu0 0.0
        %2196 = vmatpush1.msra.mxu0 %v2180
        %2197 = vmatprep.subr.mxu0 0.0
        %2198 = vmatpush1.msra.mxu0 %v2181
        %2199 = vmatprep.subr.mxu0 0.0
        %2200 = vmatpush1.msra.mxu0 %v2182
        %2201 = vmatprep.subr.mxu0 0.0
        %2202 = vmatpush1.msra.mxu0 %v2183
        %2203 = vmatprep.subr.mxu0 0.0
        %2204 = vmatpush1.msra.mxu0 %v2184
        %2205 = vmatprep.subr.mxu0 0.0
        %2206 = vmatpush1.msra.mxu0 0.0
        %2207 = vmatprep.subr.mxu0 0.0
        %2208 = vmatpush1.msra.mxu0 0.0
        %2209 = vmatprep.subr.mxu0 0.0
        %2210 = vmatpush1.msra.mxu0 0.0
        %2211 = vmatprep.subr.mxu0 0.0
        %2212 = vmatpush1.msra.mxu0 0.0
        %2213 = vmatprep.subr.mxu0 0.0
        %2214 = vmatpush1.msra.mxu0 0.0
        %2215 = vmatprep.subr.mxu0 0.0
        %2216 = vmatpush1.msra.mxu0 0.0
        %2217 = vmatprep.subr.mxu0 0.0
        %2218 = vmatpush1.msra.mxu0 0.0
        %2219 = vmatprep.subr.mxu0 0.0
        %2220 = vmatpush1.msra.mxu0 0.0
        %2221 = vmatprep.subr.mxu0 0.0
        %2222 = vmatpush1.msra.mxu0 0.0
        %2223 = vmatprep.subr.mxu0 0.0
        %2224 = vmatpush1.msra.mxu0 0.0
        %2225 = vmatprep.subr.mxu0 0.0
        %2226 = vmatpush1.msra.mxu0 0.0
        %2227 = vmatprep.subr.mxu0 0.0
        %2228 = vmatpush1.msra.mxu0 0.0
        %2229 = vmatprep.subr.mxu0 0.0
        %2230 = vmatpush1.msra.mxu0 0.0
        %2231 = vmatprep.subr.mxu0 0.0
        %2232 = vmatpush1.msra.mxu0 0.0
        %2233 = vmatprep.subr.mxu0 0.0
        %2234 = vmatpush1.msra.mxu0 0.0
        %2235 = vmatprep.subr.mxu0 0.0
        %2236 = vmatpush1.msra.mxu0 0.0
        %2237 = vmatprep.subr.mxu0 0.0
        %2238 = vmatpush1.msra.mxu0 0.0
        %2239 = vmatprep.subr.mxu0 0.0
        %2240 = vmatpush1.msra.mxu0 0.0
        %2241 = vmatprep.subr.mxu0 0.0
        %2242 = vmatpush1.msra.mxu0 0.0
        %2243 = vmatprep.subr.mxu0 0.0
        %2244 = vmatpush1.msra.mxu0 0.0
        %2245 = vmatprep.subr.mxu0 0.0
        %2246 = vmatpush1.msra.mxu0 0.0
        %2247 = vmatprep.subr.mxu0 0.0
        %2248 = vmatpush1.msra.mxu0 0.0
        %2249 = vmatprep.mubr.f32.mxu0 0.0
        %2250 = vmatmul.mubr.f32.gmra.mrb[0].mxu0 %v2102
        %v2251 = vpop.f32.mrb[0].mxu0
        %v2252 = vadd.f32 0.0, %v2251
        %v2253 = vpop.f32.mrb[0].mxu0
        %2254 = vdwg.mxu0
        %v2255 = vmax.f32 %v2171, %v2252
        %v2256 = vld [vmem:[%s10] sm:$0x1]
        %v2257 = vld [vmem:[%s9] sm:$0xff]
        %v2258 = vld [vmem:[%s9 + $0x8] sm:$0xff]
        %v2259 = vld [vmem:[%s9 + $0x10] sm:$0xff]
        %v2260 = vld [vmem:[%s9 + $0x18] sm:$0xff]
        %v2261 = vld [vmem:[%s9 + $0x20] sm:$0xff]
        %vm2262 = vcmask 326656
        %v2264 = vsel %vm2262, %v2255, 0
        %2266 = vmatprep.subr.mxu0 0.0
        %2267 = vmatpush1.msra.mxu0 %v2257
        %2268 = vmatprep.subr.mxu0 0.0
        %2269 = vmatpush1.msra.mxu0 %v2258
        %2270 = vmatprep.subr.mxu0 0.0
        %2271 = vmatpush1.msra.mxu0 %v2259
        %2272 = vmatprep.subr.mxu0 0.0
        %2273 = vmatpush1.msra.mxu0 %v2260
        %2274 = vmatprep.subr.mxu0 0.0
        %2275 = vmatpush1.msra.mxu0 %v2261
        %2276 = vmatprep.subr.mxu0 0.0
        %2277 = vmatpush1.msra.mxu0 0.0
        %2278 = vmatprep.subr.mxu0 0.0
        %2279 = vmatpush1.msra.mxu0 0.0
        %2280 = vmatprep.subr.mxu0 0.0
        %2281 = vmatpush1.msra.mxu0 0.0
        %2282 = vmatprep.subr.mxu0 0.0
        %2283 = vmatpush1.msra.mxu0 0.0
        %2284 = vmatprep.subr.mxu0 0.0
        %2285 = vmatpush1.msra.mxu0 0.0
        %2286 = vmatprep.subr.mxu0 0.0
        %2287 = vmatpush1.msra.mxu0 0.0
        %2288 = vmatprep.subr.mxu0 0.0
        %2289 = vmatpush1.msra.mxu0 0.0
        %2290 = vmatprep.subr.mxu0 0.0
        %2291 = vmatpush1.msra.mxu0 0.0
        %2292 = vmatprep.subr.mxu0 0.0
        %2293 = vmatpush1.msra.mxu0 0.0
        %2294 = vmatprep.subr.mxu0 0.0
        %2295 = vmatpush1.msra.mxu0 0.0
        %2296 = vmatprep.subr.mxu0 0.0
        %2297 = vmatpush1.msra.mxu0 0.0
        %2298 = vmatprep.subr.mxu0 0.0
        %2299 = vmatpush1.msra.mxu0 0.0
        %2300 = vmatprep.subr.mxu0 0.0
        %2301 = vmatpush1.msra.mxu0 0.0
        %2302 = vmatprep.subr.mxu0 0.0
        %2303 = vmatpush1.msra.mxu0 0.0
        %2304 = vmatprep.subr.mxu0 0.0
        %2305 = vmatpush1.msra.mxu0 0.0
        %2306 = vmatprep.subr.mxu0 0.0
        %2307 = vmatpush1.msra.mxu0 0.0
        %2308 = vmatprep.subr.mxu0 0.0
        %2309 = vmatpush1.msra.mxu0 0.0
        %2310 = vmatprep.subr.mxu0 0.0
        %2311 = vmatpush1.msra.mxu0 0.0
        %2312 = vmatprep.subr.mxu0 0.0
        %2313 = vmatpush1.msra.mxu0 0.0
        %2314 = vmatprep.subr.mxu0 0.0
        %2315 = vmatpush1.msra.mxu0 0.0
        %2316 = vmatprep.subr.mxu0 0.0
        %2317 = vmatpush1.msra.mxu0 0.0
        %2318 = vmatprep.subr.mxu0 0.0
        %2319 = vmatpush1.msra.mxu0 0.0
        %2320 = vmatprep.subr.mxu0 0.0
        %2321 = vmatpush1.msra.mxu0 0.0
        %2322 = vmatprep.subr.mxu0 0.0
        %2323 = vmatpush1.msra.mxu0 0.0
        %2324 = vmatprep.subr.mxu0 0.0
        %2325 = vmatpush1.msra.mxu0 0.0
        %2326 = vmatprep.subr.mxu0 0.0
        %2327 = vmatpush1.msra.mxu0 0.0
        %2328 = vmatprep.subr.mxu0 0.0
        %2329 = vmatpush1.msra.mxu0 0.0
        %2330 = vmatprep.mubr.f32.mxu0 0.0
        %2331 = vmatmul.mubr.f32.gmra.mrb[0].mxu0 %v2264
        %v2332 = vpop.f32.mrb[0].mxu0
        %v2333 = vadd.f32 0.0, %v2332
        %v2334 = vpop.f32.mrb[0].mxu0
        %2335 = vdwg.mxu0
        %v2336 = vadd.f32 %v2256, %v2333
        %s2337 = scalar_lea.vmem %s9, 40
        %v2338 = vld [vmem:[%s2337] sm:$0xff]
        %v2339 = vld [vmem:[%s2337 + $0x8] sm:$0xff]
        %v2340 = vld [vmem:[%s2337 + $0x10] sm:$0xff]
        %v2341 = vld [vmem:[%s2337 + $0x18] sm:$0xff]
        %v2342 = vld [vmem:[%s2337 + $0x20] sm:$0xff]
        %v2343 = vrot.slane %v2255, 1
        %v2344 = vsel %vm2262, %v2343, 0
        %2346 = vmatprep.subr.mxu0 0.0
        %2347 = vmatpush1.msra.mxu0 %v2338
        %2348 = vmatprep.subr.mxu0 0.0
        %2349 = vmatpush1.msra.mxu0 %v2339
        %2350 = vmatprep.subr.mxu0 0.0
        %2351 = vmatpush1.msra.mxu0 %v2340
        %2352 = vmatprep.subr.mxu0 0.0
        %2353 = vmatpush1.msra.mxu0 %v2341
        %2354 = vmatprep.subr.mxu0 0.0
        %2355 = vmatpush1.msra.mxu0 %v2342
        %2356 = vmatprep.subr.mxu0 0.0
        %2357 = vmatpush1.msra.mxu0 0.0
        %2358 = vmatprep.subr.mxu0 0.0
        %2359 = vmatpush1.msra.mxu0 0.0
        %2360 = vmatprep.subr.mxu0 0.0
        %2361 = vmatpush1.msra.mxu0 0.0
        %2362 = vmatprep.subr.mxu0 0.0
        %2363 = vmatpush1.msra.mxu0 0.0
        %2364 = vmatprep.subr.mxu0 0.0
        %2365 = vmatpush1.msra.mxu0 0.0
        %2366 = vmatprep.subr.mxu0 0.0
        %2367 = vmatpush1.msra.mxu0 0.0
        %2368 = vmatprep.subr.mxu0 0.0
        %2369 = vmatpush1.msra.mxu0 0.0
        %2370 = vmatprep.subr.mxu0 0.0
        %2371 = vmatpush1.msra.mxu0 0.0
        %2372 = vmatprep.subr.mxu0 0.0
        %2373 = vmatpush1.msra.mxu0 0.0
        %2374 = vmatprep.subr.mxu0 0.0
        %2375 = vmatpush1.msra.mxu0 0.0
        %2376 = vmatprep.subr.mxu0 0.0
        %2377 = vmatpush1.msra.mxu0 0.0
        %2378 = vmatprep.subr.mxu0 0.0
        %2379 = vmatpush1.msra.mxu0 0.0
        %2380 = vmatprep.subr.mxu0 0.0
        %2381 = vmatpush1.msra.mxu0 0.0
        %2382 = vmatprep.subr.mxu0 0.0
        %2383 = vmatpush1.msra.mxu0 0.0
        %2384 = vmatprep.subr.mxu0 0.0
        %2385 = vmatpush1.msra.mxu0 0.0
        %2386 = vmatprep.subr.mxu0 0.0
        %2387 = vmatpush1.msra.mxu0 0.0
        %2388 = vmatprep.subr.mxu0 0.0
        %2389 = vmatpush1.msra.mxu0 0.0
        %2390 = vmatprep.subr.mxu0 0.0
        %2391 = vmatpush1.msra.mxu0 0.0
        %2392 = vmatprep.subr.mxu0 0.0
        %2393 = vmatpush1.msra.mxu0 0.0
        %2394 = vmatprep.subr.mxu0 0.0
        %2395 = vmatpush1.msra.mxu0 0.0
        %2396 = vmatprep.subr.mxu0 0.0
        %2397 = vmatpush1.msra.mxu0 0.0
        %2398 = vmatprep.subr.mxu0 0.0
        %2399 = vmatpush1.msra.mxu0 0.0
        %2400 = vmatprep.subr.mxu0 0.0
        %2401 = vmatpush1.msra.mxu0 0.0
        %2402 = vmatprep.subr.mxu0 0.0
        %2403 = vmatpush1.msra.mxu0 0.0
        %2404 = vmatprep.subr.mxu0 0.0
        %2405 = vmatpush1.msra.mxu0 0.0
        %2406 = vmatprep.subr.mxu0 0.0
        %2407 = vmatpush1.msra.mxu0 0.0
        %2408 = vmatprep.subr.mxu0 0.0
        %2409 = vmatpush1.msra.mxu0 0.0
        %2410 = vmatprep.mubr.f32.mxu0 0.0
        %2411 = vmatmul.mubr.f32.gmra.mrb[0].mxu0 %v2344
        %v2412 = vpop.f32.mrb[0].mxu0
        %v2413 = vadd.f32 0.0, %v2412
        %v2414 = vpop.f32.mrb[0].mxu0
        %2415 = vdwg.mxu0
        %v2416 = vadd.f32 %v2336, %v2413
        %s2417 = scalar_lea.vmem %s9, 80
        %v2418 = vld [vmem:[%s2417] sm:$0xff]
        %v2419 = vld [vmem:[%s2417 + $0x8] sm:$0xff]
        %v2420 = vld [vmem:[%s2417 + $0x10] sm:$0xff]
        %v2421 = vld [vmem:[%s2417 + $0x18] sm:$0xff]
        %v2422 = vld [vmem:[%s2417 + $0x20] sm:$0xff]
        %v2423 = vrot.slane %v2255, 2
        %v2424 = vsel %vm2262, %v2423, 0
        %2426 = vmatprep.subr.mxu0 0.0
        %2427 = vmatpush1.msra.mxu0 %v2418
        %2428 = vmatprep.subr.mxu0 0.0
        %2429 = vmatpush1.msra.mxu0 %v2419
        %2430 = vmatprep.subr.mxu0 0.0
        %2431 = vmatpush1.msra.mxu0 %v2420
        %2432 = vmatprep.subr.mxu0 0.0
        %2433 = vmatpush1.msra.mxu0 %v2421
        %2434 = vmatprep.subr.mxu0 0.0
        %2435 = vmatpush1.msra.mxu0 %v2422
        %2436 = vmatprep.subr.mxu0 0.0
        %2437 = vmatpush1.msra.mxu0 0.0
        %2438 = vmatprep.subr.mxu0 0.0
        %2439 = vmatpush1.msra.mxu0 0.0
        %2440 = vmatprep.subr.mxu0 0.0
        %2441 = vmatpush1.msra.mxu0 0.0
        %2442 = vmatprep.subr.mxu0 0.0
        %2443 = vmatpush1.msra.mxu0 0.0
        %2444 = vmatprep.subr.mxu0 0.0
        %2445 = vmatpush1.msra.mxu0 0.0
        %2446 = vmatprep.subr.mxu0 0.0
        %2447 = vmatpush1.msra.mxu0 0.0
        %2448 = vmatprep.subr.mxu0 0.0
        %2449 = vmatpush1.msra.mxu0 0.0
        %2450 = vmatprep.subr.mxu0 0.0
        %2451 = vmatpush1.msra.mxu0 0.0
        %2452 = vmatprep.subr.mxu0 0.0
        %2453 = vmatpush1.msra.mxu0 0.0
        %2454 = vmatprep.subr.mxu0 0.0
        %2455 = vmatpush1.msra.mxu0 0.0
        %2456 = vmatprep.subr.mxu0 0.0
        %2457 = vmatpush1.msra.mxu0 0.0
        %2458 = vmatprep.subr.mxu0 0.0
        %2459 = vmatpush1.msra.mxu0 0.0
        %2460 = vmatprep.subr.mxu0 0.0
        %2461 = vmatpush1.msra.mxu0 0.0
        %2462 = vmatprep.subr.mxu0 0.0
        %2463 = vmatpush1.msra.mxu0 0.0
        %2464 = vmatprep.subr.mxu0 0.0
        %2465 = vmatpush1.msra.mxu0 0.0
        %2466 = vmatprep.subr.mxu0 0.0
        %2467 = vmatpush1.msra.mxu0 0.0
        %2468 = vmatprep.subr.mxu0 0.0
        %2469 = vmatpush1.msra.mxu0 0.0
        %2470 = vmatprep.subr.mxu0 0.0
        %2471 = vmatpush1.msra.mxu0 0.0
        %2472 = vmatprep.subr.mxu0 0.0
        %2473 = vmatpush1.msra.mxu0 0.0
        %2474 = vmatprep.subr.mxu0 0.0
        %2475 = vmatpush1.msra.mxu0 0.0
        %2476 = vmatprep.subr.mxu0 0.0
        %2477 = vmatpush1.msra.mxu0 0.0
        %2478 = vmatprep.subr.mxu0 0.0
        %2479 = vmatpush1.msra.mxu0 0.0
        %2480 = vmatprep.subr.mxu0 0.0
        %2481 = vmatpush1.msra.mxu0 0.0
        %2482 = vmatprep.subr.mxu0 0.0
        %2483 = vmatpush1.msra.mxu0 0.0
        %2484 = vmatprep.subr.mxu0 0.0
        %2485 = vmatpush1.msra.mxu0 0.0
        %2486 = vmatprep.subr.mxu0 0.0
        %2487 = vmatpush1.msra.mxu0 0.0
        %2488 = vmatprep.subr.mxu0 0.0
        %2489 = vmatpush1.msra.mxu0 0.0
        %2490 = vmatprep.mubr.f32.mxu0 0.0
        %2491 = vmatmul.mubr.f32.gmra.mrb[0].mxu0 %v2424
        %v2492 = vpop.f32.mrb[0].mxu0
        %v2493 = vadd.f32 0.0, %v2492
        %v2494 = vpop.f32.mrb[0].mxu0
        %2495 = vdwg.mxu0
        %v2496 = vadd.f32 %v2416, %v2493
        %s2497 = scalar_lea.vmem %s9, 120
        %v2498 = vld [vmem:[%s2497] sm:$0xff]
        %v2499 = vld [vmem:[%s2497 + $0x8] sm:$0xff]
        %v2500 = vld [vmem:[%s2497 + $0x10] sm:$0xff]
        %v2501 = vld [vmem:[%s2497 + $0x18] sm:$0xff]
        %v2502 = vld [vmem:[%s2497 + $0x20] sm:$0xff]
        %v2503 = vrot.slane %v2255, 3
        %v2504 = vsel %vm2262, %v2503, 0
        %2506 = vmatprep.subr.mxu0 0.0
        %2507 = vmatpush1.msra.mxu0 %v2498
        %2508 = vmatprep.subr.mxu0 0.0
        %2509 = vmatpush1.msra.mxu0 %v2499
        %2510 = vmatprep.subr.mxu0 0.0
        %2511 = vmatpush1.msra.mxu0 %v2500
        %2512 = vmatprep.subr.mxu0 0.0
        %2513 = vmatpush1.msra.mxu0 %v2501
        %2514 = vmatprep.subr.mxu0 0.0
        %2515 = vmatpush1.msra.mxu0 %v2502
        %2516 = vmatprep.subr.mxu0 0.0
        %2517 = vmatpush1.msra.mxu0 0.0
        %2518 = vmatprep.subr.mxu0 0.0
        %2519 = vmatpush1.msra.mxu0 0.0
        %2520 = vmatprep.subr.mxu0 0.0
        %2521 = vmatpush1.msra.mxu0 0.0
        %2522 = vmatprep.subr.mxu0 0.0
        %2523 = vmatpush1.msra.mxu0 0.0
        %2524 = vmatprep.subr.mxu0 0.0
        %2525 = vmatpush1.msra.mxu0 0.0
        %2526 = vmatprep.subr.mxu0 0.0
        %2527 = vmatpush1.msra.mxu0 0.0
        %2528 = vmatprep.subr.mxu0 0.0
        %2529 = vmatpush1.msra.mxu0 0.0
        %2530 = vmatprep.subr.mxu0 0.0
        %2531 = vmatpush1.msra.mxu0 0.0
        %2532 = vmatprep.subr.mxu0 0.0
        %2533 = vmatpush1.msra.mxu0 0.0
        %2534 = vmatprep.subr.mxu0 0.0
        %2535 = vmatpush1.msra.mxu0 0.0
        %2536 = vmatprep.subr.mxu0 0.0
        %2537 = vmatpush1.msra.mxu0 0.0
        %2538 = vmatprep.subr.mxu0 0.0
        %2539 = vmatpush1.msra.mxu0 0.0
        %2540 = vmatprep.subr.mxu0 0.0
        %2541 = vmatpush1.msra.mxu0 0.0
        %2542 = vmatprep.subr.mxu0 0.0
        %2543 = vmatpush1.msra.mxu0 0.0
        %2544 = vmatprep.subr.mxu0 0.0
        %2545 = vmatpush1.msra.mxu0 0.0
        %2546 = vmatprep.subr.mxu0 0.0
        %2547 = vmatpush1.msra.mxu0 0.0
        %2548 = vmatprep.subr.mxu0 0.0
        %2549 = vmatpush1.msra.mxu0 0.0
        %2550 = vmatprep.subr.mxu0 0.0
        %2551 = vmatpush1.msra.mxu0 0.0
        %2552 = vmatprep.subr.mxu0 0.0
        %2553 = vmatpush1.msra.mxu0 0.0
        %2554 = vmatprep.subr.mxu0 0.0
        %2555 = vmatpush1.msra.mxu0 0.0
        %2556 = vmatprep.subr.mxu0 0.0
        %2557 = vmatpush1.msra.mxu0 0.0
        %2558 = vmatprep.subr.mxu0 0.0
        %2559 = vmatpush1.msra.mxu0 0.0
        %2560 = vmatprep.subr.mxu0 0.0
        %2561 = vmatpush1.msra.mxu0 0.0
        %2562 = vmatprep.subr.mxu0 0.0
        %2563 = vmatpush1.msra.mxu0 0.0
        %2564 = vmatprep.subr.mxu0 0.0
        %2565 = vmatpush1.msra.mxu0 0.0
        %2566 = vmatprep.subr.mxu0 0.0
        %2567 = vmatpush1.msra.mxu0 0.0
        %2568 = vmatprep.subr.mxu0 0.0
        %2569 = vmatpush1.msra.mxu0 0.0
        %2570 = vmatprep.mubr.f32.mxu0 0.0
        %2571 = vmatmul.mubr.f32.gmra.mrb[0].mxu0 %v2504
        %v2572 = vpop.f32.mrb[0].mxu0
        %v2573 = vadd.f32 0.0, %v2572
        %v2574 = vpop.f32.mrb[0].mxu0
        %2575 = vdwg.mxu0
        %v2576 = vadd.f32 %v2496, %v2573
        %v2577 = vmax.f32 %v2576, 0.0
        %v2578 = vld [vmem:[%s11] sm:$0xff]
        %v2579 = vld [vmem:[%s11 + $0x8] sm:$0xff]
        %v2580 = vld [vmem:[%s11 + $0x10] sm:$0xff]
        %v2581 = vld [vmem:[%s11 + $0x18] sm:$0xff]
        %v2582 = vld [vmem:[%s11 + $0x20] sm:$0xff]
        %v2583 = vld [vmem:[%s11 + $0x28] sm:$0xff]
        %v2584 = vld [vmem:[%s11 + $0x30] sm:$0xff]
        %v2585 = vld [vmem:[%s11 + $0x38] sm:$0xff]
        %v2586 = vld [vmem:[%s11 + $0x40] sm:$0xff]
        %v2587 = vld [vmem:[%s11 + $0x48] sm:$0xff]
        %v2588 = vld [vmem:[%s11 + $0x50] sm:$0xff]
        %v2589 = vld [vmem:[%s11 + $0x58] sm:$0xff]
        %v2590 = vld [vmem:[%s11 + $0x60] sm:$0xff]
        %v2591 = vld [vmem:[%s11 + $0x68] sm:$0xff]
        %v2592 = vld [vmem:[%s11 + $0x70] sm:$0xff]
        %v2593 = vld [vmem:[%s11 + $0x78] sm:$0xff]
        %v2594 = vld [vmem:[%s12] sm:$0x1]
        %2595 = vmatprep.subr.mxu0 0.0
        %2596 = vmatpush1.msra.mxu0 %v2578
        %2597 = vmatprep.subr.mxu0 0.0
        %2598 = vmatpush1.msra.mxu0 %v2579
        %2599 = vmatprep.subr.mxu0 0.0
        %2600 = vmatpush1.msra.mxu0 %v2580
        %2601 = vmatprep.subr.mxu0 0.0
        %2602 = vmatpush1.msra.mxu0 %v2581
        %2603 = vmatprep.subr.mxu0 0.0
        %2604 = vmatpush1.msra.mxu0 %v2582
        %2605 = vmatprep.subr.mxu0 0.0
        %2606 = vmatpush1.msra.mxu0 %v2583
        %2607 = vmatprep.subr.mxu0 0.0
        %2608 = vmatpush1.msra.mxu0 %v2584
        %2609 = vmatprep.subr.mxu0 0.0
        %2610 = vmatpush1.msra.mxu0 %v2585
        %2611 = vmatprep.subr.mxu0 0.0
        %2612 = vmatpush1.msra.mxu0 %v2586
        %2613 = vmatprep.subr.mxu0 0.0
        %2614 = vmatpush1.msra.mxu0 %v2587
        %2615 = vmatprep.subr.mxu0 0.0
        %2616 = vmatpush1.msra.mxu0 %v2588
        %2617 = vmatprep.subr.mxu0 0.0
        %2618 = vmatpush1.msra.mxu0 %v2589
        %2619 = vmatprep.subr.mxu0 0.0
        %2620 = vmatpush1.msra.mxu0 %v2590
        %2621 = vmatprep.subr.mxu0 0.0
        %2622 = vmatpush1.msra.mxu0 %v2591
        %2623 = vmatprep.subr.mxu0 0.0
        %2624 = vmatpush1.msra.mxu0 %v2592
        %2625 = vmatprep.subr.mxu0 0.0
        %2626 = vmatpush1.msra.mxu0 %v2593
        %2627 = vmatprep.subr.mxu0 0.0
        %2628 = vmatpush1.msra.mxu0 0.0
        %2629 = vmatprep.subr.mxu0 0.0
        %2630 = vmatpush1.msra.mxu0 0.0
        %2631 = vmatprep.subr.mxu0 0.0
        %2632 = vmatpush1.msra.mxu0 0.0
        %2633 = vmatprep.subr.mxu0 0.0
        %2634 = vmatpush1.msra.mxu0 0.0
        %2635 = vmatprep.subr.mxu0 0.0
        %2636 = vmatpush1.msra.mxu0 0.0
        %2637 = vmatprep.subr.mxu0 0.0
        %2638 = vmatpush1.msra.mxu0 0.0
        %2639 = vmatprep.subr.mxu0 0.0
        %2640 = vmatpush1.msra.mxu0 0.0
        %2641 = vmatprep.subr.mxu0 0.0
        %2642 = vmatpush1.msra.mxu0 0.0
        %2643 = vmatprep.subr.mxu0 0.0
        %2644 = vmatpush1.msra.mxu0 0.0
        %2645 = vmatprep.subr.mxu0 0.0
        %2646 = vmatpush1.msra.mxu0 0.0
        %2647 = vmatprep.subr.mxu0 0.0
        %2648 = vmatpush1.msra.mxu0 0.0
        %2649 = vmatprep.subr.mxu0 0.0
        %2650 = vmatpush1.msra.mxu0 0.0
        %2651 = vmatprep.subr.mxu0 0.0
        %2652 = vmatpush1.msra.mxu0 0.0
        %2653 = vmatprep.subr.mxu0 0.0
        %2654 = vmatpush1.msra.mxu0 0.0
        %2655 = vmatprep.subr.mxu0 0.0
        %2656 = vmatpush1.msra.mxu0 0.0
        %2657 = vmatprep.subr.mxu0 0.0
        %2658 = vmatpush1.msra.mxu0 0.0
        %2659 = vmatprep.mubr.f32.mxu0 0.0
        %2660 = vmatmul.mubr.f32.gmra.mrb[0].mxu0 %v2577
        %v2661 = vpop.f32.mrb[0].mxu0
        %v2662 = vadd.f32 %v2594, %v2661
        %v2663 = vpop.f32.mrb[0].mxu0
        %2664 = vdwg.mxu0
        %2665 = vst [vmem:[%s523] sm:$0x1] %v2662
        %v2666 = vmax.f32 %v2662, 0.0
        %v2667 = vld [vmem:[%s13] sm:$0xff]
        %v2668 = vld [vmem:[%s13 + $0x8] sm:$0xff]
        %v2669 = vld [vmem:[%s13 + $0x10] sm:$0xff]
        %v2670 = vld [vmem:[%s13 + $0x18] sm:$0xff]
        %v2671 = vld [vmem:[%s13 + $0x20] sm:$0xff]
        %v2672 = vld [vmem:[%s13 + $0x28] sm:$0xff]
        %v2673 = vld [vmem:[%s13 + $0x30] sm:$0xff]
        %v2674 = vld [vmem:[%s13 + $0x38] sm:$0xff]
        %v2675 = vld [vmem:[%s13 + $0x40] sm:$0xff]
        %v2676 = vld [vmem:[%s13 + $0x48] sm:$0xff]
        %v2677 = vld [vmem:[%s13 + $0x50] sm:$0xff]
        %v2678 = vld [vmem:[%s13 + $0x58] sm:$0xff]
        %v2679 = vld [vmem:[%s13 + $0x60] sm:$0xff]
        %v2680 = vld [vmem:[%s13 + $0x68] sm:$0xff]
        %v2681 = vld [vmem:[%s13 + $0x70] sm:$0xff]
        %v2682 = vld [vmem:[%s13 + $0x78] sm:$0xff]
        %v2683 = vld [vmem:[%s14] sm:$0x1]
        %2684 = vmatprep.subr.mxu0 0.0
        %2685 = vmatpush1.msra.mxu0 %v2667
        %2686 = vmatprep.subr.mxu0 0.0
        %2687 = vmatpush1.msra.mxu0 %v2668
        %2688 = vmatprep.subr.mxu0 0.0
        %2689 = vmatpush1.msra.mxu0 %v2669
        %2690 = vmatprep.subr.mxu0 0.0
        %2691 = vmatpush1.msra.mxu0 %v2670
        %2692 = vmatprep.subr.mxu0 0.0
        %2693 = vmatpush1.msra.mxu0 %v2671
        %2694 = vmatprep.subr.mxu0 0.0
        %2695 = vmatpush1.msra.mxu0 %v2672
        %2696 = vmatprep.subr.mxu0 0.0
        %2697 = vmatpush1.msra.mxu0 %v2673
        %2698 = vmatprep.subr.mxu0 0.0
        %2699 = vmatpush1.msra.mxu0 %v2674
        %2700 = vmatprep.subr.mxu0 0.0
        %2701 = vmatpush1.msra.mxu0 %v2675
        %2702 = vmatprep.subr.mxu0 0.0
        %2703 = vmatpush1.msra.mxu0 %v2676
        %2704 = vmatprep.subr.mxu0 0.0
        %2705 = vmatpush1.msra.mxu0 %v2677
        %2706 = vmatprep.subr.mxu0 0.0
        %2707 = vmatpush1.msra.mxu0 %v2678
        %2708 = vmatprep.subr.mxu0 0.0
        %2709 = vmatpush1.msra.mxu0 %v2679
        %2710 = vmatprep.subr.mxu0 0.0
        %2711 = vmatpush1.msra.mxu0 %v2680
        %2712 = vmatprep.subr.mxu0 0.0
        %2713 = vmatpush1.msra.mxu0 %v2681
        %2714 = vmatprep.subr.mxu0 0.0
        %2715 = vmatpush1.msra.mxu0 %v2682
        %2716 = vmatprep.subr.mxu0 0.0
        %2717 = vmatpush1.msra.mxu0 0.0
        %2718 = vmatprep.subr.mxu0 0.0
        %2719 = vmatpush1.msra.mxu0 0.0
        %2720 = vmatprep.subr.mxu0 0.0
        %2721 = vmatpush1.msra.mxu0 0.0
        %2722 = vmatprep.subr.mxu0 0.0
        %2723 = vmatpush1.msra.mxu0 0.0
        %2724 = vmatprep.subr.mxu0 0.0
        %2725 = vmatpush1.msra.mxu0 0.0
        %2726 = vmatprep.subr.mxu0 0.0
        %2727 = vmatpush1.msra.mxu0 0.0
        %2728 = vmatprep.subr.mxu0 0.0
        %2729 = vmatpush1.msra.mxu0 0.0
        %2730 = vmatprep.subr.mxu0 0.0
        %2731 = vmatpush1.msra.mxu0 0.0
        %2732 = vmatprep.subr.mxu0 0.0
        %2733 = vmatpush1.msra.mxu0 0.0
        %2734 = vmatprep.subr.mxu0 0.0
        %2735 = vmatpush1.msra.mxu0 0.0
        %2736 = vmatprep.subr.mxu0 0.0
        %2737 = vmatpush1.msra.mxu0 0.0
        %2738 = vmatprep.subr.mxu0 0.0
        %2739 = vmatpush1.msra.mxu0 0.0
        %2740 = vmatprep.subr.mxu0 0.0
        %2741 = vmatpush1.msra.mxu0 0.0
        %2742 = vmatprep.subr.mxu0 0.0
        %2743 = vmatpush1.msra.mxu0 0.0
        %2744 = vmatprep.subr.mxu0 0.0
        %2745 = vmatpush1.msra.mxu0 0.0
        %2746 = vmatprep.subr.mxu0 0.0
        %2747 = vmatpush1.msra.mxu0 0.0
        %2748 = vmatprep.mubr.f32.mxu0 0.0
        %2749 = vmatmul.mubr.f32.gmra.mrb[0].mxu0 %v2666
        %v2750 = vpop.f32.mrb[0].mxu0
        %v2751 = vadd.f32 %v2683, %v2750
        %v2752 = vpop.f32.mrb[0].mxu0
        %2753 = vdwg.mxu0
        %2754 = vst [vmem:[%s517] sm:$0x1] %v2751
        %s2755 = sand.u32 %s362, 1
        %s2756 = scalar_lea.sflag [#allocation3], %s2755
        %s2757 = sand.u32 %s362, 1
        %s2758 = scalar_lea.vmem [#allocation2], %s2757
        %s2759 = sand.u32 %s388, 1
        %s2760 = scalar_lea.sflag [#allocation5], %s2759
        %s2761 = sand.u32 %s388, 1
        %s2762 = scalar_lea.vmem [#allocation4], %s2761
        // Predicated region
        $region81: #{clusternet_forward.1} parent=79 // pred_check
          %p2763 = pneg %p372
        $region82: #{clusternet_forward.1} parent=79 // pred_check_branch
          %2765 = sbr.rel (%p2763) target = $region84
        $region83: #{clusternet_forward.1} parent=79 // pred_region
          %s2767 = ssub.s32 16, 16
          %2768 = vsyncadd %s2756, %s2767
          %s2769 = smul.addr %s34, 16
          %s2770 = scalar_lea.hbm %s15, %s2769
          %s2772 = sshll.u32 %s2758, 4
          %s2773 = int_to_ptr.vmem [resolvable:$true] %s2772
          %2775 = dma.vmem_to_hbm [thread:$0]  %s2773, 16, %s2770, %s2756
        $region84: #{clusternet_forward.1} parent=79 // pred_fallthru
          _
        // Predicated region
        $region85: #{clusternet_forward.1} parent=79 // pred_check
          %p2776 = pneg %p398
        $region86: #{clusternet_forward.1} parent=79 // pred_check_branch
          %2778 = sbr.rel (%p2776) target = $region88
        $region87: #{clusternet_forward.1} parent=79 // pred_region
          %s2780 = ssub.s32 16, 16
          %2781 = vsyncadd %s2760, %s2780
          %s2782 = smul.addr %s34, 16
          %s2783 = scalar_lea.hbm %s16, %s2782
          %s2785 = sshll.u32 %s2762, 4
          %s2786 = int_to_ptr.vmem [resolvable:$true] %s2785
          %2788 = dma.vmem_to_hbm [thread:$0]  %s2786, 16, %s2783, %s2760
        $region88: #{clusternet_forward.1} parent=79 // pred_fallthru
          _
      $region80: #{clusternet_forward.1} parent=5 // pred_fallthru
        _
      %p2789 = scmp.le.s32.totalorder 2, %s29
      // Predicated region
      $region89: #{clusternet_forward.1} parent=5 // pred_check
        %p2790 = pneg %p2789
      $region90: #{clusternet_forward.1} parent=5 // pred_check_branch
        %2792 = sbr.rel (%p2790) target = $region92
      $region91: #{clusternet_forward.1} parent=5 // pred_region
        %s2793 = ssub.s32 %s29, 2
        // Predicated region
        $region93: #{clusternet_forward.1} parent=91 // pred_check
          %p2794 = pneg %p378
        $region94: #{clusternet_forward.1} parent=91 // pred_check_branch
          %2796 = sbr.rel (%p2794) target = $region96
        $region95: #{clusternet_forward.1} parent=91 // pred_region
          %s2797 = sand.u32 %s363, 1
          %s2798 = scalar_lea.sflag [#allocation3], %s2797
          %s2799 = sand.u32 %s363, 1
          %s2800 = scalar_lea.vmem [#allocation2], %s2799
          %2801 = dma.done %s2798, 16
        $region96: #{clusternet_forward.1} parent=91 // pred_fallthru
          _
        // Predicated region
        $region97: #{clusternet_forward.1} parent=91 // pred_check
          %p2802 = pneg %p404
        $region98: #{clusternet_forward.1} parent=91 // pred_check_branch
          %2804 = sbr.rel (%p2802) target = $region100
        $region99: #{clusternet_forward.1} parent=91 // pred_region
          %s2805 = sand.u32 %s389, 1
          %s2806 = scalar_lea.sflag [#allocation5], %s2805
          %s2807 = sand.u32 %s389, 1
          %s2808 = scalar_lea.vmem [#allocation4], %s2807
          %2809 = dma.done %s2806, 16
        $region100: #{clusternet_forward.1} parent=91 // pred_fallthru
          _
      $region92: #{clusternet_forward.1} parent=5 // pred_fallthru
        _
    $region6: #{clusternet_forward.1} parent=1 // loop_footer
      %s33 = sadd.s32 1, %s29
    $region7: #{clusternet_forward.1} parent=1 // loop_footer_branch
      %28 = sbr.rel target = $region3
    $region8: #{clusternet_forward.1} parent=1 // loop_exit
      _
    %2810 = vsyncpa [#allocation3], 1
    %s2811 = scalar_lea.sflag [#allocation3], 1
    %2812 = vsyncpa %s2811, 1
    %2813 = vsyncpa [#allocation5], 1
    %s2814 = scalar_lea.sflag [#allocation5], 1
    %2815 = vsyncpa %s2814, 1

</llo_original>
